<compile_context>
chip_gen: v6e
topology: v6e:2x2x1
jax: 0.10.0
libtpu: 0.0.40
codegen_flags: <defaults>
</compile_context>

<pallas_src>
import functools
import math

import jax
import jax.numpy as jnp
from jax.experimental import pallas as pl
from jax.experimental.pallas import tpu as pltpu

LANE = 128
BF16 = jnp.bfloat16


def _round_up(x, m):
    return ((x + m - 1) // m) * m


def _pick_row_tile(rows, target=256):
    # Single full-extent block when small (always a legal BlockSpec); otherwise 256-row tiles.
    return rows if rows <= target else target


# ----------------------------------------------------------------------------- plain linear
def _linear_kernel(x_ref, w_ref, b_ref, o_ref):
    x = x_ref[...].astype(jnp.float32)
    acc = jnp.dot(x.astype(BF16), w_ref[...],
                  preferred_element_type=jnp.float32) + b_ref[...]
    o_ref[...] = acc.astype(o_ref.dtype)


def linear(x, w_bf16, b):
    M, K = x.shape
    N = w_bf16.shape[1]
    tm = _pick_row_tile(M)
    Mp = _round_up(M, tm)
    xp = jnp.pad(x, ((0, Mp - M), (0, 0))) if Mp != M else x
    out = pl.pallas_call(
        _linear_kernel,
        out_shape=jax.ShapeDtypeStruct((Mp, N), jnp.float32),
        grid=(Mp // tm,),
        in_specs=[
            pl.BlockSpec((tm, K), lambda i: (i, 0)),
            pl.BlockSpec((K, N), lambda i: (0, 0)),
            pl.BlockSpec((1, N), lambda i: (0, 0)),
        ],
        out_specs=pl.BlockSpec((tm, N), lambda i: (i, 0)),
        compiler_params=pltpu.CompilerParams(dimension_semantics=("parallel",)),
    )(xp, w_bf16, b)
    return out[:M] if Mp != M else out


# -------------------------------------------------- fused attention sublayer (per batch elem)
def _attn_block_kernel(h_ref, wqkv_ref, wo_ref, o_ref, *, heads, dim_head, ln_eps):
    x = h_ref[0].astype(jnp.float32)                      # (S, dim)  pre-LN residual
    # pre-LN (no affine)
    mu = jnp.mean(x, axis=-1, keepdims=True)
    var = jnp.mean((x - mu) ** 2, axis=-1, keepdims=True)
    xn = (x - mu) * jax.lax.rsqrt(var + ln_eps)

    # fused Q|K|V projection -- single bf16 GEMM, f32 accumulate
    qkv = jnp.dot(xn.astype(BF16), wqkv_ref[...],
                  preferred_element_type=jnp.float32)     # (S, 3*inner)
    wo = wo_ref[...]                                      # (inner, dim) bf16
    inner = heads * dim_head
    S = x.shape[0]
    scale = 1.0 / math.sqrt(dim_head)

    row = jax.lax.broadcasted_iota(jnp.int32, (S, S), 0)
    col = jax.lax.broadcasted_iota(jnp.int32, (S, S), 1)
    causal = col <= row

    proj = None
    for hh in range(heads):
        lo = hh * dim_head
        qh = qkv[:, lo:lo + dim_head]
        kh = qkv[:, inner + lo:inner + lo + dim_head]
        vh = qkv[:, 2 * inner + lo:2 * inner + lo + dim_head]
        # q @ k^T without materializing a transpose
        s = jax.lax.dot_general(qh.astype(BF16), kh.astype(BF16),
                                (((1,), (1,)), ((), ())),
                                preferred_element_type=jnp.float32) * scale
        s = jnp.where(causal, s, -1e30)                   # mask applied to f32 scores
        m = jnp.max(s, axis=-1, keepdims=True)
        p = jnp.exp(s - m)
        p = p * pl.reciprocal(jnp.sum(p, axis=-1, keepdims=True), approx=True)
        oh = jnp.dot(p.astype(BF16), vh.astype(BF16),
                     preferred_element_type=jnp.float32)  # (S, dim_head)
        # output projection split over the head K-slices (avoids lane concat)
        term = jnp.dot(oh.astype(BF16), wo[lo:lo + dim_head, :],
                       preferred_element_type=jnp.float32)
        proj = term if proj is None else proj + term

    o_ref[0] = (x + proj).astype(o_ref.dtype)             # residual


def attention_block(h, wqkv, wo, *, heads, dim_head, ln_eps=1e-5):
    b, S, dim = h.shape
    inner = heads * dim_head
    return pl.pallas_call(
        functools.partial(_attn_block_kernel, heads=heads, dim_head=dim_head, ln_eps=ln_eps),
        out_shape=jax.ShapeDtypeStruct((b, S, dim), jnp.float32),
        grid=(b,),
        in_specs=[
            pl.BlockSpec((1, S, dim), lambda i: (i, 0, 0)),
            pl.BlockSpec((dim, 3 * inner), lambda i: (0, 0)),
            pl.BlockSpec((inner, dim), lambda i: (0, 0)),
        ],
        out_specs=pl.BlockSpec((1, S, dim), lambda i: (i, 0, 0)),
        compiler_params=pltpu.CompilerParams(dimension_semantics=("parallel",)),
    )(h, wqkv, wo)


# --------------------------------------------------------- fused feed-forward sublayer (rows)
def _ff_block_kernel(h_ref, w1_ref, b1_ref, w2_ref, b2_ref, o_ref, *, ln_eps):
    x = h_ref[...].astype(jnp.float32)
    mu = jnp.mean(x, axis=-1, keepdims=True)
    var = jnp.mean((x - mu) ** 2, axis=-1, keepdims=True)
    xn = (x - mu) * jax.lax.rsqrt(var + ln_eps)
    hmid = jnp.dot(xn.astype(BF16), w1_ref[...],
                   preferred_element_type=jnp.float32) + b1_ref[...]
    # TODO(synk): PyTorch nn.GELU defaults to exact erf; tanh-approx GELU used here.
    hmid = jax.nn.gelu(hmid)
    out = jnp.dot(hmid.astype(BF16), w2_ref[...],
                  preferred_element_type=jnp.float32) + b2_ref[...]
    o_ref[...] = (x + out).astype(o_ref.dtype)            # residual


def ff_block(h2d, w1, b1, w2, b2, ln_eps=1e-5):
    M, dim = h2d.shape
    hid = w1.shape[1]
    tm = _pick_row_tile(M)
    Mp = _round_up(M, tm)
    hp = jnp.pad(h2d, ((0, Mp - M), (0, 0))) if Mp != M else h2d
    out = pl.pallas_call(
        functools.partial(_ff_block_kernel, ln_eps=ln_eps),
        out_shape=jax.ShapeDtypeStruct((Mp, dim), jnp.float32),
        grid=(Mp // tm,),
        in_specs=[
            pl.BlockSpec((tm, dim), lambda i: (i, 0)),
            pl.BlockSpec((dim, hid), lambda i: (0, 0)),
            pl.BlockSpec((1, hid), lambda i: (0, 0)),
            pl.BlockSpec((hid, dim), lambda i: (0, 0)),
            pl.BlockSpec((1, dim), lambda i: (0, 0)),
        ],
        out_specs=pl.BlockSpec((tm, dim), lambda i: (i, 0)),
        compiler_params=pltpu.CompilerParams(dimension_semantics=("parallel",)),
    )(hp, w1, b1, w2, b2)
    return out[:M] if Mp != M else out


# -------------------------------------------- fused ElucidatedDiffusion step + denoiser + loss
def _diffusion_kernel(cond_ref, tgt_ref, noise_ref, sigma_ref,
                      sinl_ref, wtime_ref, tb_ref,
                      gw_ref, w1_ref, b1_ref, w2_ref, b2_ref, ogw_ref,
                      loss_ref, *, depth, half, sigma_data, ln_eps,
                      dim_cond, dim_input, n_rows):
    i = pl.program_id(0)
    tm = tgt_ref.shape[0]
    DIP = tgt_ref.shape[1]
    DCP = cond_ref.shape[1]

    @pl.when(i == 0)
    def _init():
        loss_ref[...] = jnp.zeros_like(loss_ref)

    tgt = tgt_ref[...].astype(jnp.float32)                # (tm, DIP), padded lanes are 0
    noise = noise_ref[...].astype(jnp.float32)
    sigma = sigma_ref[...].astype(jnp.float32)            # (tm, 1)
    cond_raw = cond_ref[...].astype(jnp.float32)          # (tm, DCP), padded lanes are 0

    # masks for padded feature lanes / padded rows (all static extents)
    din_mask = (jax.lax.broadcasted_iota(jnp.int32, (1, DIP), 1) < dim_input).astype(jnp.float32)
    dc_mask = (jax.lax.broadcasted_iota(jnp.int32, (1, DCP), 1) < dim_cond).astype(jnp.float32)
    row_ids = i * tm + jax.lax.broadcasted_iota(jnp.int32, (tm, 1), 0)
    row_mask = (row_ids < n_rows).astype(jnp.float32)

    # final decoder norm (no affine) fused here; masked over the true dim_cond lanes
    c_mu = jnp.sum(cond_raw, axis=-1, keepdims=True) / dim_cond
    c_cent = (cond_raw - c_mu) * dc_mask
    c_var = jnp.sum(c_cent * c_cent, axis=-1, keepdims=True) / dim_cond
    cond = c_cent * jax.lax.rsqrt(c_var + ln_eps)

    # Elucidated preconditioning (sigma_data=0.5)
    noised = tgt + sigma * noise                          # padded Din lanes stay 0
    sd2 = sigma_data * sigma_data
    denom = sigma * sigma + sd2
    inv_sqrt = jax.lax.rsqrt(denom)
    c_in = inv_sqrt
    c_skip = sd2 / denom
    c_out = sigma * sigma_data * inv_sqrt
    times = jnp.log(jnp.maximum(sigma, 1e-20)) * 0.25     # c_noise

    # learned-sinusoidal time embedding fused into one GEMM:
    #   feats = [times | sin(times*w*2pi) | cos(times*w*2pi)]  built via lane select
    nK = 1 + 2 * half
    lane = jax.lax.broadcasted_iota(jnp.int32, (1, nK), 1)
    ang = times * sinl_ref[...] * (2.0 * math.pi)         # (tm, nK)
    trig = jnp.where(lane <= half, jnp.sin(ang), jnp.cos(ang))
    feats = jnp.where(lane == 0, times, trig)             # (tm, nK)
    time_emb = jnp.dot(feats, wtime_ref[...],
                       preferred_element_type=jnp.float32) + tb_ref[...]

    c = time_emb + cond
    c = c * jax.nn.sigmoid(c)                             # SiLU
    c_bf = c.astype(BF16)

    den = c_in * noised
    for l in range(depth):
        residual = den
        # masked LayerNorm over the true dim_input lanes (padded lanes of den are 0)
        mu = jnp.sum(den, axis=-1, keepdims=True) / dim_input
        cent = (den - mu) * din_mask
        var = jnp.sum(cent * cent, axis=-1, keepdims=True) / dim_input
        normed = cent * jax.lax.rsqrt(var + ln_eps)
        gamma = jnp.dot(c_bf, gw_ref[l], preferred_element_type=jnp.float32)
        adal = normed * (gamma + 1.0)
        hmid = jnp.dot(adal.astype(BF16), w1_ref[l],
                       preferred_element_type=jnp.float32) + b1_ref[l]
        hmid = hmid * jax.nn.sigmoid(hmid)                # SiLU (dropout p=0)
        blk = jnp.dot(hmid.astype(BF16), w2_ref[l],
                      preferred_element_type=jnp.float32) + b2_ref[l]
        og = jnp.dot(c_bf, ogw_ref[l], preferred_element_type=jnp.float32)
        den = blk * (og + 1.0) + residual

    out = c_skip * noised + c_out * den
    # clamp_during_sampling=True is the module default and preconditioned_network_forward
    # applies it with clamp=default(None, True) inside the training forward as well.
    out = jnp.clip(out, -1.0, 1.0)

    err = out - tgt                                       # padded lanes contribute 0
    lw = denom / ((sigma * sigma_data) ** 2)              # loss_weight(sigma)
    wse = err * err * lw * row_mask                       # (tm, DIP)
    loss_ref[...] += jnp.sum(wse, axis=0, keepdims=True)  # lane-dense (1, DIP) accumulator


def diffusion_loss(target, cond, sigma, noise, dp, *, depth, dim_input, dim_cond,
                   sigma_data=0.5, ln_eps=1e-5):
    M = target.shape[0]
    DIP = dp["w1"].shape[1]
    WP = dp["w1"].shape[2]
    DCP = dp["gamma_w"].shape[1]
    half = (dp["sin_lanes"].shape[1] - 1) // 2
    nK = 1 + 2 * half

    # one-time zero-padding of activations up to the 128-lane widths used by the weights
    target_p = jnp.pad(target, ((0, 0), (0, DIP - dim_input))) if DIP != dim_input else target
    noise_p = jnp.pad(noise, ((0, 0), (0, DIP - dim_input))) if DIP != dim_input else noise
    cond_p = jnp.pad(cond, ((0, 0), (0, DCP - dim_cond))) if DCP != dim_cond else cond

    tm = _pick_row_tile(M)
    Mp = _round_up(M, tm)
    if Mp != M:
        target_p = jnp.pad(target_p, ((0, Mp - M), (0, 0)))
        noise_p = jnp.pad(noise_p, ((0, Mp - M), (0, 0)))
        cond_p = jnp.pad(cond_p, ((0, Mp - M), (0, 0)))
        sigma = jnp.pad(sigma, ((0, Mp - M), (0, 0)), constant_values=1.0)

    row = lambda i: (i, 0)
    whole2 = lambda i: (0, 0)
    whole3 = lambda i: (0, 0, 0)

    partial_sums = pl.pallas_call(
        functools.partial(_diffusion_kernel, depth=depth, half=half,
                          sigma_data=sigma_data, ln_eps=ln_eps,
                          dim_cond=dim_cond, dim_input=dim_input, n_rows=M),
        out_shape=jax.ShapeDtypeStruct((1, DIP), jnp.float32),
        grid=(Mp // tm,),
        in_specs=[
            pl.BlockSpec((tm, DCP), row),                 # cond (pre final-norm)
            pl.BlockSpec((tm, DIP), row),                 # target
            pl.BlockSpec((tm, DIP), row),                 # noise
            pl.BlockSpec((tm, 1), row),                   # sigma
            pl.BlockSpec((1, nK), whole2),                # sinusoidal weights (lane layout)
            pl.BlockSpec((nK, DCP), whole2),              # fused time Linear weight
            pl.BlockSpec((1, DCP), whole2),               # time Linear bias
            pl.BlockSpec((depth, DCP, DIP), whole3),      # AdaLN to_gamma (zero-init)
            pl.BlockSpec((depth, DIP, WP), whole3),       # block W1
            pl.BlockSpec((depth, 1, WP), whole3),         # block b1
            pl.BlockSpec((depth, WP, DIP), whole3),       # block W2
            pl.BlockSpec((depth, 1, DIP), whole3),        # block b2
            pl.BlockSpec((depth, DCP, DIP), whole3),      # block_out_gamma (zero-init)
        ],
        out_specs=pl.BlockSpec((1, DIP), lambda i: (0, 0)),
        compiler_params=pltpu.CompilerParams(dimension_semantics=("arbitrary",)),
    )(cond_p, target_p, noise_p, sigma,
      dp["sin_lanes"], dp["w_time"], dp["b_time"],
      dp["gamma_w"], dp["w1"], dp["b1"], dp["w2"], dp["b2"], dp["out_gamma_w"])

    # loss = mean over rows of ( mean over dim_input of err^2 ) * loss_weight
    return jnp.sum(partial_sums) / (M * dim_input)


# ------------------------------------------------------------------------------ parameters
def init_params(key, *, dim, dim_input, max_seq_len, tf_depth, heads, dim_head,
                mlp_depth, mlp_width):
    ks = iter(jax.random.split(key, 8 + 8 * tf_depth + 4 * mlp_depth))
    std = 0.02
    inner = heads * dim_head

    params = {
        "start_token": jnp.zeros((dim,), jnp.float32),            # nn.Parameter(zeros)
        "pos_emb": jax.random.normal(next(ks), (max_seq_len, dim)) * std,
        "proj_in_w": (jax.random.normal(next(ks), (dim_input, dim)) * std).astype(BF16),
        "proj_in_b": jnp.zeros((1, dim), jnp.float32),
    }

    layers = []
    for _ in range(tf_depth):
        wq = jax.random.normal(next(ks), (dim, inner)) * std
        wk = jax.random.normal(next(ks), (dim, inner)) * std
        wv = jax.random.normal(next(ks), (dim, inner)) * std
        layers.append({
            "wqkv": jnp.concatenate([wq, wk, wv], axis=1).astype(BF16),   # fused QKV
            "wo": (jax.random.normal(next(ks), (inner, dim)) * std).astype(BF16),
            "ff_w1": (jax.random.normal(next(ks), (dim, 4 * dim)) * std).astype(BF16),
            "ff_b1": jnp.zeros((1, 4 * dim), jnp.float32),
            "ff_w2": (jax.random.normal(next(ks), (4 * dim, dim)) * std).astype(BF16),
            "ff_b2": jnp.zeros((1, dim), jnp.float32),
        })
    params["tf_layers"] = layers

    # denoiser MLP (dim_cond = dim); feature dims zero-padded to the 128-lane vreg width
    half = dim // 2
    dip = _round_up(dim_input, LANE)
    wp = _round_up(mlp_width, LANE)
    dcp = _round_up(dim, LANE)

    sin_w = jax.random.normal(next(ks), (half,))                   # torch.randn(half_dim)
    sin_lanes = jnp.concatenate([jnp.zeros((1,), jnp.float32), sin_w, sin_w]).reshape(1, 1 + 2 * half)
    w_time = jax.random.normal(next(ks), (1 + 2 * half, dim)) * std    # Linear(dim+1, dim) of [x|sin|cos]
    w_time = jnp.pad(w_time, ((0, 0), (0, dcp - dim)))

    w1 = jax.random.normal(next(ks), (mlp_depth, dim_input, mlp_width)) * std
    w2 = jax.random.normal(next(ks), (mlp_depth, mlp_width, dim_input)) * std
    params["denoiser"] = {
        "sin_lanes": sin_lanes,                                    # (1, 1+2*half)
        "w_time": w_time,                                          # (1+2*half, dcp) f32
        "b_time": jnp.zeros((1, dcp), jnp.float32),
        "gamma_w": jnp.zeros((mlp_depth, dcp, dip), BF16),         # AdaLN to_gamma (zero-init)
        "w1": jnp.pad(w1, ((0, 0), (0, dip - dim_input), (0, wp - mlp_width))).astype(BF16),
        "b1": jnp.zeros((mlp_depth, 1, wp), jnp.float32),
        "w2": jnp.pad(w2, ((0, 0), (0, wp - mlp_width), (0, dip - dim_input))).astype(BF16),
        "b2": jnp.zeros((mlp_depth, 1, dip), jnp.float32),
        "out_gamma_w": jnp.zeros((mlp_depth, dcp, dip), BF16),     # zero-init
    }
    return params


# --------------------------------------------------------------------------------- forward
def autoregressive_diffusion_forward(params, seq, rng, *, dim, heads, dim_head, mlp_depth):
    b, seq_len, dim_input = seq.shape

    # proj_in on seq[:, :-1]; prepend start token; add positional embedding (cheap XLA glue)
    x = seq[:, :-1].reshape(b * (seq_len - 1), dim_input)
    proj = linear(x, params["proj_in_w"], params["proj_in_b"]).reshape(b, seq_len - 1, dim)
    start = jnp.broadcast_to(params["start_token"][None, None, :], (b, 1, dim))
    h = jnp.concatenate([start, proj], axis=1) + params["pos_emb"][None, :seq_len]

    # causal pre-LN transformer decoder (stand-in for x_transformers.Decoder)
    for layer in params["tf_layers"]:
        h = attention_block(h, layer["wqkv"], layer["wo"], heads=heads, dim_head=dim_head)
        flat = ff_block(h.reshape(b * seq_len, dim),
                        layer["ff_w1"], layer["ff_b1"], layer["ff_w2"], layer["ff_b2"])
        h = flat.reshape(b, seq_len, dim)

    cond = h.reshape(b * seq_len, dim)          # final decoder norm fused into diffusion kernel
    target = seq.reshape(b * seq_len, dim_input)

    # ElucidatedDiffusion training step (P_mean=-1.2, P_std=1.2, sigma_data=0.5)
    k1, k2 = jax.random.split(rng)
    sigmas = jnp.exp(-1.2 + 1.2 * jax.random.normal(k1, (b * seq_len, 1)))
    noise = jax.random.normal(k2, target.shape)

    return diffusion_loss(target, cond, sigmas, noise, params["denoiser"],
                          depth=mlp_depth, dim_input=dim_input, dim_cond=dim)


# ------------------------------------------------------------------------------------ main
if __name__ == "__main__":
    B = 2
    MAX_SEQ_LEN = 8
    DIM = 32          # transformer / cond dim
    DIM_INPUT = 8     # per-token data dim
    TF_DEPTH = 2
    HEADS = 2
    DIM_HEAD = 16
    MLP_DEPTH = 3
    MLP_WIDTH = DIM   # default(mlp_width, dim)

    key = jax.random.PRNGKey(0)
    kp, kx, kd = jax.random.split(key, 3)
    params = init_params(kp, dim=DIM, dim_input=DIM_INPUT, max_seq_len=MAX_SEQ_LEN,
                         tf_depth=TF_DEPTH, heads=HEADS, dim_head=DIM_HEAD,
                         mlp_depth=MLP_DEPTH, mlp_width=MLP_WIDTH)
    seq = jax.random.normal(kx, (B, MAX_SEQ_LEN, DIM_INPUT), jnp.float32)

    fwd = jax.jit(functools.partial(autoregressive_diffusion_forward,
                                    dim=DIM, heads=HEADS, dim_head=DIM_HEAD,
                                    mlp_depth=MLP_DEPTH))
    loss = fwd(params, seq, kd)
    loss = jax.block_until_ready(loss)
    assert loss.shape == () and bool(jnp.isfinite(loss))
    print("KERNEL_OK")
</pallas_src>

<mosaic_0001>
module attributes {stable_mosaic.version = 11 : i64} {
  func.func @_linear_kernel(%arg0: i32, %arg1: memref<14x8xf32, #tpu.memory_space<vmem>>, %arg2: memref<8x32xbf16, #tpu.memory_space<vmem>>, %arg3: memref<1x32xf32, #tpu.memory_space<vmem>>, %arg4: memref<14x32xf32, #tpu.memory_space<vmem>>) attributes {dimension_semantics = [#tpu.dimension_semantics<parallel>], iteration_bounds = array<i64: 1>, scalar_prefetch = 0 : i64, scratch_operands = 0 : i64, tpu.core_type = #tpu.core_type<tc>, window_params = [{transform_indices = @transform_0, window_bounds = array<i64: 14, 8>}, {pipeline_mode = #tpu.pipeline_mode<synchronous>, transform_indices = @transform_1, window_bounds = array<i64: 8, 32>}, {pipeline_mode = #tpu.pipeline_mode<synchronous>, transform_indices = @transform_2, window_bounds = array<i64: 1, 32>}, {transform_indices = @transform_3, window_bounds = array<i64: 14, 32>}]} {
    %c0 = arith.constant 0 : index
    %c0_0 = arith.constant 0 : index
    %0 = vector.load %arg1[%c0, %c0_0] : memref<14x8xf32, #tpu.memory_space<vmem>>, vector<14x8xf32>
    %1 = arith.truncf %0 : vector<14x8xf32> to vector<14x8xbf16>
    %c0_1 = arith.constant 0 : index
    %c0_2 = arith.constant 0 : index
    %2 = vector.load %arg2[%c0_1, %c0_2] : memref<8x32xbf16, #tpu.memory_space<vmem>>, vector<8x32xbf16>
    %cst = arith.constant dense<0.000000e+00> : vector<14x32xf32>
    %3 = tpu.matmul %1, %2, %cst {dimension_numbers = #tpu.dot_dimension_numbers<[1], [0], [0], [1], [0, 0, 1, 1], [], []>} : vector<14x8xbf16>, vector<8x32xbf16>, vector<14x32xf32> -> vector<14x32xf32>
    %c0_3 = arith.constant 0 : index
    %c0_4 = arith.constant 0 : index
    %4 = vector.load %arg3[%c0_3, %c0_4] : memref<1x32xf32, #tpu.memory_space<vmem>>, vector<1x32xf32>
    %5 = vector.broadcast %4 : vector<1x32xf32> to vector<14x32xf32>
    %6 = arith.addf %3, %5 : vector<14x32xf32>
    %c0_5 = arith.constant 0 : index
    %c0_6 = arith.constant 0 : index
    %7 = vector.load %arg4[%c0_5, %c0_6] : memref<14x32xf32, #tpu.memory_space<vmem>>, vector<14x32xf32>
    tpu.vector_store %arg4[%c0_5, %c0_6], %6 {strides = array<i32>} : memref<14x32xf32, #tpu.memory_space<vmem>>, vector<14x32xf32>,
    return
  }
  func.func @transform_0(%arg0: i32) -> (i32, i32) {
    %c0_i32 = arith.constant 0 : i32
    %c0_i32_0 = arith.constant 0 : i32
    return %arg0, %c0_i32 : i32, i32
  }
  func.func @transform_1(%arg0: i32) -> (i32, i32) {
    %c0_i32 = arith.constant 0 : i32
    %c0_i32_0 = arith.constant 0 : i32
    %c0_i32_1 = arith.constant 0 : i32
    return %c0_i32, %c0_i32_0 : i32, i32
  }
  func.func @transform_2(%arg0: i32) -> (i32, i32) {
    %c0_i32 = arith.constant 0 : i32
    %c0_i32_0 = arith.constant 0 : i32
    %c0_i32_1 = arith.constant 0 : i32
    return %c0_i32, %c0_i32_0 : i32, i32
  }
  func.func @transform_3(%arg0: i32) -> (i32, i32) {
    %c0_i32 = arith.constant 0 : i32
    %c0_i32_0 = arith.constant 0 : i32
    return %arg0, %c0_i32 : i32, i32
  }
}

module attributes {stable_mosaic.version = 11 : i64} {
  func.func @_attn_block_kernel(%arg0: i32, %arg1: memref<1x8x32xf32, #tpu.memory_space<vmem>>, %arg2: memref<32x96xbf16, #tpu.memory_space<vmem>>, %arg3: memref<32x32xbf16, #tpu.memory_space<vmem>>, %arg4: memref<1x8x32xf32, #tpu.memory_space<vmem>>) attributes {dimension_semantics = [#tpu.dimension_semantics<parallel>], iteration_bounds = array<i64: 2>, scalar_prefetch = 0 : i64, scratch_operands = 0 : i64, tpu.core_type = #tpu.core_type<tc>, window_params = [{transform_indices = @transform_0, window_bounds = array<i64: 1, 8, 32>}, {pipeline_mode = #tpu.pipeline_mode<synchronous>, transform_indices = @transform_1, window_bounds = array<i64: 32, 96>}, {pipeline_mode = #tpu.pipeline_mode<synchronous>, transform_indices = @transform_2, window_bounds = array<i64: 32, 32>}, {transform_indices = @transform_3, window_bounds = array<i64: 1, 8, 32>}]} {
    %c0 = arith.constant 0 : index
    %c0_0 = arith.constant 0 : index
    %c0_1 = arith.constant 0 : index
    %0 = vector.load %arg1[%c0, %c0_0, %c0_1] : memref<1x8x32xf32, #tpu.memory_space<vmem>>, vector<1x8x32xf32>
    %1 = vector.shape_cast %0 : vector<1x8x32xf32> to vector<8x32xf32>
    %cst = arith.constant dense<0.000000e+00> : vector<8xf32>
    %2 = vector.multi_reduction <add>, %1, %cst [1] : vector<8x32xf32> to vector<8xf32>
    %3 = vector.shape_cast %2 : vector<8xf32> to vector<8x1xf32>
    %cst_2 = arith.constant 3.200000e+01 : f32
    %4 = vector.broadcast %cst_2 : f32 to vector<8x1xf32>
    %5 = arith.divf %3, %4 : vector<8x1xf32>
    %6 = vector.broadcast %5 : vector<8x1xf32> to vector<8x32xf32>
    %7 = arith.subf %1, %6 : vector<8x32xf32>
    %8 = arith.mulf %7, %7 : vector<8x32xf32>
    %cst_3 = arith.constant dense<0.000000e+00> : vector<8xf32>
    %9 = vector.multi_reduction <add>, %8, %cst_3 [1] : vector<8x32xf32> to vector<8xf32>
    %10 = vector.shape_cast %9 : vector<8xf32> to vector<8x1xf32>
    %cst_4 = arith.constant 3.200000e+01 : f32
    %11 = vector.broadcast %cst_4 : f32 to vector<8x1xf32>
    %12 = arith.divf %10, %11 : vector<8x1xf32>
    %13 = vector.broadcast %5 : vector<8x1xf32> to vector<8x32xf32>
    %14 = arith.subf %1, %13 : vector<8x32xf32>
    %cst_5 = arith.constant 9.99999974E-6 : f32
    %15 = vector.broadcast %cst_5 : f32 to vector<8x1xf32>
    %16 = arith.addf %12, %15 : vector<8x1xf32>
    %17 = math.rsqrt %16 : vector<8x1xf32>
    %18 = vector.broadcast %17 : vector<8x1xf32> to vector<8x32xf32>
    %19 = arith.mulf %14, %18 : vector<8x32xf32>
    %20 = arith.truncf %19 : vector<8x32xf32> to vector<8x32xbf16>
    %c0_6 = arith.constant 0 : index
    %c0_7 = arith.constant 0 : index
    %21 = vector.load %arg2[%c0_6, %c0_7] : memref<32x96xbf16, #tpu.memory_space<vmem>>, vector<32x96xbf16>
    %cst_8 = arith.constant dense<0.000000e+00> : vector<8x96xf32>
    %22 = tpu.matmul %20, %21, %cst_8 {dimension_numbers = #tpu.dot_dimension_numbers<[1], [0], [0], [1], [0, 0, 1, 1], [], []>} : vector<8x32xbf16>, vector<32x96xbf16>, vector<8x96xf32> -> vector<8x96xf32>
    %c0_9 = arith.constant 0 : index
    %c0_10 = arith.constant 0 : index
    %23 = vector.load %arg3[%c0_9, %c0_10] : memref<32x32xbf16, #tpu.memory_space<vmem>>, vector<32x32xbf16>
    %24 = tpu.iota {dimensions = array<i32: 0>} : vector<8x8xi32>
    %25 = tpu.iota {dimensions = array<i32: 1>} : vector<8x8xi32>
    %26 = arith.cmpi sle, %25, %24 : vector<8x8xi32>
    %27 = vector.extract_strided_slice %22 {offsets = [0, 0], sizes = [8, 16], strides = [1, 1]} : vector<8x96xf32> to vector<8x16xf32>
    %28 = vector.extract_strided_slice %22 {offsets = [0, 32], sizes = [8, 16], strides = [1, 1]} : vector<8x96xf32> to vector<8x16xf32>
    %29 = vector.extract_strided_slice %22 {offsets = [0, 64], sizes = [8, 16], strides = [1, 1]} : vector<8x96xf32> to vector<8x16xf32>
    %30 = arith.truncf %27 : vector<8x16xf32> to vector<8x16xbf16>
    %31 = arith.truncf %28 : vector<8x16xf32> to vector<8x16xbf16>
    %cst_11 = arith.constant dense<0.000000e+00> : vector<8x8xf32>
    %32 = tpu.matmul %30, %31, %cst_11 {dimension_numbers = #tpu.dot_dimension_numbers<[1], [1], [0], [0], [0, 0, 1, 0], [], []>} : vector<8x16xbf16>, vector<8x16xbf16>, vector<8x8xf32> -> vector<8x8xf32>
    %cst_12 = arith.constant 2.500000e-01 : f32
    %33 = vector.broadcast %cst_12 : f32 to vector<8x8xf32>
    %34 = arith.mulf %32, %33 : vector<8x8xf32>
    %cst_13 = arith.constant -1.000000e+30 : f32
    %35 = vector.broadcast %cst_13 : f32 to vector<8x8xf32>
    %36 = arith.select %26, %34, %35 : vector<8x8xi1>, vector<8x8xf32>
    %cst_14 = arith.constant dense<0xFF800000> : vector<8xf32>
    %37 = vector.multi_reduction <maximumf>, %36, %cst_14 [1] : vector<8x8xf32> to vector<8xf32>
    %38 = vector.shape_cast %37 : vector<8xf32> to vector<8x1xf32>
    %39 = vector.broadcast %38 : vector<8x1xf32> to vector<8x8xf32>
    %40 = arith.subf %36, %39 : vector<8x8xf32>
    %41 = math.exp %40 : vector<8x8xf32>
    %cst_15 = arith.constant dense<0.000000e+00> : vector<8xf32>
    %42 = vector.multi_reduction <add>, %41, %cst_15 [1] : vector<8x8xf32> to vector<8xf32>
    %43 = vector.shape_cast %42 : vector<8xf32> to vector<8x1xf32>
    %44 = tpu.reciprocal %43 {approx = true} : vector<8x1xf32> -> vector<8x1xf32>
    %45 = vector.broadcast %44 : vector<8x1xf32> to vector<8x8xf32>
    %46 = arith.mulf %41, %45 : vector<8x8xf32>
    %47 = arith.truncf %46 : vector<8x8xf32> to vector<8x8xbf16>
    %48 = arith.truncf %29 : vector<8x16xf32> to vector<8x16xbf16>
    %cst_16 = arith.constant dense<0.000000e+00> : vector<8x16xf32>
    %49 = tpu.matmul %47, %48, %cst_16 {dimension_numbers = #tpu.dot_dimension_numbers<[1], [0], [0], [1], [0, 0, 1, 1], [], []>} : vector<8x8xbf16>, vector<8x16xbf16>, vector<8x16xf32> -> vector<8x16xf32>
    %50 = arith.truncf %49 : vector<8x16xf32> to vector<8x16xbf16>
    %51 = vector.extract_strided_slice %23 {offsets = [0, 0], sizes = [16, 32], strides = [1, 1]} : vector<32x32xbf16> to vector<16x32xbf16>
    %cst_17 = arith.constant dense<0.000000e+00> : vector<8x32xf32>
    %52 = tpu.matmul %50, %51, %cst_17 {dimension_numbers = #tpu.dot_dimension_numbers<[1], [0], [0], [1], [0, 0, 1, 1], [], []>} : vector<8x16xbf16>, vector<16x32xbf16>, vector<8x32xf32> -> vector<8x32xf32>
    %53 = vector.extract_strided_slice %22 {offsets = [0, 16], sizes = [8, 16], strides = [1, 1]} : vector<8x96xf32> to vector<8x16xf32>
    %54 = vector.extract_strided_slice %22 {offsets = [0, 48], sizes = [8, 16], strides = [1, 1]} : vector<8x96xf32> to vector<8x16xf32>
    %55 = vector.extract_strided_slice %22 {offsets = [0, 80], sizes = [8, 16], strides = [1, 1]} : vector<8x96xf32> to vector<8x16xf32>
    %56 = arith.truncf %53 : vector<8x16xf32> to vector<8x16xbf16>
    %57 = arith.truncf %54 : vector<8x16xf32> to vector<8x16xbf16>
    %cst_18 = arith.constant dense<0.000000e+00> : vector<8x8xf32>
    %58 = tpu.matmul %56, %57, %cst_18 {dimension_numbers = #tpu.dot_dimension_numbers<[1], [1], [0], [0], [0, 0, 1, 0], [], []>} : vector<8x16xbf16>, vector<8x16xbf16>, vector<8x8xf32> -> vector<8x8xf32>
    %cst_19 = arith.constant 2.500000e-01 : f32
    %59 = vector.broadcast %cst_19 : f32 to vector<8x8xf32>
    %60 = arith.mulf %58, %59 : vector<8x8xf32>
    %cst_20 = arith.constant -1.000000e+30 : f32
    %61 = vector.broadcast %cst_20 : f32 to vector<8x8xf32>
    %62 = arith.select %26, %60, %61 : vector<8x8xi1>, vector<8x8xf32>
    %cst_21 = arith.constant dense<0xFF800000> : vector<8xf32>
    %63 = vector.multi_reduction <maximumf>, %62, %cst_21 [1] : vector<8x8xf32> to vector<8xf32>
    %64 = vector.shape_cast %63 : vector<8xf32> to vector<8x1xf32>
    %65 = vector.broadcast %64 : vector<8x1xf32> to vector<8x8xf32>
    %66 = arith.subf %62, %65 : vector<8x8xf32>
    %67 = math.exp %66 : vector<8x8xf32>
    %cst_22 = arith.constant dense<0.000000e+00> : vector<8xf32>
    %68 = vector.multi_reduction <add>, %67, %cst_22 [1] : vector<8x8xf32> to vector<8xf32>
    %69 = vector.shape_cast %68 : vector<8xf32> to vector<8x1xf32>
    %70 = tpu.reciprocal %69 {approx = true} : vector<8x1xf32> -> vector<8x1xf32>
    %71 = vector.broadcast %70 : vector<8x1xf32> to vector<8x8xf32>
    %72 = arith.mulf %67, %71 : vector<8x8xf32>
    %73 = arith.truncf %72 : vector<8x8xf32> to vector<8x8xbf16>
    %74 = arith.truncf %55 : vector<8x16xf32> to vector<8x16xbf16>
    %cst_23 = arith.constant dense<0.000000e+00> : vector<8x16xf32>
    %75 = tpu.matmul %73, %74, %cst_23 {dimension_numbers = #tpu.dot_dimension_numbers<[1], [0], [0], [1], [0, 0, 1, 1], [], []>} : vector<8x8xbf16>, vector<8x16xbf16>, vector<8x16xf32> -> vector<8x16xf32>
    %76 = arith.truncf %75 : vector<8x16xf32> to vector<8x16xbf16>
    %77 = vector.extract_strided_slice %23 {offsets = [16, 0], sizes = [16, 32], strides = [1, 1]} : vector<32x32xbf16> to vector<16x32xbf16>
    %cst_24 = arith.constant dense<0.000000e+00> : vector<8x32xf32>
    %78 = tpu.matmul %76, %77, %cst_24 {dimension_numbers = #tpu.dot_dimension_numbers<[1], [0], [0], [1], [0, 0, 1, 1], [], []>} : vector<8x16xbf16>, vector<16x32xbf16>, vector<8x32xf32> -> vector<8x32xf32>
    %79 = arith.addf %52, %78 : vector<8x32xf32>
    %80 = arith.addf %1, %79 : vector<8x32xf32>
    %c0_25 = arith.constant 0 : index
    %c0_26 = arith.constant 0 : index
    %c0_27 = arith.constant 0 : index
    %81 = vector.load %arg4[%c0_25, %c0_26, %c0_27] : memref<1x8x32xf32, #tpu.memory_space<vmem>>, vector<1x8x32xf32>
    %82 = vector.shape_cast %81 : vector<1x8x32xf32> to vector<8x32xf32>
    %83 = vector.shape_cast %80 : vector<8x32xf32> to vector<1x8x32xf32>
    tpu.vector_store %arg4[%c0_25, %c0_26, %c0_27], %83 {strides = array<i32>} : memref<1x8x32xf32, #tpu.memory_space<vmem>>, vector<1x8x32xf32>,
    return
  }
  func.func @transform_0(%arg0: i32) -> (i32, i32, i32) {
    %c0_i32 = arith.constant 0 : i32
    %c0_i32_0 = arith.constant 0 : i32
    %c0_i32_1 = arith.constant 0 : i32
    return %arg0, %c0_i32, %c0_i32_0 : i32, i32, i32
  }
  func.func @transform_1(%arg0: i32) -> (i32, i32) {
    %c0_i32 = arith.constant 0 : i32
    %c0_i32_0 = arith.constant 0 : i32
    %c0_i32_1 = arith.constant 0 : i32
    return %c0_i32, %c0_i32_0 : i32, i32
  }
  func.func @transform_2(%arg0: i32) -> (i32, i32) {
    %c0_i32 = arith.constant 0 : i32
    %c0_i32_0 = arith.constant 0 : i32
    %c0_i32_1 = arith.constant 0 : i32
    return %c0_i32, %c0_i32_0 : i32, i32
  }
  func.func @transform_3(%arg0: i32) -> (i32, i32, i32) {
    %c0_i32 = arith.constant 0 : i32
    %c0_i32_0 = arith.constant 0 : i32
    %c0_i32_1 = arith.constant 0 : i32
    return %arg0, %c0_i32, %c0_i32_0 : i32, i32, i32
  }
}

module attributes {stable_mosaic.version = 11 : i64} {
  func.func @_ff_block_kernel(%arg0: i32, %arg1: memref<16x32xf32, #tpu.memory_space<vmem>>, %arg2: memref<32x128xbf16, #tpu.memory_space<vmem>>, %arg3: memref<1x128xf32, #tpu.memory_space<vmem>>, %arg4: memref<128x32xbf16, #tpu.memory_space<vmem>>, %arg5: memref<1x32xf32, #tpu.memory_space<vmem>>, %arg6: memref<16x32xf32, #tpu.memory_space<vmem>>) attributes {dimension_semantics = [#tpu.dimension_semantics<parallel>], iteration_bounds = array<i64: 1>, scalar_prefetch = 0 : i64, scratch_operands = 0 : i64, tpu.core_type = #tpu.core_type<tc>, window_params = [{transform_indices = @transform_0, window_bounds = array<i64: 16, 32>}, {pipeline_mode = #tpu.pipeline_mode<synchronous>, transform_indices = @transform_1, window_bounds = array<i64: 32, 128>}, {pipeline_mode = #tpu.pipeline_mode<synchronous>, transform_indices = @transform_2, window_bounds = array<i64: 1, 128>}, {pipeline_mode = #tpu.pipeline_mode<synchronous>, transform_indices = @transform_3, window_bounds = array<i64: 128, 32>}, {pipeline_mode = #tpu.pipeline_mode<synchronous>, transform_indices = @transform_4, window_bounds = array<i64: 1, 32>}, {transform_indices = @transform_5, window_bounds = array<i64: 16, 32>}]} {
    %c0 = arith.constant 0 : index
    %c0_0 = arith.constant 0 : index
    %0 = vector.load %arg1[%c0, %c0_0] : memref<16x32xf32, #tpu.memory_space<vmem>>, vector<16x32xf32>
    %cst = arith.constant dense<0.000000e+00> : vector<16xf32>
    %1 = vector.multi_reduction <add>, %0, %cst [1] : vector<16x32xf32> to vector<16xf32>
    %2 = vector.shape_cast %1 : vector<16xf32> to vector<16x1xf32>
    %cst_1 = arith.constant 3.200000e+01 : f32
    %3 = vector.broadcast %cst_1 : f32 to vector<16x1xf32>
    %4 = arith.divf %2, %3 : vector<16x1xf32>
    %5 = vector.broadcast %4 : vector<16x1xf32> to vector<16x32xf32>
    %6 = arith.subf %0, %5 : vector<16x32xf32>
    %7 = arith.mulf %6, %6 : vector<16x32xf32>
    %cst_2 = arith.constant dense<0.000000e+00> : vector<16xf32>
    %8 = vector.multi_reduction <add>, %7, %cst_2 [1] : vector<16x32xf32> to vector<16xf32>
    %9 = vector.shape_cast %8 : vector<16xf32> to vector<16x1xf32>
    %cst_3 = arith.constant 3.200000e+01 : f32
    %10 = vector.broadcast %cst_3 : f32 to vector<16x1xf32>
    %11 = arith.divf %9, %10 : vector<16x1xf32>
    %12 = vector.broadcast %4 : vector<16x1xf32> to vector<16x32xf32>
    %13 = arith.subf %0, %12 : vector<16x32xf32>
    %cst_4 = arith.constant 9.99999974E-6 : f32
    %14 = vector.broadcast %cst_4 : f32 to vector<16x1xf32>
    %15 = arith.addf %11, %14 : vector<16x1xf32>
    %16 = math.rsqrt %15 : vector<16x1xf32>
    %17 = vector.broadcast %16 : vector<16x1xf32> to vector<16x32xf32>
    %18 = arith.mulf %13, %17 : vector<16x32xf32>
    %19 = arith.truncf %18 : vector<16x32xf32> to vector<16x32xbf16>
    %c0_5 = arith.constant 0 : index
    %c0_6 = arith.constant 0 : index
    %20 = vector.load %arg2[%c0_5, %c0_6] : memref<32x128xbf16, #tpu.memory_space<vmem>>, vector<32x128xbf16>
    %cst_7 = arith.constant dense<0.000000e+00> : vector<16x128xf32>
    %21 = tpu.matmul %19, %20, %cst_7 {dimension_numbers = #tpu.dot_dimension_numbers<[1], [0], [0], [1], [0, 0, 1, 1], [], []>} : vector<16x32xbf16>, vector<32x128xbf16>, vector<16x128xf32> -> vector<16x128xf32>
    %c0_8 = arith.constant 0 : index
    %c0_9 = arith.constant 0 : index
    %22 = vector.load %arg3[%c0_8, %c0_9] : memref<1x128xf32, #tpu.memory_space<vmem>>, vector<1x128xf32>
    %23 = vector.broadcast %22 : vector<1x128xf32> to vector<16x128xf32>
    %24 = arith.addf %21, %23 : vector<16x128xf32>
    %25 = arith.mulf %24, %24 : vector<16x128xf32>
    %26 = arith.mulf %24, %25 : vector<16x128xf32>
    %cst_10 = arith.constant 4.471500e-02 : f32
    %27 = vector.broadcast %cst_10 : f32 to vector<16x128xf32>
    %28 = arith.mulf %27, %26 : vector<16x128xf32>
    %29 = arith.addf %24, %28 : vector<16x128xf32>
    %cst_11 = arith.constant 0.797884583 : f32
    %30 = vector.broadcast %cst_11 : f32 to vector<16x128xf32>
    %31 = arith.mulf %30, %29 : vector<16x128xf32>
    %32 = math.tanh %31 : vector<16x128xf32>
    %cst_12 = arith.constant 1.000000e+00 : f32
    %33 = vector.broadcast %cst_12 : f32 to vector<16x128xf32>
    %34 = arith.addf %33, %32 : vector<16x128xf32>
    %cst_13 = arith.constant 5.000000e-01 : f32
    %35 = vector.broadcast %cst_13 : f32 to vector<16x128xf32>
    %36 = arith.mulf %35, %34 : vector<16x128xf32>
    %37 = arith.mulf %24, %36 : vector<16x128xf32>
    %38 = arith.truncf %37 : vector<16x128xf32> to vector<16x128xbf16>
    %c0_14 = arith.constant 0 : index
    %c0_15 = arith.constant 0 : index
    %39 = vector.load %arg4[%c0_14, %c0_15] : memref<128x32xbf16, #tpu.memory_space<vmem>>, vector<128x32xbf16>
    %cst_16 = arith.constant dense<0.000000e+00> : vector<16x32xf32>
    %40 = tpu.matmul %38, %39, %cst_16 {dimension_numbers = #tpu.dot_dimension_numbers<[1], [0], [0], [1], [0, 0, 1, 1], [], []>} : vector<16x128xbf16>, vector<128x32xbf16>, vector<16x32xf32> -> vector<16x32xf32>
    %c0_17 = arith.constant 0 : index
    %c0_18 = arith.constant 0 : index
    %41 = vector.load %arg5[%c0_17, %c0_18] : memref<1x32xf32, #tpu.memory_space<vmem>>, vector<1x32xf32>
    %42 = vector.broadcast %41 : vector<1x32xf32> to vector<16x32xf32>
    %43 = arith.addf %40, %42 : vector<16x32xf32>
    %44 = arith.addf %0, %43 : vector<16x32xf32>
    %c0_19 = arith.constant 0 : index
    %c0_20 = arith.constant 0 : index
    %45 = vector.load %arg6[%c0_19, %c0_20] : memref<16x32xf32, #tpu.memory_space<vmem>>, vector<16x32xf32>
    tpu.vector_store %arg6[%c0_19, %c0_20], %44 {strides = array<i32>} : memref<16x32xf32, #tpu.memory_space<vmem>>, vector<16x32xf32>,
    return
  }
  func.func @transform_0(%arg0: i32) -> (i32, i32) {
    %c0_i32 = arith.constant 0 : i32
    %c0_i32_0 = arith.constant 0 : i32
    return %arg0, %c0_i32 : i32, i32
  }
  func.func @transform_1(%arg0: i32) -> (i32, i32) {
    %c0_i32 = arith.constant 0 : i32
    %c0_i32_0 = arith.constant 0 : i32
    %c0_i32_1 = arith.constant 0 : i32
    return %c0_i32, %c0_i32_0 : i32, i32
  }
  func.func @transform_2(%arg0: i32) -> (i32, i32) {
    %c0_i32 = arith.constant 0 : i32
    %c0_i32_0 = arith.constant 0 : i32
    %c0_i32_1 = arith.constant 0 : i32
    return %c0_i32, %c0_i32_0 : i32, i32
  }
  func.func @transform_3(%arg0: i32) -> (i32, i32) {
    %c0_i32 = arith.constant 0 : i32
    %c0_i32_0 = arith.constant 0 : i32
    %c0_i32_1 = arith.constant 0 : i32
    return %c0_i32, %c0_i32_0 : i32, i32
  }
  func.func @transform_4(%arg0: i32) -> (i32, i32) {
    %c0_i32 = arith.constant 0 : i32
    %c0_i32_0 = arith.constant 0 : i32
    %c0_i32_1 = arith.constant 0 : i32
    return %c0_i32, %c0_i32_0 : i32, i32
  }
  func.func @transform_5(%arg0: i32) -> (i32, i32) {
    %c0_i32 = arith.constant 0 : i32
    %c0_i32_0 = arith.constant 0 : i32
    return %arg0, %c0_i32 : i32, i32
  }
}

module attributes {stable_mosaic.version = 11 : i64} {
  func.func @_diffusion_kernel(%arg0: i32, %arg1: memref<16x128xf32, #tpu.memory_space<vmem>>, %arg2: memref<16x128xf32, #tpu.memory_space<vmem>>, %arg3: memref<16x128xf32, #tpu.memory_space<vmem>>, %arg4: memref<16x1xf32, #tpu.memory_space<vmem>>, %arg5: memref<1x33xf32, #tpu.memory_space<vmem>>, %arg6: memref<33x128xf32, #tpu.memory_space<vmem>>, %arg7: memref<1x128xf32, #tpu.memory_space<vmem>>, %arg8: memref<3x128x128xbf16, #tpu.memory_space<vmem>>, %arg9: memref<3x128x128xbf16, #tpu.memory_space<vmem>>, %arg10: memref<3x1x128xf32, #tpu.memory_space<vmem>>, %arg11: memref<3x128x128xbf16, #tpu.memory_space<vmem>>, %arg12: memref<3x1x128xf32, #tpu.memory_space<vmem>>, %arg13: memref<3x128x128xbf16, #tpu.memory_space<vmem>>, %arg14: memref<1x128xf32, #tpu.memory_space<vmem>>) attributes {dimension_semantics = [#tpu.dimension_semantics<arbitrary>], iteration_bounds = array<i64: 1>, scalar_prefetch = 0 : i64, scratch_operands = 0 : i64, tpu.core_type = #tpu.core_type<tc>, window_params = [{transform_indices = @transform_0, window_bounds = array<i64: 16, 128>}, {transform_indices = @transform_1, window_bounds = array<i64: 16, 128>}, {transform_indices = @transform_2, window_bounds = array<i64: 16, 128>}, {transform_indices = @transform_3, window_bounds = array<i64: 16, 1>}, {pipeline_mode = #tpu.pipeline_mode<synchronous>, transform_indices = @transform_4, window_bounds = array<i64: 1, 33>}, {pipeline_mode = #tpu.pipeline_mode<synchronous>, transform_indices = @transform_5, window_bounds = array<i64: 33, 128>}, {pipeline_mode = #tpu.pipeline_mode<synchronous>, transform_indices = @transform_6, window_bounds = array<i64: 1, 128>}, {pipeline_mode = #tpu.pipeline_mode<synchronous>, transform_indices = @transform_7, window_bounds = array<i64: 3, 128, 128>}, {pipeline_mode = #tpu.pipeline_mode<synchronous>, transform_indices = @transform_8, window_bounds = array<i64: 3, 128, 128>}, {pipeline_mode = #tpu.pipeline_mode<synchronous>, transform_indices = @transform_9, window_bounds = array<i64: 3, 1, 128>}, {pipeline_mode = #tpu.pipeline_mode<synchronous>, transform_indices = @transform_10, window_bounds = array<i64: 3, 128, 128>}, {pipeline_mode = #tpu.pipeline_mode<synchronous>, transform_indices = @transform_11, window_bounds = array<i64: 3, 1, 128>}, {pipeline_mode = #tpu.pipeline_mode<synchronous>, transform_indices = @transform_12, window_bounds = array<i64: 3, 128, 128>}, {pipeline_mode = #tpu.pipeline_mode<synchronous>, transform_indices = @transform_13, window_bounds = array<i64: 1, 128>}]} {
    %c0_i32 = arith.constant 0 : i32
    %0 = arith.cmpi eq, %arg0, %c0_i32 : i32
    %1 = arith.extui %0 : i1 to i32
    %c0_i32_0 = arith.constant 0 : i32
    %2 = arith.cmpi ne, %1, %c0_i32_0 : i32
    scf.if %2 {
      %cst_125 = arith.constant 0.000000e+00 : f32
      %279 = vector.broadcast %cst_125 : f32 to vector<1x128xf32>
      %c0_126 = arith.constant 0 : index
      %c0_127 = arith.constant 0 : index
      %280 = vector.load %arg14[%c0_126, %c0_127] : memref<1x128xf32, #tpu.memory_space<vmem>>, vector<1x128xf32>
      tpu.vector_store %arg14[%c0_126, %c0_127], %279 {strides = array<i32>} : memref<1x128xf32, #tpu.memory_space<vmem>>, vector<1x128xf32>,
    } else {
    }
    %c0 = arith.constant 0 : index
    %c0_1 = arith.constant 0 : index
    %3 = vector.load %arg2[%c0, %c0_1] : memref<16x128xf32, #tpu.memory_space<vmem>>, vector<16x128xf32>
    %c0_2 = arith.constant 0 : index
    %c0_3 = arith.constant 0 : index
    %4 = vector.load %arg3[%c0_2, %c0_3] : memref<16x128xf32, #tpu.memory_space<vmem>>, vector<16x128xf32>
    %c0_4 = arith.constant 0 : index
    %c0_5 = arith.constant 0 : index
    %5 = vector.load %arg4[%c0_4, %c0_5] : memref<16x1xf32, #tpu.memory_space<vmem>>, vector<16x1xf32>
    %c0_6 = arith.constant 0 : index
    %c0_7 = arith.constant 0 : index
    %6 = vector.load %arg1[%c0_6, %c0_7] : memref<16x128xf32, #tpu.memory_space<vmem>>, vector<16x128xf32>
    %7 = tpu.iota {dimensions = array<i32: 1>} : vector<1x128xi32>
    %c8_i32 = arith.constant 8 : i32
    %8 = vector.broadcast %c8_i32 : i32 to vector<1x128xi32>
    %9 = arith.cmpi slt, %7, %8 : vector<1x128xi32>
    %10 = arith.extui %9 : vector<1x128xi1> to vector<1x128xi32>
    %11 = arith.sitofp %10 : vector<1x128xi32> to vector<1x128xf32>
    %12 = tpu.iota {dimensions = array<i32: 1>} : vector<1x128xi32>
    %c32_i32 = arith.constant 32 : i32
    %13 = vector.broadcast %c32_i32 : i32 to vector<1x128xi32>
    %14 = arith.cmpi slt, %12, %13 : vector<1x128xi32>
    %15 = arith.extui %14 : vector<1x128xi1> to vector<1x128xi32>
    %16 = arith.sitofp %15 : vector<1x128xi32> to vector<1x128xf32>
    %c16_i32 = arith.constant 16 : i32
    %17 = arith.muli %arg0, %c16_i32 : i32
    %18 = tpu.iota {dimensions = array<i32: 0>} : vector<16x1xi32>
    %19 = vector.broadcast %17 : i32 to vector<16x1xi32>
    %20 = arith.addi %19, %18 : vector<16x1xi32>
    %c16_i32_8 = arith.constant 16 : i32
    %21 = vector.broadcast %c16_i32_8 : i32 to vector<16x1xi32>
    %22 = arith.cmpi slt, %20, %21 : vector<16x1xi32>
    %23 = arith.extui %22 : vector<16x1xi1> to vector<16x1xi32>
    %24 = arith.sitofp %23 : vector<16x1xi32> to vector<16x1xf32>
    %cst = arith.constant dense<0.000000e+00> : vector<16xf32>
    %25 = vector.multi_reduction <add>, %6, %cst [1] : vector<16x128xf32> to vector<16xf32>
    %26 = vector.shape_cast %25 : vector<16xf32> to vector<16x1xf32>
    %cst_9 = arith.constant 3.200000e+01 : f32
    %27 = vector.broadcast %cst_9 : f32 to vector<16x1xf32>
    %28 = arith.divf %26, %27 : vector<16x1xf32>
    %29 = vector.broadcast %28 : vector<16x1xf32> to vector<16x128xf32>
    %30 = arith.subf %6, %29 : vector<16x128xf32>
    %31 = vector.broadcast %16 : vector<1x128xf32> to vector<16x128xf32>
    %32 = arith.mulf %30, %31 : vector<16x128xf32>
    %33 = arith.mulf %32, %32 : vector<16x128xf32>
    %cst_10 = arith.constant dense<0.000000e+00> : vector<16xf32>
    %34 = vector.multi_reduction <add>, %33, %cst_10 [1] : vector<16x128xf32> to vector<16xf32>
    %35 = vector.shape_cast %34 : vector<16xf32> to vector<16x1xf32>
    %cst_11 = arith.constant 3.200000e+01 : f32
    %36 = vector.broadcast %cst_11 : f32 to vector<16x1xf32>
    %37 = arith.divf %35, %36 : vector<16x1xf32>
    %cst_12 = arith.constant 9.99999974E-6 : f32
    %38 = vector.broadcast %cst_12 : f32 to vector<16x1xf32>
    %39 = arith.addf %37, %38 : vector<16x1xf32>
    %40 = math.rsqrt %39 : vector<16x1xf32>
    %41 = vector.broadcast %40 : vector<16x1xf32> to vector<16x128xf32>
    %42 = arith.mulf %32, %41 : vector<16x128xf32>
    %43 = vector.broadcast %5 : vector<16x1xf32> to vector<16x128xf32>
    %44 = arith.mulf %43, %4 : vector<16x128xf32>
    %45 = arith.addf %3, %44 : vector<16x128xf32>
    %46 = arith.mulf %5, %5 : vector<16x1xf32>
    %cst_13 = arith.constant 2.500000e-01 : f32
    %47 = vector.broadcast %cst_13 : f32 to vector<16x1xf32>
    %48 = arith.addf %46, %47 : vector<16x1xf32>
    %49 = math.rsqrt %48 : vector<16x1xf32>
    %cst_14 = arith.constant 2.500000e-01 : f32
    %50 = vector.broadcast %cst_14 : f32 to vector<16x1xf32>
    %51 = arith.divf %50, %48 : vector<16x1xf32>
    %cst_15 = arith.constant 5.000000e-01 : f32
    %52 = vector.broadcast %cst_15 : f32 to vector<16x1xf32>
    %53 = arith.mulf %5, %52 : vector<16x1xf32>
    %54 = arith.mulf %53, %49 : vector<16x1xf32>
    %cst_16 = arith.constant 9.99999968E-21 : f32
    %55 = vector.broadcast %cst_16 : f32 to vector<16x1xf32>
    %56 = arith.maximumf %5, %55 : vector<16x1xf32>
    %57 = math.log %56 : vector<16x1xf32>
    %cst_17 = arith.constant 2.500000e-01 : f32
    %58 = vector.broadcast %cst_17 : f32 to vector<16x1xf32>
    %59 = arith.mulf %57, %58 : vector<16x1xf32>
    %60 = tpu.iota {dimensions = array<i32: 1>} : vector<1x33xi32>
    %c0_18 = arith.constant 0 : index
    %c0_19 = arith.constant 0 : index
    %61 = vector.load %arg5[%c0_18, %c0_19] : memref<1x33xf32, #tpu.memory_space<vmem>>, vector<1x33xf32>
    %62 = vector.broadcast %59 : vector<16x1xf32> to vector<16x33xf32>
    %63 = vector.broadcast %61 : vector<1x33xf32> to vector<16x33xf32>
    %64 = arith.mulf %62, %63 : vector<16x33xf32>
    %cst_20 = arith.constant 6.28318548 : f32
    %65 = vector.broadcast %cst_20 : f32 to vector<16x33xf32>
    %66 = arith.mulf %64, %65 : vector<16x33xf32>
    %c16_i32_21 = arith.constant 16 : i32
    %67 = vector.broadcast %c16_i32_21 : i32 to vector<1x33xi32>
    %68 = arith.cmpi sle, %60, %67 : vector<1x33xi32>
    %69 = math.sin %66 : vector<16x33xf32>
    %70 = math.cos %66 : vector<16x33xf32>
    %71 = vector.shape_cast %68 : vector<1x33xi1> to vector<1x33xi1>
    %72 = vector.broadcast %71 : vector<1x33xi1> to vector<16x33xi1>
    %73 = arith.select %72, %69, %70 : vector<16x33xi1>, vector<16x33xf32>
    %c0_i32_22 = arith.constant 0 : i32
    %74 = vector.broadcast %c0_i32_22 : i32 to vector<1x33xi32>
    %75 = arith.cmpi eq, %60, %74 : vector<1x33xi32>
    %76 = vector.shape_cast %75 : vector<1x33xi1> to vector<1x33xi1>
    %77 = vector.broadcast %76 : vector<1x33xi1> to vector<16x33xi1>
    %78 = vector.shape_cast %59 : vector<16x1xf32> to vector<16x1xf32>
    %79 = vector.broadcast %78 : vector<16x1xf32> to vector<16x33xf32>
    %80 = arith.select %77, %79, %73 : vector<16x33xi1>, vector<16x33xf32>
    %c0_23 = arith.constant 0 : index
    %c0_24 = arith.constant 0 : index
    %81 = vector.load %arg6[%c0_23, %c0_24] : memref<33x128xf32, #tpu.memory_space<vmem>>, vector<33x128xf32>
    %cst_25 = arith.constant dense<0.000000e+00> : vector<16x128xf32>
    %82 = tpu.matmul %80, %81, %cst_25 {dimension_numbers = #tpu.dot_dimension_numbers<[1], [0], [0], [1], [0, 0, 1, 1], [], []>} : vector<16x33xf32>, vector<33x128xf32>, vector<16x128xf32> -> vector<16x128xf32>
    %c0_26 = arith.constant 0 : index
    %c0_27 = arith.constant 0 : index
    %83 = vector.load %arg7[%c0_26, %c0_27] : memref<1x128xf32, #tpu.memory_space<vmem>>, vector<1x128xf32>
    %84 = vector.broadcast %83 : vector<1x128xf32> to vector<16x128xf32>
    %85 = arith.addf %82, %84 : vector<16x128xf32>
    %86 = arith.addf %85, %42 : vector<16x128xf32>
    %87 = arith.negf %86 : vector<16x128xf32>
    %88 = math.exp %87 : vector<16x128xf32>
    %cst_28 = arith.constant 1.000000e+00 : f32
    %89 = vector.broadcast %cst_28 : f32 to vector<16x128xf32>
    %90 = arith.addf %89, %88 : vector<16x128xf32>
    %91 = arith.divf %89, %90 : vector<16x128xf32>
    %92 = arith.mulf %86, %91 : vector<16x128xf32>
    %93 = arith.truncf %92 : vector<16x128xf32> to vector<16x128xbf16>
    %94 = vector.broadcast %49 : vector<16x1xf32> to vector<16x128xf32>
    %95 = arith.mulf %94, %45 : vector<16x128xf32>
    %cst_29 = arith.constant dense<0.000000e+00> : vector<16xf32>
    %96 = vector.multi_reduction <add>, %95, %cst_29 [1] : vector<16x128xf32> to vector<16xf32>
    %97 = vector.shape_cast %96 : vector<16xf32> to vector<16x1xf32>
    %cst_30 = arith.constant 8.000000e+00 : f32
    %98 = vector.broadcast %cst_30 : f32 to vector<16x1xf32>
    %99 = arith.divf %97, %98 : vector<16x1xf32>
    %100 = vector.broadcast %99 : vector<16x1xf32> to vector<16x128xf32>
    %101 = arith.subf %95, %100 : vector<16x128xf32>
    %102 = vector.broadcast %11 : vector<1x128xf32> to vector<16x128xf32>
    %103 = arith.mulf %101, %102 : vector<16x128xf32>
    %104 = arith.mulf %103, %103 : vector<16x128xf32>
    %cst_31 = arith.constant dense<0.000000e+00> : vector<16xf32>
    %105 = vector.multi_reduction <add>, %104, %cst_31 [1] : vector<16x128xf32> to vector<16xf32>
    %106 = vector.shape_cast %105 : vector<16xf32> to vector<16x1xf32>
    %cst_32 = arith.constant 8.000000e+00 : f32
    %107 = vector.broadcast %cst_32 : f32 to vector<16x1xf32>
    %108 = arith.divf %106, %107 : vector<16x1xf32>
    %cst_33 = arith.constant 9.99999974E-6 : f32
    %109 = vector.broadcast %cst_33 : f32 to vector<16x1xf32>
    %110 = arith.addf %108, %109 : vector<16x1xf32>
    %111 = math.rsqrt %110 : vector<16x1xf32>
    %112 = vector.broadcast %111 : vector<16x1xf32> to vector<16x128xf32>
    %113 = arith.mulf %103, %112 : vector<16x128xf32>
    %c0_34 = arith.constant 0 : index
    %c0_35 = arith.constant 0 : index
    %c0_36 = arith.constant 0 : index
    %114 = vector.load %arg8[%c0_34, %c0_35, %c0_36] : memref<3x128x128xbf16, #tpu.memory_space<vmem>>, vector<1x128x128xbf16>
    %115 = vector.shape_cast %114 : vector<1x128x128xbf16> to vector<128x128xbf16>
    %cst_37 = arith.constant dense<0.000000e+00> : vector<16x128xf32>
    %116 = tpu.matmul %93, %115, %cst_37 {dimension_numbers = #tpu.dot_dimension_numbers<[1], [0], [0], [1], [0, 0, 1, 1], [], []>} : vector<16x128xbf16>, vector<128x128xbf16>, vector<16x128xf32> -> vector<16x128xf32>
    %cst_38 = arith.constant 1.000000e+00 : f32
    %117 = vector.broadcast %cst_38 : f32 to vector<16x128xf32>
    %118 = arith.addf %116, %117 : vector<16x128xf32>
    %119 = arith.mulf %113, %118 : vector<16x128xf32>
    %120 = arith.truncf %119 : vector<16x128xf32> to vector<16x128xbf16>
    %c0_39 = arith.constant 0 : index
    %c0_40 = arith.constant 0 : index
    %c0_41 = arith.constant 0 : index
    %121 = vector.load %arg9[%c0_39, %c0_40, %c0_41] : memref<3x128x128xbf16, #tpu.memory_space<vmem>>, vector<1x128x128xbf16>
    %122 = vector.shape_cast %121 : vector<1x128x128xbf16> to vector<128x128xbf16>
    %cst_42 = arith.constant dense<0.000000e+00> : vector<16x128xf32>
    %123 = tpu.matmul %120, %122, %cst_42 {dimension_numbers = #tpu.dot_dimension_numbers<[1], [0], [0], [1], [0, 0, 1, 1], [], []>} : vector<16x128xbf16>, vector<128x128xbf16>, vector<16x128xf32> -> vector<16x128xf32>
    %c0_43 = arith.constant 0 : index
    %c0_44 = arith.constant 0 : index
    %c0_45 = arith.constant 0 : index
    %124 = vector.load %arg10[%c0_43, %c0_44, %c0_45] : memref<3x1x128xf32, #tpu.memory_space<vmem>>, vector<1x1x128xf32>
    %125 = vector.shape_cast %124 : vector<1x1x128xf32> to vector<1x128xf32>
    %126 = vector.broadcast %125 : vector<1x128xf32> to vector<16x128xf32>
    %127 = arith.addf %123, %126 : vector<16x128xf32>
    %128 = arith.negf %127 : vector<16x128xf32>
    %129 = math.exp %128 : vector<16x128xf32>
    %cst_46 = arith.constant 1.000000e+00 : f32
    %130 = vector.broadcast %cst_46 : f32 to vector<16x128xf32>
    %131 = arith.addf %130, %129 : vector<16x128xf32>
    %132 = arith.divf %130, %131 : vector<16x128xf32>
    %133 = arith.mulf %127, %132 : vector<16x128xf32>
    %134 = arith.truncf %133 : vector<16x128xf32> to vector<16x128xbf16>
    %c0_47 = arith.constant 0 : index
    %c0_48 = arith.constant 0 : index
    %c0_49 = arith.constant 0 : index
    %135 = vector.load %arg11[%c0_47, %c0_48, %c0_49] : memref<3x128x128xbf16, #tpu.memory_space<vmem>>, vector<1x128x128xbf16>
    %136 = vector.shape_cast %135 : vector<1x128x128xbf16> to vector<128x128xbf16>
    %cst_50 = arith.constant dense<0.000000e+00> : vector<16x128xf32>
    %137 = tpu.matmul %134, %136, %cst_50 {dimension_numbers = #tpu.dot_dimension_numbers<[1], [0], [0], [1], [0, 0, 1, 1], [], []>} : vector<16x128xbf16>, vector<128x128xbf16>, vector<16x128xf32> -> vector<16x128xf32>
    %c0_51 = arith.constant 0 : index
    %c0_52 = arith.constant 0 : index
    %c0_53 = arith.constant 0 : index
    %138 = vector.load %arg12[%c0_51, %c0_52, %c0_53] : memref<3x1x128xf32, #tpu.memory_space<vmem>>, vector<1x1x128xf32>
    %139 = vector.shape_cast %138 : vector<1x1x128xf32> to vector<1x128xf32>
    %140 = vector.broadcast %139 : vector<1x128xf32> to vector<16x128xf32>
    %141 = arith.addf %137, %140 : vector<16x128xf32>
    %c0_54 = arith.constant 0 : index
    %c0_55 = arith.constant 0 : index
    %c0_56 = arith.constant 0 : index
    %142 = vector.load %arg13[%c0_54, %c0_55, %c0_56] : memref<3x128x128xbf16, #tpu.memory_space<vmem>>, vector<1x128x128xbf16>
    %143 = vector.shape_cast %142 : vector<1x128x128xbf16> to vector<128x128xbf16>
    %cst_57 = arith.constant dense<0.000000e+00> : vector<16x128xf32>
    %144 = tpu.matmul %93, %143, %cst_57 {dimension_numbers = #tpu.dot_dimension_numbers<[1], [0], [0], [1], [0, 0, 1, 1], [], []>} : vector<16x128xbf16>, vector<128x128xbf16>, vector<16x128xf32> -> vector<16x128xf32>
    %cst_58 = arith.constant 1.000000e+00 : f32
    %145 = vector.broadcast %cst_58 : f32 to vector<16x128xf32>
    %146 = arith.addf %144, %145 : vector<16x128xf32>
    %147 = arith.mulf %141, %146 : vector<16x128xf32>
    %148 = arith.addf %147, %95 : vector<16x128xf32>
    %cst_59 = arith.constant dense<0.000000e+00> : vector<16xf32>
    %149 = vector.multi_reduction <add>, %148, %cst_59 [1] : vector<16x128xf32> to vector<16xf32>
    %150 = vector.shape_cast %149 : vector<16xf32> to vector<16x1xf32>
    %cst_60 = arith.constant 8.000000e+00 : f32
    %151 = vector.broadcast %cst_60 : f32 to vector<16x1xf32>
    %152 = arith.divf %150, %151 : vector<16x1xf32>
    %153 = vector.broadcast %152 : vector<16x1xf32> to vector<16x128xf32>
    %154 = arith.subf %148, %153 : vector<16x128xf32>
    %155 = vector.broadcast %11 : vector<1x128xf32> to vector<16x128xf32>
    %156 = arith.mulf %154, %155 : vector<16x128xf32>
    %157 = arith.mulf %156, %156 : vector<16x128xf32>
    %cst_61 = arith.constant dense<0.000000e+00> : vector<16xf32>
    %158 = vector.multi_reduction <add>, %157, %cst_61 [1] : vector<16x128xf32> to vector<16xf32>
    %159 = vector.shape_cast %158 : vector<16xf32> to vector<16x1xf32>
    %cst_62 = arith.constant 8.000000e+00 : f32
    %160 = vector.broadcast %cst_62 : f32 to vector<16x1xf32>
    %161 = arith.divf %159, %160 : vector<16x1xf32>
    %cst_63 = arith.constant 9.99999974E-6 : f32
    %162 = vector.broadcast %cst_63 : f32 to vector<16x1xf32>
    %163 = arith.addf %161, %162 : vector<16x1xf32>
    %164 = math.rsqrt %163 : vector<16x1xf32>
    %165 = vector.broadcast %164 : vector<16x1xf32> to vector<16x128xf32>
    %166 = arith.mulf %156, %165 : vector<16x128xf32>
    %c1 = arith.constant 1 : index
    %c0_64 = arith.constant 0 : index
    %c0_65 = arith.constant 0 : index
    %167 = vector.load %arg8[%c1, %c0_64, %c0_65] : memref<3x128x128xbf16, #tpu.memory_space<vmem>>, vector<1x128x128xbf16>
    %168 = vector.shape_cast %167 : vector<1x128x128xbf16> to vector<128x128xbf16>
    %cst_66 = arith.constant dense<0.000000e+00> : vector<16x128xf32>
    %169 = tpu.matmul %93, %168, %cst_66 {dimension_numbers = #tpu.dot_dimension_numbers<[1], [0], [0], [1], [0, 0, 1, 1], [], []>} : vector<16x128xbf16>, vector<128x128xbf16>, vector<16x128xf32> -> vector<16x128xf32>
    %cst_67 = arith.constant 1.000000e+00 : f32
    %170 = vector.broadcast %cst_67 : f32 to vector<16x128xf32>
    %171 = arith.addf %169, %170 : vector<16x128xf32>
    %172 = arith.mulf %166, %171 : vector<16x128xf32>
    %173 = arith.truncf %172 : vector<16x128xf32> to vector<16x128xbf16>
    %c1_68 = arith.constant 1 : index
    %c0_69 = arith.constant 0 : index
    %c0_70 = arith.constant 0 : index
    %174 = vector.load %arg9[%c1_68, %c0_69, %c0_70] : memref<3x128x128xbf16, #tpu.memory_space<vmem>>, vector<1x128x128xbf16>
    %175 = vector.shape_cast %174 : vector<1x128x128xbf16> to vector<128x128xbf16>
    %cst_71 = arith.constant dense<0.000000e+00> : vector<16x128xf32>
    %176 = tpu.matmul %173, %175, %cst_71 {dimension_numbers = #tpu.dot_dimension_numbers<[1], [0], [0], [1], [0, 0, 1, 1], [], []>} : vector<16x128xbf16>, vector<128x128xbf16>, vector<16x128xf32> -> vector<16x128xf32>
    %c1_72 = arith.constant 1 : index
    %c0_73 = arith.constant 0 : index
    %c0_74 = arith.constant 0 : index
    %177 = vector.load %arg10[%c1_72, %c0_73, %c0_74] : memref<3x1x128xf32, #tpu.memory_space<vmem>>, vector<1x1x128xf32>
    %178 = vector.shape_cast %177 : vector<1x1x128xf32> to vector<1x128xf32>
    %179 = vector.broadcast %178 : vector<1x128xf32> to vector<16x128xf32>
    %180 = arith.addf %176, %179 : vector<16x128xf32>
    %181 = arith.negf %180 : vector<16x128xf32>
    %182 = math.exp %181 : vector<16x128xf32>
    %cst_75 = arith.constant 1.000000e+00 : f32
    %183 = vector.broadcast %cst_75 : f32 to vector<16x128xf32>
    %184 = arith.addf %183, %182 : vector<16x128xf32>
    %185 = arith.divf %183, %184 : vector<16x128xf32>
    %186 = arith.mulf %180, %185 : vector<16x128xf32>
    %187 = arith.truncf %186 : vector<16x128xf32> to vector<16x128xbf16>
    %c1_76 = arith.constant 1 : index
    %c0_77 = arith.constant 0 : index
    %c0_78 = arith.constant 0 : index
    %188 = vector.load %arg11[%c1_76, %c0_77, %c0_78] : memref<3x128x128xbf16, #tpu.memory_space<vmem>>, vector<1x128x128xbf16>
    %189 = vector.shape_cast %188 : vector<1x128x128xbf16> to vector<128x128xbf16>
    %cst_79 = arith.constant dense<0.000000e+00> : vector<16x128xf32>
    %190 = tpu.matmul %187, %189, %cst_79 {dimension_numbers = #tpu.dot_dimension_numbers<[1], [0], [0], [1], [0, 0, 1, 1], [], []>} : vector<16x128xbf16>, vector<128x128xbf16>, vector<16x128xf32> -> vector<16x128xf32>
    %c1_80 = arith.constant 1 : index
    %c0_81 = arith.constant 0 : index
    %c0_82 = arith.constant 0 : index
    %191 = vector.load %arg12[%c1_80, %c0_81, %c0_82] : memref<3x1x128xf32, #tpu.memory_space<vmem>>, vector<1x1x128xf32>
    %192 = vector.shape_cast %191 : vector<1x1x128xf32> to vector<1x128xf32>
    %193 = vector.broadcast %192 : vector<1x128xf32> to vector<16x128xf32>
    %194 = arith.addf %190, %193 : vector<16x128xf32>
    %c1_83 = arith.constant 1 : index
    %c0_84 = arith.constant 0 : index
    %c0_85 = arith.constant 0 : index
    %195 = vector.load %arg13[%c1_83, %c0_84, %c0_85] : memref<3x128x128xbf16, #tpu.memory_space<vmem>>, vector<1x128x128xbf16>
    %196 = vector.shape_cast %195 : vector<1x128x128xbf16> to vector<128x128xbf16>
    %cst_86 = arith.constant dense<0.000000e+00> : vector<16x128xf32>
    %197 = tpu.matmul %93, %196, %cst_86 {dimension_numbers = #tpu.dot_dimension_numbers<[1], [0], [0], [1], [0, 0, 1, 1], [], []>} : vector<16x128xbf16>, vector<128x128xbf16>, vector<16x128xf32> -> vector<16x128xf32>
    %cst_87 = arith.constant 1.000000e+00 : f32
    %198 = vector.broadcast %cst_87 : f32 to vector<16x128xf32>
    %199 = arith.addf %197, %198 : vector<16x128xf32>
    %200 = arith.mulf %194, %199 : vector<16x128xf32>
    %201 = arith.addf %200, %148 : vector<16x128xf32>
    %cst_88 = arith.constant dense<0.000000e+00> : vector<16xf32>
    %202 = vector.multi_reduction <add>, %201, %cst_88 [1] : vector<16x128xf32> to vector<16xf32>
    %203 = vector.shape_cast %202 : vector<16xf32> to vector<16x1xf32>
    %cst_89 = arith.constant 8.000000e+00 : f32
    %204 = vector.broadcast %cst_89 : f32 to vector<16x1xf32>
    %205 = arith.divf %203, %204 : vector<16x1xf32>
    %206 = vector.broadcast %205 : vector<16x1xf32> to vector<16x128xf32>
    %207 = arith.subf %201, %206 : vector<16x128xf32>
    %208 = vector.broadcast %11 : vector<1x128xf32> to vector<16x128xf32>
    %209 = arith.mulf %207, %208 : vector<16x128xf32>
    %210 = arith.mulf %209, %209 : vector<16x128xf32>
    %cst_90 = arith.constant dense<0.000000e+00> : vector<16xf32>
    %211 = vector.multi_reduction <add>, %210, %cst_90 [1] : vector<16x128xf32> to vector<16xf32>
    %212 = vector.shape_cast %211 : vector<16xf32> to vector<16x1xf32>
    %cst_91 = arith.constant 8.000000e+00 : f32
    %213 = vector.broadcast %cst_91 : f32 to vector<16x1xf32>
    %214 = arith.divf %212, %213 : vector<16x1xf32>
    %cst_92 = arith.constant 9.99999974E-6 : f32
    %215 = vector.broadcast %cst_92 : f32 to vector<16x1xf32>
    %216 = arith.addf %214, %215 : vector<16x1xf32>
    %217 = math.rsqrt %216 : vector<16x1xf32>
    %218 = vector.broadcast %217 : vector<16x1xf32> to vector<16x128xf32>
    %219 = arith.mulf %209, %218 : vector<16x128xf32>
    %c2 = arith.constant 2 : index
    %c0_93 = arith.constant 0 : index
    %c0_94 = arith.constant 0 : index
    %220 = vector.load %arg8[%c2, %c0_93, %c0_94] : memref<3x128x128xbf16, #tpu.memory_space<vmem>>, vector<1x128x128xbf16>
    %221 = vector.shape_cast %220 : vector<1x128x128xbf16> to vector<128x128xbf16>
    %cst_95 = arith.constant dense<0.000000e+00> : vector<16x128xf32>
    %222 = tpu.matmul %93, %221, %cst_95 {dimension_numbers = #tpu.dot_dimension_numbers<[1], [0], [0], [1], [0, 0, 1, 1], [], []>} : vector<16x128xbf16>, vector<128x128xbf16>, vector<16x128xf32> -> vector<16x128xf32>
    %cst_96 = arith.constant 1.000000e+00 : f32
    %223 = vector.broadcast %cst_96 : f32 to vector<16x128xf32>
    %224 = arith.addf %222, %223 : vector<16x128xf32>
    %225 = arith.mulf %219, %224 : vector<16x128xf32>
    %226 = arith.truncf %225 : vector<16x128xf32> to vector<16x128xbf16>
    %c2_97 = arith.constant 2 : index
    %c0_98 = arith.constant 0 : index
    %c0_99 = arith.constant 0 : index
    %227 = vector.load %arg9[%c2_97, %c0_98, %c0_99] : memref<3x128x128xbf16, #tpu.memory_space<vmem>>, vector<1x128x128xbf16>
    %228 = vector.shape_cast %227 : vector<1x128x128xbf16> to vector<128x128xbf16>
    %cst_100 = arith.constant dense<0.000000e+00> : vector<16x128xf32>
    %229 = tpu.matmul %226, %228, %cst_100 {dimension_numbers = #tpu.dot_dimension_numbers<[1], [0], [0], [1], [0, 0, 1, 1], [], []>} : vector<16x128xbf16>, vector<128x128xbf16>, vector<16x128xf32> -> vector<16x128xf32>
    %c2_101 = arith.constant 2 : index
    %c0_102 = arith.constant 0 : index
    %c0_103 = arith.constant 0 : index
    %230 = vector.load %arg10[%c2_101, %c0_102, %c0_103] : memref<3x1x128xf32, #tpu.memory_space<vmem>>, vector<1x1x128xf32>
    %231 = vector.shape_cast %230 : vector<1x1x128xf32> to vector<1x128xf32>
    %232 = vector.broadcast %231 : vector<1x128xf32> to vector<16x128xf32>
    %233 = arith.addf %229, %232 : vector<16x128xf32>
    %234 = arith.negf %233 : vector<16x128xf32>
    %235 = math.exp %234 : vector<16x128xf32>
    %cst_104 = arith.constant 1.000000e+00 : f32
    %236 = vector.broadcast %cst_104 : f32 to vector<16x128xf32>
    %237 = arith.addf %236, %235 : vector<16x128xf32>
    %238 = arith.divf %236, %237 : vector<16x128xf32>
    %239 = arith.mulf %233, %238 : vector<16x128xf32>
    %240 = arith.truncf %239 : vector<16x128xf32> to vector<16x128xbf16>
    %c2_105 = arith.constant 2 : index
    %c0_106 = arith.constant 0 : index
    %c0_107 = arith.constant 0 : index
    %241 = vector.load %arg11[%c2_105, %c0_106, %c0_107] : memref<3x128x128xbf16, #tpu.memory_space<vmem>>, vector<1x128x128xbf16>
    %242 = vector.shape_cast %241 : vector<1x128x128xbf16> to vector<128x128xbf16>
    %cst_108 = arith.constant dense<0.000000e+00> : vector<16x128xf32>
    %243 = tpu.matmul %240, %242, %cst_108 {dimension_numbers = #tpu.dot_dimension_numbers<[1], [0], [0], [1], [0, 0, 1, 1], [], []>} : vector<16x128xbf16>, vector<128x128xbf16>, vector<16x128xf32> -> vector<16x128xf32>
    %c2_109 = arith.constant 2 : index
    %c0_110 = arith.constant 0 : index
    %c0_111 = arith.constant 0 : index
    %244 = vector.load %arg12[%c2_109, %c0_110, %c0_111] : memref<3x1x128xf32, #tpu.memory_space<vmem>>, vector<1x1x128xf32>
    %245 = vector.shape_cast %244 : vector<1x1x128xf32> to vector<1x128xf32>
    %246 = vector.broadcast %245 : vector<1x128xf32> to vector<16x128xf32>
    %247 = arith.addf %243, %246 : vector<16x128xf32>
    %c2_112 = arith.constant 2 : index
    %c0_113 = arith.constant 0 : index
    %c0_114 = arith.constant 0 : index
    %248 = vector.load %arg13[%c2_112, %c0_113, %c0_114] : memref<3x128x128xbf16, #tpu.memory_space<vmem>>, vector<1x128x128xbf16>
    %249 = vector.shape_cast %248 : vector<1x128x128xbf16> to vector<128x128xbf16>
    %cst_115 = arith.constant dense<0.000000e+00> : vector<16x128xf32>
    %250 = tpu.matmul %93, %249, %cst_115 {dimension_numbers = #tpu.dot_dimension_numbers<[1], [0], [0], [1], [0, 0, 1, 1], [], []>} : vector<16x128xbf16>, vector<128x128xbf16>, vector<16x128xf32> -> vector<16x128xf32>
    %cst_116 = arith.constant 1.000000e+00 : f32
    %251 = vector.broadcast %cst_116 : f32 to vector<16x128xf32>
    %252 = arith.addf %250, %251 : vector<16x128xf32>
    %253 = arith.mulf %247, %252 : vector<16x128xf32>
    %254 = arith.addf %253, %201 : vector<16x128xf32>
    %255 = vector.broadcast %51 : vector<16x1xf32> to vector<16x128xf32>
    %256 = arith.mulf %255, %45 : vector<16x128xf32>
    %257 = vector.broadcast %54 : vector<16x1xf32> to vector<16x128xf32>
    %258 = arith.mulf %257, %254 : vector<16x128xf32>
    %259 = arith.addf %256, %258 : vector<16x128xf32>
    %cst_117 = arith.constant -1.000000e+00 : f32
    %cst_118 = arith.constant 1.000000e+00 : f32
    %260 = vector.broadcast %cst_117 : f32 to vector<16x128xf32>
    %261 = arith.maximumf %260, %259 : vector<16x128xf32>
    %262 = vector.broadcast %cst_118 : f32 to vector<16x128xf32>
    %263 = arith.minimumf %262, %261 : vector<16x128xf32>
    %264 = arith.subf %263, %3 : vector<16x128xf32>
    %cst_119 = arith.constant 5.000000e-01 : f32
    %265 = vector.broadcast %cst_119 : f32 to vector<16x1xf32>
    %266 = arith.mulf %5, %265 : vector<16x1xf32>
    %267 = arith.mulf %266, %266 : vector<16x1xf32>
    %268 = arith.divf %48, %267 : vector<16x1xf32>
    %269 = arith.mulf %264, %264 : vector<16x128xf32>
    %270 = vector.broadcast %268 : vector<16x1xf32> to vector<16x128xf32>
    %271 = arith.mulf %269, %270 : vector<16x128xf32>
    %272 = vector.broadcast %24 : vector<16x1xf32> to vector<16x128xf32>
    %273 = arith.mulf %271, %272 : vector<16x128xf32>
    %c0_120 = arith.constant 0 : index
    %c0_121 = arith.constant 0 : index
    %274 = vector.load %arg14[%c0_120, %c0_121] : memref<1x128xf32, #tpu.memory_space<vmem>>, vector<1x128xf32>
    %cst_122 = arith.constant dense<0.000000e+00> : vector<128xf32>
    %275 = vector.multi_reduction <add>, %273, %cst_122 [0] : vector<16x128xf32> to vector<128xf32>
    %276 = vector.shape_cast %275 : vector<128xf32> to vector<1x128xf32>
    %277 = arith.addf %274, %276 : vector<1x128xf32>
    %c0_123 = arith.constant 0 : index
    %c0_124 = arith.constant 0 : index
    %278 = vector.load %arg14[%c0_123, %c0_124] : memref<1x128xf32, #tpu.memory_space<vmem>>, vector<1x128xf32>
    tpu.vector_store %arg14[%c0_123, %c0_124], %277 {strides = array<i32>} : memref<1x128xf32, #tpu.memory_space<vmem>>, vector<1x128xf32>,
    return
  }
  func.func @transform_0(%arg0: i32) -> (i32, i32) {
    %c0_i32 = arith.constant 0 : i32
    %c0_i32_0 = arith.constant 0 : i32
    return %arg0, %c0_i32 : i32, i32
  }
  func.func @transform_1(%arg0: i32) -> (i32, i32) {
    %c0_i32 = arith.constant 0 : i32
    %c0_i32_0 = arith.constant 0 : i32
    return %arg0, %c0_i32 : i32, i32
  }
  func.func @transform_2(%arg0: i32) -> (i32, i32) {
    %c0_i32 = arith.constant 0 : i32
    %c0_i32_0 = arith.constant 0 : i32
    return %arg0, %c0_i32 : i32, i32
  }
  func.func @transform_3(%arg0: i32) -> (i32, i32) {
    %c0_i32 = arith.constant 0 : i32
    %c0_i32_0 = arith.constant 0 : i32
    return %arg0, %c0_i32 : i32, i32
  }
  func.func @transform_4(%arg0: i32) -> (i32, i32) {
    %c0_i32 = arith.constant 0 : i32
    %c0_i32_0 = arith.constant 0 : i32
    %c0_i32_1 = arith.constant 0 : i32
    return %c0_i32, %c0_i32_0 : i32, i32
  }
  func.func @transform_5(%arg0: i32) -> (i32, i32) {
    %c0_i32 = arith.constant 0 : i32
    %c0_i32_0 = arith.constant 0 : i32
    %c0_i32_1 = arith.constant 0 : i32
    return %c0_i32, %c0_i32_0 : i32, i32
  }
  func.func @transform_6(%arg0: i32) -> (i32, i32) {
    %c0_i32 = arith.constant 0 : i32
    %c0_i32_0 = arith.constant 0 : i32
    %c0_i32_1 = arith.constant 0 : i32
    return %c0_i32, %c0_i32_0 : i32, i32
  }
  func.func @transform_7(%arg0: i32) -> (i32, i32, i32) {
    %c0_i32 = arith.constant 0 : i32
    %c0_i32_0 = arith.constant 0 : i32
    %c0_i32_1 = arith.constant 0 : i32
    %c0_i32_2 = arith.constant 0 : i32
    return %c0_i32, %c0_i32_0, %c0_i32_1 : i32, i32, i32
  }
  func.func @transform_8(%arg0: i32) -> (i32, i32, i32) {
    %c0_i32 = arith.constant 0 : i32
    %c0_i32_0 = arith.constant 0 : i32
    %c0_i32_1 = arith.constant 0 : i32
    %c0_i32_2 = arith.constant 0 : i32
    return %c0_i32, %c0_i32_0, %c0_i32_1 : i32, i32, i32
  }
  func.func @transform_9(%arg0: i32) -> (i32, i32, i32) {
    %c0_i32 = arith.constant 0 : i32
    %c0_i32_0 = arith.constant 0 : i32
    %c0_i32_1 = arith.constant 0 : i32
    %c0_i32_2 = arith.constant 0 : i32
    return %c0_i32, %c0_i32_0, %c0_i32_1 : i32, i32, i32
  }
  func.func @transform_10(%arg0: i32) -> (i32, i32, i32) {
    %c0_i32 = arith.constant 0 : i32
    %c0_i32_0 = arith.constant 0 : i32
    %c0_i32_1 = arith.constant 0 : i32
    %c0_i32_2 = arith.constant 0 : i32
    return %c0_i32, %c0_i32_0, %c0_i32_1 : i32, i32, i32
  }
  func.func @transform_11(%arg0: i32) -> (i32, i32, i32) {
    %c0_i32 = arith.constant 0 : i32
    %c0_i32_0 = arith.constant 0 : i32
    %c0_i32_1 = arith.constant 0 : i32
    %c0_i32_2 = arith.constant 0 : i32
    return %c0_i32, %c0_i32_0, %c0_i32_1 : i32, i32, i32
  }
  func.func @transform_12(%arg0: i32) -> (i32, i32, i32) {
    %c0_i32 = arith.constant 0 : i32
    %c0_i32_0 = arith.constant 0 : i32
    %c0_i32_1 = arith.constant 0 : i32
    %c0_i32_2 = arith.constant 0 : i32
    return %c0_i32, %c0_i32_0, %c0_i32_1 : i32, i32, i32
  }
  func.func @transform_13(%arg0: i32) -> (i32, i32) {
    %c0_i32 = arith.constant 0 : i32
    %c0_i32_0 = arith.constant 0 : i32
    %c0_i32_1 = arith.constant 0 : i32
    return %c0_i32, %c0_i32_0 : i32, i32
  }
}

</mosaic_0001>

<llo_original>
// kernel: autoregressive_diffusion_forward.8
$region0: #{autoregressive_diffusion_forward.8}
  #allocation0 [shape = 'u32[]', space=smem, size = 0x4, offset = 0x4, fixed_abs, tag = 'smem constant byte address 0x4 - core index']
  #allocation1 [shape = 'u32[144,128]{1,0:T(1,128)}', space=vmem, size = 0x12000, scoped, tag = 'internal scratch']
  %s0 = inlined_call_operand.vmem [shape: f32[14,8], index: 0, kind: input, shape index: {}]
  %s1 = inlined_call_operand.vmem [shape: bf16[8,32], index: 1, kind: input, shape index: {}]
  %s2 = inlined_call_operand.vmem [shape: f32[1,32], index: 2, kind: input, shape index: {}]
  %s3 = inlined_call_operand.vmem [shape: f32[14,32], index: 3, kind: output, shape index: {}]
  %s4 = sld [smem:[#allocation0]]
  $region22: #{autoregressive_diffusion_forward.8} parent=0
    _
  %s6 = ssub.s32 1, %s4
  %s7 = scalar_select 0, %s6, %s4
  // Predicated region
  $region2: #{autoregressive_diffusion_forward.8} parent=0 // pred_check
    _
  $region3: #{autoregressive_diffusion_forward.8} parent=0 // pred_check_branch
    %9 = sbr.rel (0) target = $region5
  $region4: #{autoregressive_diffusion_forward.8} parent=0 // pred_region
    _
  $region5: #{autoregressive_diffusion_forward.8} parent=0 // pred_fallthru
    _
  // Predicated region
  $region6: #{autoregressive_diffusion_forward.8} parent=0 // pred_check
    _
  $region7: #{autoregressive_diffusion_forward.8} parent=0 // pred_check_branch
    %11 = sbr.rel (0) target = $region9
  $region8: #{autoregressive_diffusion_forward.8} parent=0 // pred_region
    _
  $region9: #{autoregressive_diffusion_forward.8} parent=0 // pred_fallthru
    _
  // Predicated region
  $region10: #{autoregressive_diffusion_forward.8} parent=0 // pred_check
    _
  $region11: #{autoregressive_diffusion_forward.8} parent=0 // pred_check_branch
    %13 = sbr.rel (0) target = $region13
  $region12: #{autoregressive_diffusion_forward.8} parent=0 // pred_region
    _
  $region13: #{autoregressive_diffusion_forward.8} parent=0 // pred_fallthru
    _
  %v15 = vld [vmem:[%s0] sm:$0xff]
  %v16 = vld [vmem:[%s0 + $0x8] sm:$0x3f]
  %v17 = vpack.c.bf16 %v16, %v15
  %v18 = vld [vmem:[%s1] sm:$0xf]
  %v19 = vld [vmem:[%s2] sm:$0x1]
  %v21 = vlaneseq
  %v22 = vshrl.u32 %v21, 7
  %v23 = vsub.s32 0, %v22
  %v24 = vrot.slane %v19, %v23
  %vm26 = vcmask 64512
  %v28 = vsel %vm26, %v17, 0
  %vm30 = vcmask 1043456
  %v32 = vsel %vm30, %v18, 0
  %34 = vmatprep.subr.bf16.mxu0 0
  %35 = vmatpush1.bf16.msra.mxu0 0
  %36 = vmatprep.subr.bf16.mxu0 0
  %37 = vmatpush1.bf16.msra.mxu0 0
  %38 = vmatprep.subr.bf16.mxu0 0
  %39 = vmatpush1.bf16.msra.mxu0 0
  %40 = vmatprep.subr.bf16.mxu0 0
  %41 = vmatpush1.bf16.msra.mxu0 0
  %42 = vmatprep.subr.bf16.mxu0 0
  %43 = vmatpush1.bf16.msra.mxu0 0
  %44 = vmatprep.subr.bf16.mxu0 0
  %45 = vmatpush1.bf16.msra.mxu0 0
  %46 = vmatprep.subr.bf16.mxu0 0
  %47 = vmatpush1.bf16.msra.mxu0 0
  %48 = vmatprep.subr.bf16.mxu0 0
  %49 = vmatpush1.bf16.msra.mxu0 %v32
  %50 = vmatprep.subr.bf16.mxu0 0
  %51 = vmatpush2.bf16.msra.mxu0 0
  %52 = vmatprep.subr.bf16.mxu0 0
  %53 = vmatpush2.bf16.msra.mxu0 0
  %54 = vmatprep.subr.bf16.mxu0 0
  %55 = vmatpush2.bf16.msra.mxu0 0
  %56 = vmatprep.subr.bf16.mxu0 0
  %57 = vmatpush2.bf16.msra.mxu0 0
  %58 = vmatprep.subr.bf16.mxu0 0
  %59 = vmatpush2.bf16.msra.mxu0 0
  %60 = vmatprep.subr.bf16.mxu0 0
  %61 = vmatpush2.bf16.msra.mxu0 0
  %62 = vmatprep.subr.bf16.mxu0 0
  %63 = vmatpush2.bf16.msra.mxu0 0
  %64 = vmatprep.subr.bf16.mxu0 0
  %65 = vmatpush2.bf16.msra.mxu0 0
  %66 = vmatprep.mubr.bf16.mxu0 0
  %67 = vmatmul.mubr.bf16.gmra.mxu0 %v28
  %v68 = vpop.f32.mrf.mxu0
  %v69 = vadd.f32 %v24, %v68
  %v70 = vpop.f32.mrf.mxu0
  %v71 = vpop.f32.mrf.mxu0
  %v72 = vadd.f32 %v24, %v71
  %v73 = vpop.f32.mrf.mxu0
  %74 = vdwg.mxu0
  %vm75 = vcmask 261120
  %76 = vst.msk [vmem:[%s3] sm:$0xff] %vm75, %v69
  %vm77 = vcmask 259072
  %78 = vst.msk [vmem:[%s3 + $0x8] sm:$0x3f] %vm77, %v72
  // Predicated region
  $region14: #{autoregressive_diffusion_forward.8} parent=0 // pred_check
    _
  $region15: #{autoregressive_diffusion_forward.8} parent=0 // pred_check_branch
    %80 = sbr.rel (0) target = $region17
  $region16: #{autoregressive_diffusion_forward.8} parent=0 // pred_region
    _
  $region17: #{autoregressive_diffusion_forward.8} parent=0 // pred_fallthru
    _
  // Predicated region
  $region18: #{autoregressive_diffusion_forward.8} parent=0 // pred_check
    _
  $region19: #{autoregressive_diffusion_forward.8} parent=0 // pred_check_branch
    %82 = sbr.rel (0) target = $region21
  $region20: #{autoregressive_diffusion_forward.8} parent=0 // pred_region
    _
  $region21: #{autoregressive_diffusion_forward.8} parent=0 // pred_fallthru
    _

// kernel: autoregressive_diffusion_forward.10
$region0: #{autoregressive_diffusion_forward.10}
  #allocation0 [shape = 'u32[]', space=smem, size = 0x4, offset = 0x4, fixed_abs, tag = 'smem constant byte address 0x4 - core index']
  #allocation1 [shape = 'u32[144,128]{1,0:T(1,128)}', space=vmem, size = 0x12000, scoped, tag = 'internal scratch']
  %s0 = inlined_call_operand.vmem [shape: f32[16,32], index: 0, kind: input, shape index: {}]
  %s1 = inlined_call_operand.vmem [shape: bf16[32,128], index: 1, kind: input, shape index: {}]
  %s2 = inlined_call_operand.hbm [shape: f32[1,128], index: 2, kind: input, shape index: {}]
  %s3 = inlined_call_operand.vmem [shape: bf16[128,32], index: 3, kind: input, shape index: {}]
  %s4 = inlined_call_operand.hbm [shape: f32[1,32], index: 4, kind: input, shape index: {}]
  %s5 = inlined_call_operand.vmem [shape: f32[16,32], index: 5, kind: output, shape index: {}]
  %s6 = sld [smem:[#allocation0]]
  $region38: #{autoregressive_diffusion_forward.10} parent=0
    _
  %s8 = ssub.s32 1, %s6
  %s9 = scalar_select 0, %s8, %s6
  $region1: #{autoregressive_diffusion_forward.10} parent=0
    #allocation2 [shape = 'u8[512]{0}', space=vmem, size = 0x400, scoped, tag = 'input window, operand 2, single buffered']
    #allocation3 [shape = 's32[1]{0}', space=sflag, size = 0x4, scoped, tag = 'scoped memory for autoregressive_diffusion_forward.10']
    #allocation4 [shape = 'u8[512]{0}', space=vmem, size = 0x400, scoped, tag = 'input window, operand 4, single buffered']
    #allocation5 [shape = 's32[1]{0}', space=sflag, size = 0x4, scoped, tag = 'scoped memory for autoregressive_diffusion_forward.10']
    %10 = vsyncpa [#allocation3], 0
    %11 = vsyncpa [#allocation5], 0
    // Predicated region
    $region2: #{autoregressive_diffusion_forward.10} parent=1 // pred_check
      _
    $region3: #{autoregressive_diffusion_forward.10} parent=1 // pred_check_branch
      %13 = sbr.rel (0) target = $region5
    $region4: #{autoregressive_diffusion_forward.10} parent=1 // pred_region
      _
    $region5: #{autoregressive_diffusion_forward.10} parent=1 // pred_fallthru
      _
    // Predicated region
    $region6: #{autoregressive_diffusion_forward.10} parent=1 // pred_check
      _
    $region7: #{autoregressive_diffusion_forward.10} parent=1 // pred_check_branch
      %15 = sbr.rel (0) target = $region9
    $region8: #{autoregressive_diffusion_forward.10} parent=1 // pred_region
      _
    $region9: #{autoregressive_diffusion_forward.10} parent=1 // pred_fallthru
      _
    // Predicated region
    $region10: #{autoregressive_diffusion_forward.10} parent=1 // pred_check
      _
    $region11: #{autoregressive_diffusion_forward.10} parent=1 // pred_check_branch
      %17 = sbr.rel (0) target = $region13
    $region12: #{autoregressive_diffusion_forward.10} parent=1 // pred_region
      %s19 = ssub.s32 16, 16
      %20 = vsyncadd [#allocation3], %s19
      %s22 = sshll.u32 [#allocation2], 4
      %s23 = int_to_ptr.vmem [resolvable:$true] %s22
      %25 = dma.hbm_to_vmem [thread:$0]  %s2, 16, %s23, [#allocation3]
    $region13: #{autoregressive_diffusion_forward.10} parent=1 // pred_fallthru
      _
    // Predicated region
    $region14: #{autoregressive_diffusion_forward.10} parent=1 // pred_check
      _
    $region15: #{autoregressive_diffusion_forward.10} parent=1 // pred_check_branch
      %27 = sbr.rel (0) target = $region17
    $region16: #{autoregressive_diffusion_forward.10} parent=1 // pred_region
      _
    $region17: #{autoregressive_diffusion_forward.10} parent=1 // pred_fallthru
      _
    // Predicated region
    $region18: #{autoregressive_diffusion_forward.10} parent=1 // pred_check
      _
    $region19: #{autoregressive_diffusion_forward.10} parent=1 // pred_check_branch
      %29 = sbr.rel (0) target = $region21
    $region20: #{autoregressive_diffusion_forward.10} parent=1 // pred_region
      %s31 = ssub.s32 16, 16
      %32 = vsyncadd [#allocation5], %s31
      %s34 = sshll.u32 [#allocation4], 4
      %s35 = int_to_ptr.vmem [resolvable:$true] %s34
      %37 = dma.hbm_to_vmem [thread:$0]  %s4, 16, %s35, [#allocation5]
    $region21: #{autoregressive_diffusion_forward.10} parent=1 // pred_fallthru
      _
    // Predicated region
    $region22: #{autoregressive_diffusion_forward.10} parent=1 // pred_check
      _
    $region23: #{autoregressive_diffusion_forward.10} parent=1 // pred_check_branch
      %39 = sbr.rel (0) target = $region25
    $region24: #{autoregressive_diffusion_forward.10} parent=1 // pred_region
      %40 = dma.done [#allocation3], 16
    $region25: #{autoregressive_diffusion_forward.10} parent=1 // pred_fallthru
      _
    // Predicated region
    $region26: #{autoregressive_diffusion_forward.10} parent=1 // pred_check
      _
    $region27: #{autoregressive_diffusion_forward.10} parent=1 // pred_check_branch
      %42 = sbr.rel (0) target = $region29
    $region28: #{autoregressive_diffusion_forward.10} parent=1 // pred_region
      %43 = dma.done [#allocation5], 16
    $region29: #{autoregressive_diffusion_forward.10} parent=1 // pred_fallthru
      _
    %v45 = vld [vmem:[%s0] sm:$0xff]
    %v46 = vld [vmem:[%s0 + $0x8] sm:$0xff]
    %vm47 = vcmask 261120
    %v48 = vsel %vm47, %v45, 0.0
    %49 = vadd.xlane.f32.xlu0 %v48
    %v50 = vpop.xlane.xlu0 %49
    %v51 = vsel %vm47, %v46, 0.0
    %52 = vadd.xlane.f32.xlu0 %v51
    %v53 = vpop.xlane.xlu0 %52
    %v54 = vrcp.pop 32.0
    %v55 = vmul.f32 %v50, %v54
    %v56 = vmul.f32 %v53, %v54
    %v57 = vsub.f32 %v45, %v55
    %v58 = vsub.f32 %v46, %v56
    %v59 = vmul.f32 %v57, %v57
    %v60 = vmul.f32 %v58, %v58
    %v61 = vsel %vm47, %v59, 0.0
    %62 = vadd.xlane.f32.xlu0 %v61
    %v63 = vpop.xlane.xlu0 %62
    %v64 = vsel %vm47, %v60, 0.0
    %65 = vadd.xlane.f32.xlu0 %v64
    %v66 = vpop.xlane.xlu0 %65
    %v67 = vmul.f32 %v63, %v54
    %v68 = vmul.f32 %v66, %v54
    %v69 = vadd.f32 %v67, 1e-05
    %v70 = vadd.f32 %v68, 1e-05
    %v71 = vrsqrt.pop %v69
    %v72 = vrsqrt.pop %v70
    %v73 = vmul.f32 %v57, %v71
    %v74 = vmul.f32 %v58, %v72
    %v75 = vpack.c.bf16 %v74, %v73
    %v76 = vld [vmem:[%s1] sm:$0xf]
    %v77 = vld [vmem:[%s1 + $0x4] sm:$0xf]
    %v78 = vld [vmem:[%s1 + $0x8] sm:$0xf]
    %v79 = vld [vmem:[%s1 + $0xc] sm:$0xf]
    %v80 = vld [vmem:[#allocation2] sm:$0x1]
    %v82 = vlaneseq
    %v83 = vshrl.u32 %v82, 7
    %v84 = vsub.s32 0, %v83
    %v85 = vrot.slane %v80, %v84
    %v91 = vunpack.c.l.b16 %v76
    %v92 = vunpack.c.l.b16 %v77
    %v93 = vunpack.c.l.b16 %v78
    %v94 = vunpack.c.l.b16 %v79
    %v95 = vpack.c.b16 %v92, %v91
    %v96 = vpack.c.b16 %v94, %v93
    %v100 = vsel %vm47, %v75, 0
    %102 = vmatprep.subr.bf16.mxu0 0
    %103 = vmatpush1.bf16.msra.mxu0 0
    %104 = vmatprep.subr.bf16.mxu0 0
    %105 = vmatpush1.bf16.msra.mxu0 0
    %106 = vmatprep.subr.bf16.mxu0 0
    %107 = vmatpush1.bf16.msra.mxu0 0
    %108 = vmatprep.subr.bf16.mxu0 0
    %109 = vmatpush1.bf16.msra.mxu0 0
    %110 = vmatprep.subr.bf16.mxu0 0
    %111 = vmatpush1.bf16.msra.mxu0 0
    %112 = vmatprep.subr.bf16.mxu0 0
    %113 = vmatpush1.bf16.msra.mxu0 0
    %114 = vmatprep.subr.bf16.mxu0 0
    %115 = vmatpush1.bf16.msra.mxu0 %v96
    %116 = vmatprep.subr.bf16.mxu0 0
    %117 = vmatpush1.bf16.msra.mxu0 %v95
    %118 = vmatprep.subr.bf16.mxu0 0
    %119 = vmatpush2.bf16.msra.mxu0 0
    %120 = vmatprep.subr.bf16.mxu0 0
    %121 = vmatpush2.bf16.msra.mxu0 0
    %122 = vmatprep.subr.bf16.mxu0 0
    %123 = vmatpush2.bf16.msra.mxu0 0
    %124 = vmatprep.subr.bf16.mxu0 0
    %125 = vmatpush2.bf16.msra.mxu0 0
    %126 = vmatprep.subr.bf16.mxu0 0
    %127 = vmatpush2.bf16.msra.mxu0 0
    %128 = vmatprep.subr.bf16.mxu0 0
    %129 = vmatpush2.bf16.msra.mxu0 0
    %130 = vmatprep.subr.bf16.mxu0 0
    %131 = vmatpush2.bf16.msra.mxu0 0
    %132 = vmatprep.subr.bf16.mxu0 0
    %133 = vmatpush2.bf16.msra.mxu0 0
    %134 = vmatprep.mubr.bf16.mxu0 0
    %135 = vmatmul.mubr.bf16.gmra.mxu0 %v100
    %v136 = vpop.f32.mrf.mxu0
    %v137 = vadd.f32 %v85, %v136
    %v138 = vpop.f32.mrf.mxu0
    %v139 = vpop.f32.mrf.mxu0
    %v140 = vadd.f32 %v85, %v139
    %v141 = vpop.f32.mrf.mxu0
    %142 = vdwg.mxu0
    %v143 = vmul.f32 %v137, %v137
    %v144 = vmul.f32 %v140, %v140
    %v145 = vmul.f32 %v137, %v143
    %v146 = vmul.f32 %v140, %v144
    %v147 = vmul.f32 %v145, 0.044715
    %v148 = vmul.f32 %v146, 0.044715
    %v149 = vadd.f32 %v137, %v147
    %v150 = vadd.f32 %v140, %v148
    %v151 = vmul.f32 %v149, 0.7978846
    %v152 = vmul.f32 %v150, 0.7978846
    %v153 = vtanh.pop %v151
    %v154 = vtanh.pop %v152
    %v155 = vadd.f32 %v153, 1.0
    %v156 = vadd.f32 %v154, 1.0
    %v157 = vmul.f32 %v155, 0.5
    %v158 = vmul.f32 %v156, 0.5
    %v159 = vmul.f32 %v137, %v157
    %v160 = vmul.f32 %v140, %v158
    %v161 = vpack.c.bf16 %v160, %v159
    %v162 = vld [vmem:[%s3] sm:$0xf]
    %v163 = vld [vmem:[%s3 + $0x4] sm:$0xf]
    %v164 = vld [vmem:[%s3 + $0x8] sm:$0xf]
    %v165 = vld [vmem:[%s3 + $0xc] sm:$0xf]
    %v166 = vld [vmem:[%s3 + $0x10] sm:$0xf]
    %v167 = vld [vmem:[%s3 + $0x14] sm:$0xf]
    %v168 = vld [vmem:[%s3 + $0x18] sm:$0xf]
    %v169 = vld [vmem:[%s3 + $0x1c] sm:$0xf]
    %v170 = vld [vmem:[%s3 + $0x20] sm:$0xf]
    %v171 = vld [vmem:[%s3 + $0x24] sm:$0xf]
    %v172 = vld [vmem:[%s3 + $0x28] sm:$0xf]
    %v173 = vld [vmem:[%s3 + $0x2c] sm:$0xf]
    %v174 = vld [vmem:[%s3 + $0x30] sm:$0xf]
    %v175 = vld [vmem:[%s3 + $0x34] sm:$0xf]
    %v176 = vld [vmem:[%s3 + $0x38] sm:$0xf]
    %v177 = vld [vmem:[%s3 + $0x3c] sm:$0xf]
    %v178 = vld [vmem:[#allocation4] sm:$0x1]
    %v180 = vlaneseq
    %v181 = vshrl.u32 %v180, 7
    %v182 = vsub.s32 0, %v181
    %v183 = vrot.slane %v178, %v182
    %v201 = vunpack.c.l.b16 %v162
    %v202 = vunpack.c.l.b16 %v163
    %v203 = vunpack.c.l.b16 %v164
    %v204 = vunpack.c.l.b16 %v165
    %v205 = vunpack.c.l.b16 %v166
    %v206 = vunpack.c.l.b16 %v167
    %v207 = vunpack.c.l.b16 %v168
    %v208 = vunpack.c.l.b16 %v169
    %v209 = vunpack.c.l.b16 %v170
    %v210 = vunpack.c.l.b16 %v171
    %v211 = vunpack.c.l.b16 %v172
    %v212 = vunpack.c.l.b16 %v173
    %v213 = vunpack.c.l.b16 %v174
    %v214 = vunpack.c.l.b16 %v175
    %v215 = vunpack.c.l.b16 %v176
    %v216 = vunpack.c.l.b16 %v177
    %v217 = vpack.c.b16 %v202, %v201
    %v218 = vpack.c.b16 %v204, %v203
    %v219 = vpack.c.b16 %v206, %v205
    %v220 = vpack.c.b16 %v208, %v207
    %v221 = vpack.c.b16 %v210, %v209
    %v222 = vpack.c.b16 %v212, %v211
    %v223 = vpack.c.b16 %v214, %v213
    %v224 = vpack.c.b16 %v216, %v215
    %233 = vmatprep.subr.bf16.mxu0 0
    %234 = vmatpush1.bf16.msra.mxu0 %v224
    %235 = vmatprep.subr.bf16.mxu0 0
    %236 = vmatpush1.bf16.msra.mxu0 %v223
    %237 = vmatprep.subr.bf16.mxu0 0
    %238 = vmatpush1.bf16.msra.mxu0 %v222
    %239 = vmatprep.subr.bf16.mxu0 0
    %240 = vmatpush1.bf16.msra.mxu0 %v221
    %241 = vmatprep.subr.bf16.mxu0 0
    %242 = vmatpush1.bf16.msra.mxu0 %v220
    %243 = vmatprep.subr.bf16.mxu0 0
    %244 = vmatpush1.bf16.msra.mxu0 %v219
    %245 = vmatprep.subr.bf16.mxu0 0
    %246 = vmatpush1.bf16.msra.mxu0 %v218
    %247 = vmatprep.subr.bf16.mxu0 0
    %248 = vmatpush1.bf16.msra.mxu0 %v217
    %249 = vmatprep.subr.bf16.mxu0 0
    %250 = vmatpush2.bf16.msra.mxu0 0
    %251 = vmatprep.subr.bf16.mxu0 0
    %252 = vmatpush2.bf16.msra.mxu0 0
    %253 = vmatprep.subr.bf16.mxu0 0
    %254 = vmatpush2.bf16.msra.mxu0 0
    %255 = vmatprep.subr.bf16.mxu0 0
    %256 = vmatpush2.bf16.msra.mxu0 0
    %257 = vmatprep.subr.bf16.mxu0 0
    %258 = vmatpush2.bf16.msra.mxu0 0
    %259 = vmatprep.subr.bf16.mxu0 0
    %260 = vmatpush2.bf16.msra.mxu0 0
    %261 = vmatprep.subr.bf16.mxu0 0
    %262 = vmatpush2.bf16.msra.mxu0 0
    %263 = vmatprep.subr.bf16.mxu0 0
    %264 = vmatpush2.bf16.msra.mxu0 0
    %265 = vmatprep.mubr.bf16.mxu0 0
    %266 = vmatmul.mubr.bf16.gmra.mxu0 %v161
    %v267 = vpop.f32.mrf.mxu0
    %v268 = vadd.f32 %v183, %v267
    %v269 = vpop.f32.mrf.mxu0
    %v270 = vpop.f32.mrf.mxu0
    %v271 = vadd.f32 %v183, %v270
    %v272 = vpop.f32.mrf.mxu0
    %273 = vdwg.mxu0
    %v274 = vadd.f32 %v45, %v268
    %v275 = vadd.f32 %v46, %v271
    %276 = vst.msk [vmem:[%s5] sm:$0xff] %vm47, %v274
    %277 = vst.msk [vmem:[%s5 + $0x8] sm:$0xff] %vm47, %v275
    // Predicated region
    $region30: #{autoregressive_diffusion_forward.10} parent=1 // pred_check
      _
    $region31: #{autoregressive_diffusion_forward.10} parent=1 // pred_check_branch
      %279 = sbr.rel (0) target = $region33
    $region32: #{autoregressive_diffusion_forward.10} parent=1 // pred_region
      _
    $region33: #{autoregressive_diffusion_forward.10} parent=1 // pred_fallthru
      _
    // Predicated region
    $region34: #{autoregressive_diffusion_forward.10} parent=1 // pred_check
      _
    $region35: #{autoregressive_diffusion_forward.10} parent=1 // pred_check_branch
      %281 = sbr.rel (0) target = $region37
    $region36: #{autoregressive_diffusion_forward.10} parent=1 // pred_region
      _
    $region37: #{autoregressive_diffusion_forward.10} parent=1 // pred_fallthru
      _
    %282 = vsyncpa [#allocation3], 1
    %283 = vsyncpa [#allocation5], 1

// kernel: autoregressive_diffusion_forward.9
$region0: #{autoregressive_diffusion_forward.9}
  #allocation0 [shape = 'u32[]', space=smem, size = 0x4, offset = 0x4, fixed_abs, tag = 'smem constant byte address 0x4 - core index']
  #allocation1 [shape = 'u32[144,128]{1,0:T(1,128)}', space=vmem, size = 0x12000, scoped, tag = 'internal scratch']
  %s0 = inlined_call_operand.vmem [shape: f32[2,8,32], index: 0, kind: input, shape index: {}]
  %s1 = inlined_call_operand.vmem [shape: bf16[32,96], index: 1, kind: input, shape index: {}]
  %s2 = inlined_call_operand.vmem [shape: bf16[32,32], index: 2, kind: input, shape index: {}]
  %s3 = inlined_call_operand.vmem [shape: f32[2,8,32], index: 3, kind: output, shape index: {}]
  %s4 = sld [smem:[#allocation0]]
  $region45: #{autoregressive_diffusion_forward.9} parent=0
    _
  %s6 = ssub.s32 1, %s4
  %s7 = scalar_select 0, %s6, %s4
  loop: start=0, step=1, limit=4
  $region2: #{autoregressive_diffusion_forward.9} parent=0 // loop_pre_header
    _
  $region3: #{autoregressive_diffusion_forward.9} parent=0 // loop_header
    %s9 = sphi 0, %s13
    %p10 = scmp.ge.s32.totalorder %s9, 4
    %s19 = sphi 0, %s21
    %s22 = sphi 0, %s19
    %s23 = sphi 0, %s22
    %s39 = sphi 0, %s23
    %s43 = sphi 0, %s43
    %s45 = sphi 0, %s43
    %s46 = sphi 0, %s45
    %s60 = sphi 0, %s46
    %s64 = sphi 0, %s64
    %s66 = sphi 0, %s64
    %s67 = sphi 0, %s66
    %s81 = sphi 0, %s67
    %s87 = sphi 0, %s89
    %s90 = sphi 0, %s87
    %s91 = sphi 0, %s90
    %s107 = sphi 0, %s91
  $region4: #{autoregressive_diffusion_forward.9} parent=0 // loop_header_branch
    %12 = sbr.rel (%p10) target = $region8
  $region5: #{autoregressive_diffusion_forward.9} parent=0 // loop_body
    %s14 = ssub.s32 %s9, 1
    %s15 = ssub.s32 %s9, 2
    %s16 = sadd.s32 %s9, 1
    %s17 = ssub.s32 %s9, %s16
    %p18 = scmp.eq.s32.totalorder %s17, 0
    %s20 = sadd.s32 %s19, 1
    %s21 = scalar_select %p18, %s19, %s20
    %p24 = pneg %p18
    %p25 = scmp.eq.s32.totalorder %s9, 1
    %p26 = por %p24, %p25
    %p27 = scmp.ne.s32.totalorder %s19, %s22
    %p28 = scmp.eq.s32.totalorder %s9, 0
    %p29 = por %p27, %p28
    %p30 = scmp.ne.s32.totalorder %s19, %s22
    %p31 = scmp.eq.s32.totalorder %s14, 1
    %p32 = por %p30, %p31
    %p33 = scmp.ne.s32.totalorder %s22, %s23
    %p34 = scmp.eq.s32.totalorder %s14, 0
    %p35 = por %p33, %p34
    %p36 = scmp.ne.s32.totalorder %s22, %s23
    %p37 = scmp.eq.s32.totalorder %s15, 1
    %p38 = por %p36, %p37
    %p40 = scmp.ne.s32.totalorder %s23, %s39
    %p41 = scmp.eq.s32.totalorder %s15, 0
    %p42 = por %p40, %p41
    %s44 = sadd.s32 %s43, 1
    %p47 = scmp.eq.s32.totalorder %s9, 1
    %p48 = scmp.ne.s32.totalorder %s43, %s45
    %p49 = scmp.eq.s32.totalorder %s9, 0
    %p50 = por %p48, %p49
    %p51 = scmp.ne.s32.totalorder %s43, %s45
    %p52 = scmp.eq.s32.totalorder %s14, 1
    %p53 = por %p51, %p52
    %p54 = scmp.ne.s32.totalorder %s45, %s46
    %p55 = scmp.eq.s32.totalorder %s14, 0
    %p56 = por %p54, %p55
    %p57 = scmp.ne.s32.totalorder %s45, %s46
    %p58 = scmp.eq.s32.totalorder %s15, 1
    %p59 = por %p57, %p58
    %p61 = scmp.ne.s32.totalorder %s46, %s60
    %p62 = scmp.eq.s32.totalorder %s15, 0
    %p63 = por %p61, %p62
    %s65 = sadd.s32 %s64, 1
    %p68 = scmp.eq.s32.totalorder %s9, 1
    %p69 = scmp.ne.s32.totalorder %s64, %s66
    %p70 = scmp.eq.s32.totalorder %s9, 0
    %p71 = por %p69, %p70
    %p72 = scmp.ne.s32.totalorder %s64, %s66
    %p73 = scmp.eq.s32.totalorder %s14, 1
    %p74 = por %p72, %p73
    %p75 = scmp.ne.s32.totalorder %s66, %s67
    %p76 = scmp.eq.s32.totalorder %s14, 0
    %p77 = por %p75, %p76
    %p78 = scmp.ne.s32.totalorder %s66, %s67
    %p79 = scmp.eq.s32.totalorder %s15, 1
    %p80 = por %p78, %p79
    %p82 = scmp.ne.s32.totalorder %s67, %s81
    %p83 = scmp.eq.s32.totalorder %s15, 0
    %p84 = por %p82, %p83
    %s85 = ssub.s32 %s9, %s16
    %p86 = scmp.eq.s32.totalorder %s85, 0
    %s88 = sadd.s32 %s87, 1
    %s89 = scalar_select %p86, %s87, %s88
    %p92 = pneg %p86
    %p93 = scmp.eq.s32.totalorder %s9, 1
    %p94 = por %p92, %p93
    %p95 = scmp.ne.s32.totalorder %s87, %s90
    %p96 = scmp.eq.s32.totalorder %s9, 0
    %p97 = por %p95, %p96
    %p98 = scmp.ne.s32.totalorder %s87, %s90
    %p99 = scmp.eq.s32.totalorder %s14, 1
    %p100 = por %p98, %p99
    %p101 = scmp.ne.s32.totalorder %s90, %s91
    %p102 = scmp.eq.s32.totalorder %s14, 0
    %p103 = por %p101, %p102
    %p104 = scmp.ne.s32.totalorder %s90, %s91
    %p105 = scmp.eq.s32.totalorder %s15, 1
    %p106 = por %p104, %p105
    %p108 = scmp.ne.s32.totalorder %s91, %s107
    %p109 = scmp.eq.s32.totalorder %s15, 0
    %p110 = por %p108, %p109
    %p111 = scmp.le.s32.totalorder 1, %s9
    %p112 = scmp.lt.s32.totalorder %s9, 3
    %p113 = pnand %p111, %p112
    %p114 = pneg %p113
    // Predicated region
    $region9: #{autoregressive_diffusion_forward.9} parent=5 // pred_check
      _
    $region10: #{autoregressive_diffusion_forward.9} parent=5 // pred_check_branch
      %116 = sbr.rel (%p113) target = $region12
    $region11: #{autoregressive_diffusion_forward.9} parent=5 // pred_region
      %s117 = ssub.s32 %s9, 1
      // Predicated region
      $region13: #{autoregressive_diffusion_forward.9} parent=11 // pred_check
        %p118 = pneg %p56
      $region14: #{autoregressive_diffusion_forward.9} parent=11 // pred_check_branch
        %120 = sbr.rel (%p118) target = $region16
      $region15: #{autoregressive_diffusion_forward.9} parent=11 // pred_region
        _
      $region16: #{autoregressive_diffusion_forward.9} parent=11 // pred_fallthru
        _
      // Predicated region
      $region17: #{autoregressive_diffusion_forward.9} parent=11 // pred_check
        %p121 = pneg %p77
      $region18: #{autoregressive_diffusion_forward.9} parent=11 // pred_check_branch
        %123 = sbr.rel (%p121) target = $region20
      $region19: #{autoregressive_diffusion_forward.9} parent=11 // pred_region
        _
      $region20: #{autoregressive_diffusion_forward.9} parent=11 // pred_fallthru
        _
    $region12: #{autoregressive_diffusion_forward.9} parent=5 // pred_fallthru
      _
    %p124 = scmp.lt.s32.totalorder %s9, 2
    // Predicated region
    $region21: #{autoregressive_diffusion_forward.9} parent=5 // pred_check
      %p125 = pneg %p124
    $region22: #{autoregressive_diffusion_forward.9} parent=5 // pred_check_branch
      %127 = sbr.rel (%p125) target = $region24
    $region23: #{autoregressive_diffusion_forward.9} parent=5 // pred_region
      // Predicated region
      $region25: #{autoregressive_diffusion_forward.9} parent=23 // pred_check
        %p128 = pneg %p29
      $region26: #{autoregressive_diffusion_forward.9} parent=23 // pred_check_branch
        %130 = sbr.rel (%p128) target = $region28
      $region27: #{autoregressive_diffusion_forward.9} parent=23 // pred_region
        %p131 = scmp.lt.s32.totalorder %s9, 1
        %s132 = scalar_select %p131, %s9, 1
        %s133 = smul.addr %s132, 8
        %s134 = scalar_lea.vmem %s0, %s133
      $region28: #{autoregressive_diffusion_forward.9} parent=23 // pred_fallthru
        _
    $region24: #{autoregressive_diffusion_forward.9} parent=5 // pred_fallthru
      _
    %p135 = scmp.le.s32.totalorder 1, %s9
    %p136 = scmp.lt.s32.totalorder %s9, 3
    %p137 = pnand %p135, %p136
    %p138 = pneg %p137
    // Predicated region
    $region29: #{autoregressive_diffusion_forward.9} parent=5 // pred_check
      _
    $region30: #{autoregressive_diffusion_forward.9} parent=5 // pred_check_branch
      %140 = sbr.rel (%p137) target = $region32
    $region31: #{autoregressive_diffusion_forward.9} parent=5 // pred_region
      %s141 = ssub.s32 %s9, 1
      %p142 = scmp.lt.s32.totalorder %s14, 1
      %s143 = scalar_select %p142, %s14, 1
      %s144 = smul.addr %s143, 8
      %s145 = scalar_lea.vmem %s0, %s144
      %p146 = pneg %p35
      %p147 = pneg %p32
      %p148 = pneg %p56
      %p149 = pneg %p53
      %p150 = pneg %p77
      %p151 = pneg %p74
      %p152 = pneg %p103
      %p153 = pneg %p100
      %p154 = scmp.lt.s32.totalorder %s14, 1
      %s155 = scalar_select %p154, %s14, 1
      %s156 = smul.addr %s155, 8
      %s157 = scalar_lea.vmem %s3, %s156
      %p158 = scmp.lt.s32.totalorder %s14, 1
      %s159 = scalar_select %p158, %s14, 1
      %s160 = smul.addr %s159, 8
      %s161 = scalar_lea.vmem %s0, %s160
      %p162 = scmp.lt.s32.totalorder %s14, 1
      %s163 = scalar_select %p162, %s14, 1
      %s164 = smul.addr %s163, 8
      %s165 = scalar_lea.vmem %s3, %s164
      %v167 = vld [vmem:[%s161] sm:$0xff]
      %vm168 = vcmask 261120
      %v169 = vsel %vm168, %v167, 0.0
      %170 = vadd.xlane.f32.xlu0 %v169
      %v171 = vpop.xlane.xlu0 %170
      %v172 = vrcp.pop 32.0
      %v173 = vmul.f32 %v171, %v172
      %v174 = vsub.f32 %v167, %v173
      %v175 = vmul.f32 %v174, %v174
      %v176 = vsel %vm168, %v175, 0.0
      %177 = vadd.xlane.f32.xlu0 %v176
      %v178 = vpop.xlane.xlu0 %177
      %v179 = vmul.f32 %v178, %v172
      %v180 = vadd.f32 %v179, 1e-05
      %v181 = vrsqrt.pop %v180
      %v182 = vmul.f32 %v174, %v181
      %v183 = vpack.c.bf16 %v182, %v182
      %v184 = vld [vmem:[%s1] sm:$0xf]
      %v185 = vld [vmem:[%s1 + $0x4] sm:$0xf]
      %v186 = vld [vmem:[%s1 + $0x8] sm:$0xf]
      %v187 = vld [vmem:[%s1 + $0xc] sm:$0xf]
      %v192 = vunpack.c.l.b16 %v184
      %v193 = vunpack.c.l.b16 %v185
      %v194 = vunpack.c.l.b16 %v186
      %v195 = vunpack.c.l.b16 %v187
      %v196 = vpack.c.b16 %v193, %v192
      %v197 = vpack.c.b16 %v195, %v194
      %v201 = vsel %vm168, %v183, 0
      %203 = vmatprep.subr.bf16.mxu0 0
      %204 = vmatpush1.bf16.msra.mxu0 0
      %205 = vmatprep.subr.bf16.mxu0 0
      %206 = vmatpush1.bf16.msra.mxu0 0
      %207 = vmatprep.subr.bf16.mxu0 0
      %208 = vmatpush1.bf16.msra.mxu0 0
      %209 = vmatprep.subr.bf16.mxu0 0
      %210 = vmatpush1.bf16.msra.mxu0 0
      %211 = vmatprep.subr.bf16.mxu0 0
      %212 = vmatpush1.bf16.msra.mxu0 0
      %213 = vmatprep.subr.bf16.mxu0 0
      %214 = vmatpush1.bf16.msra.mxu0 0
      %215 = vmatprep.subr.bf16.mxu0 0
      %216 = vmatpush1.bf16.msra.mxu0 %v197
      %217 = vmatprep.subr.bf16.mxu0 0
      %218 = vmatpush1.bf16.msra.mxu0 %v196
      %219 = vmatprep.subr.bf16.mxu0 0
      %220 = vmatpush2.bf16.msra.mxu0 0
      %221 = vmatprep.subr.bf16.mxu0 0
      %222 = vmatpush2.bf16.msra.mxu0 0
      %223 = vmatprep.subr.bf16.mxu0 0
      %224 = vmatpush2.bf16.msra.mxu0 0
      %225 = vmatprep.subr.bf16.mxu0 0
      %226 = vmatpush2.bf16.msra.mxu0 0
      %227 = vmatprep.subr.bf16.mxu0 0
      %228 = vmatpush2.bf16.msra.mxu0 0
      %229 = vmatprep.subr.bf16.mxu0 0
      %230 = vmatpush2.bf16.msra.mxu0 0
      %231 = vmatprep.subr.bf16.mxu0 0
      %232 = vmatpush2.bf16.msra.mxu0 0
      %233 = vmatprep.subr.bf16.mxu0 0
      %234 = vmatpush2.bf16.msra.mxu0 0
      %235 = vmatprep.mubr.bf16.mxu0 0
      %236 = vmatmul.mubr.bf16.gmra.mxu0 %v201
      %v237 = vpop.f32.mrf.mxu0
      %v238 = vadd.f32 0.0, %v237
      %v239 = vpop.f32.mrf.mxu0
      %v240 = vpop.f32.mrf.mxu0
      %v241 = vpop.f32.mrf.mxu0
      %242 = vdwg.mxu0
      %v243 = vld [vmem:[%s2] sm:$0xf]
      %v244 = vld [vmem:[%s2 + $0x4] sm:$0xf]
      %v245 = vld [vmem:[%s2 + $0x8] sm:$0xf]
      %v246 = vld [vmem:[%s2 + $0xc] sm:$0xf]
      %v247 = vlaneseq
      %v248 = vshrl.u32 %v247, 7
      %v249 = vlaneseq
      %v250 = vand.u32 %v249, 127
      %vm251 = vcmp.le.s32.totalorder %v250, %v248
      %v252 = vpack.c.bf16 %v238, %v238
      %254 = vrot.lane.b32.xlu0 %v252, 96
      %v255 = vpop.permute.xlu0 %254
      %vm256 = vcmask 130048
      %v258 = vsel %vm256, %v252, 0
      %v261 = vsel %vm256, %v255, 0
      %263 = vmatprep.subr.bf16.mxu0 0
      %264 = vmatpush1.bf16.xpose.msra.mxu0 0
      %265 = vmatprep.subr.bf16.mxu0 0
      %266 = vmatpush1.bf16.xpose.msra.mxu0 0
      %267 = vmatprep.subr.bf16.mxu0 0
      %268 = vmatpush1.bf16.xpose.msra.mxu0 0
      %269 = vmatprep.subr.bf16.mxu0 0
      %270 = vmatpush1.bf16.xpose.msra.mxu0 0
      %271 = vmatprep.subr.bf16.mxu0 0
      %272 = vmatpush1.bf16.xpose.msra.mxu0 0
      %273 = vmatprep.subr.bf16.mxu0 0
      %274 = vmatpush1.bf16.xpose.msra.mxu0 0
      %275 = vmatprep.subr.bf16.mxu0 0
      %276 = vmatpush1.bf16.xpose.msra.mxu0 0
      %277 = vmatprep.subr.bf16.mxu0 0
      %278 = vmatpush1.bf16.xpose.msra.mxu0 %v261
      %279 = vmatprep.subr.bf16.mxu0 0
      %280 = vmatpush2.bf16.xpose.msra.mxu0 0
      %281 = vmatprep.subr.bf16.mxu0 0
      %282 = vmatpush2.bf16.xpose.msra.mxu0 0
      %283 = vmatprep.subr.bf16.mxu0 0
      %284 = vmatpush2.bf16.xpose.msra.mxu0 0
      %285 = vmatprep.subr.bf16.mxu0 0
      %286 = vmatpush2.bf16.xpose.msra.mxu0 0
      %287 = vmatprep.subr.bf16.mxu0 0
      %288 = vmatpush2.bf16.xpose.msra.mxu0 0
      %289 = vmatprep.subr.bf16.mxu0 0
      %290 = vmatpush2.bf16.xpose.msra.mxu0 0
      %291 = vmatprep.subr.bf16.mxu0 0
      %292 = vmatpush2.bf16.xpose.msra.mxu0 0
      %293 = vmatprep.subr.bf16.mxu0 0
      %294 = vmatpush2.bf16.xpose.msra.mxu0 0
      %295 = vmatprep.mubr.bf16.mxu0 0
      %296 = vmatmul.mubr.bf16.gmra.mxu0 %v258
      %v297 = vpop.f32.mrf.mxu0
      %v298 = vadd.f32 0.0, %v297
      %v299 = vpop.f32.mrf.mxu0
      %v300 = vpop.f32.mrf.mxu0
      %v301 = vpop.f32.mrf.mxu0
      %302 = vdwg.mxu0
      %v303 = vmul.f32 %v298, 0.25
      %v304 = vsel %vm251, %v303, -1e+30
      %vm305 = vcmask 64512
      %v306 = vsel %vm305, %v304, -inf
      %307 = vmax.xlane.f32.xlu0 %v306
      %v308 = vpop.xlane.xlu0 %307
      %v309 = vsub.f32 %v304, %v308
      %v310 = vmul.f32 %v309, 1.442695
      %v311 = vpow.pop %v310
      %v312 = vsel %vm305, %v311, 0.0
      %313 = vadd.xlane.f32.xlu0 %v312
      %v314 = vpop.xlane.xlu0 %313
      %v315 = vrcp.pop %v314
      %v316 = vmul.f32 %v311, %v315
      %v317 = vpack.c.bf16 %v316, %v316
      %318 = vrot.lane.b32.xlu0 %v252, 64
      %v319 = vpop.permute.xlu0 %318
      %v321 = vsel %vm305, %v317, 0
      %vm323 = vcmask 1043456
      %v325 = vsel %vm323, %v319, 0
      %327 = vmatprep.subr.bf16.mxu0 0
      %328 = vmatpush1.bf16.msra.mxu0 0
      %329 = vmatprep.subr.bf16.mxu0 0
      %330 = vmatpush1.bf16.msra.mxu0 0
      %331 = vmatprep.subr.bf16.mxu0 0
      %332 = vmatpush1.bf16.msra.mxu0 0
      %333 = vmatprep.subr.bf16.mxu0 0
      %334 = vmatpush1.bf16.msra.mxu0 0
      %335 = vmatprep.subr.bf16.mxu0 0
      %336 = vmatpush1.bf16.msra.mxu0 0
      %337 = vmatprep.subr.bf16.mxu0 0
      %338 = vmatpush1.bf16.msra.mxu0 0
      %339 = vmatprep.subr.bf16.mxu0 0
      %340 = vmatpush1.bf16.msra.mxu0 0
      %341 = vmatprep.subr.bf16.mxu0 0
      %342 = vmatpush1.bf16.msra.mxu0 %v325
      %343 = vmatprep.subr.bf16.mxu0 0
      %344 = vmatpush2.bf16.msra.mxu0 0
      %345 = vmatprep.subr.bf16.mxu0 0
      %346 = vmatpush2.bf16.msra.mxu0 0
      %347 = vmatprep.subr.bf16.mxu0 0
      %348 = vmatpush2.bf16.msra.mxu0 0
      %349 = vmatprep.subr.bf16.mxu0 0
      %350 = vmatpush2.bf16.msra.mxu0 0
      %351 = vmatprep.subr.bf16.mxu0 0
      %352 = vmatpush2.bf16.msra.mxu0 0
      %353 = vmatprep.subr.bf16.mxu0 0
      %354 = vmatpush2.bf16.msra.mxu0 0
      %355 = vmatprep.subr.bf16.mxu0 0
      %356 = vmatpush2.bf16.msra.mxu0 0
      %357 = vmatprep.subr.bf16.mxu0 0
      %358 = vmatpush2.bf16.msra.mxu0 0
      %359 = vmatprep.mubr.bf16.mxu0 0
      %360 = vmatmul.mubr.bf16.gmra.mxu0 %v321
      %v361 = vpop.f32.mrf.mxu0
      %v362 = vadd.f32 0.0, %v361
      %v363 = vpop.f32.mrf.mxu0
      %v364 = vpop.f32.mrf.mxu0
      %v365 = vpop.f32.mrf.mxu0
      %366 = vdwg.mxu0
      %v367 = vpack.c.bf16 %v362, %v362
      %368 = vrot.lane.b32.xlu0 %v252, 112
      %v369 = vpop.permute.xlu0 %368
      %370 = vrot.lane.b32.xlu0 %v252, 80
      %v371 = vpop.permute.xlu0 %370
      %v373 = vsel %vm256, %v369, 0
      %v376 = vsel %vm256, %v371, 0
      %378 = vmatprep.subr.bf16.mxu0 0
      %379 = vmatpush1.bf16.xpose.msra.mxu0 0
      %380 = vmatprep.subr.bf16.mxu0 0
      %381 = vmatpush1.bf16.xpose.msra.mxu0 0
      %382 = vmatprep.subr.bf16.mxu0 0
      %383 = vmatpush1.bf16.xpose.msra.mxu0 0
      %384 = vmatprep.subr.bf16.mxu0 0
      %385 = vmatpush1.bf16.xpose.msra.mxu0 0
      %386 = vmatprep.subr.bf16.mxu0 0
      %387 = vmatpush1.bf16.xpose.msra.mxu0 0
      %388 = vmatprep.subr.bf16.mxu0 0
      %389 = vmatpush1.bf16.xpose.msra.mxu0 0
      %390 = vmatprep.subr.bf16.mxu0 0
      %391 = vmatpush1.bf16.xpose.msra.mxu0 0
      %392 = vmatprep.subr.bf16.mxu0 0
      %393 = vmatpush1.bf16.xpose.msra.mxu0 %v376
      %394 = vmatprep.subr.bf16.mxu0 0
      %395 = vmatpush2.bf16.xpose.msra.mxu0 0
      %396 = vmatprep.subr.bf16.mxu0 0
      %397 = vmatpush2.bf16.xpose.msra.mxu0 0
      %398 = vmatprep.subr.bf16.mxu0 0
      %399 = vmatpush2.bf16.xpose.msra.mxu0 0
      %400 = vmatprep.subr.bf16.mxu0 0
      %401 = vmatpush2.bf16.xpose.msra.mxu0 0
      %402 = vmatprep.subr.bf16.mxu0 0
      %403 = vmatpush2.bf16.xpose.msra.mxu0 0
      %404 = vmatprep.subr.bf16.mxu0 0
      %405 = vmatpush2.bf16.xpose.msra.mxu0 0
      %406 = vmatprep.subr.bf16.mxu0 0
      %407 = vmatpush2.bf16.xpose.msra.mxu0 0
      %408 = vmatprep.subr.bf16.mxu0 0
      %409 = vmatpush2.bf16.xpose.msra.mxu0 0
      %410 = vmatprep.mubr.bf16.mxu0 0
      %411 = vmatmul.mubr.bf16.gmra.mxu0 %v373
      %v412 = vpop.f32.mrf.mxu0
      %v413 = vadd.f32 0.0, %v412
      %v414 = vpop.f32.mrf.mxu0
      %v415 = vpop.f32.mrf.mxu0
      %v416 = vpop.f32.mrf.mxu0
      %417 = vdwg.mxu0
      %v418 = vmul.f32 %v413, 0.25
      %v419 = vsel %vm251, %v418, -1e+30
      %v420 = vsel %vm305, %v419, -inf
      %421 = vmax.xlane.f32.xlu0 %v420
      %v422 = vpop.xlane.xlu0 %421
      %v423 = vsub.f32 %v419, %v422
      %v424 = vmul.f32 %v423, 1.442695
      %v425 = vpow.pop %v424
      %v426 = vsel %vm305, %v425, 0.0
      %427 = vadd.xlane.f32.xlu0 %v426
      %v428 = vpop.xlane.xlu0 %427
      %v429 = vrcp.pop %v428
      %v430 = vmul.f32 %v425, %v429
      %v431 = vpack.c.bf16 %v430, %v430
      %432 = vrot.lane.b32.xlu0 %v252, 48
      %v433 = vpop.permute.xlu0 %432
      %v435 = vsel %vm305, %v431, 0
      %v438 = vsel %vm323, %v433, 0
      %440 = vmatprep.subr.bf16.mxu0 0
      %441 = vmatpush1.bf16.msra.mxu0 0
      %442 = vmatprep.subr.bf16.mxu0 0
      %443 = vmatpush1.bf16.msra.mxu0 0
      %444 = vmatprep.subr.bf16.mxu0 0
      %445 = vmatpush1.bf16.msra.mxu0 0
      %446 = vmatprep.subr.bf16.mxu0 0
      %447 = vmatpush1.bf16.msra.mxu0 0
      %448 = vmatprep.subr.bf16.mxu0 0
      %449 = vmatpush1.bf16.msra.mxu0 0
      %450 = vmatprep.subr.bf16.mxu0 0
      %451 = vmatpush1.bf16.msra.mxu0 0
      %452 = vmatprep.subr.bf16.mxu0 0
      %453 = vmatpush1.bf16.msra.mxu0 0
      %454 = vmatprep.subr.bf16.mxu0 0
      %455 = vmatpush1.bf16.msra.mxu0 %v438
      %456 = vmatprep.subr.bf16.mxu0 0
      %457 = vmatpush2.bf16.msra.mxu0 0
      %458 = vmatprep.subr.bf16.mxu0 0
      %459 = vmatpush2.bf16.msra.mxu0 0
      %460 = vmatprep.subr.bf16.mxu0 0
      %461 = vmatpush2.bf16.msra.mxu0 0
      %462 = vmatprep.subr.bf16.mxu0 0
      %463 = vmatpush2.bf16.msra.mxu0 0
      %464 = vmatprep.subr.bf16.mxu0 0
      %465 = vmatpush2.bf16.msra.mxu0 0
      %466 = vmatprep.subr.bf16.mxu0 0
      %467 = vmatpush2.bf16.msra.mxu0 0
      %468 = vmatprep.subr.bf16.mxu0 0
      %469 = vmatpush2.bf16.msra.mxu0 0
      %470 = vmatprep.subr.bf16.mxu0 0
      %471 = vmatpush2.bf16.msra.mxu0 0
      %472 = vmatprep.mubr.bf16.mxu0 0
      %473 = vmatmul.mubr.bf16.gmra.mxu0 %v435
      %v474 = vpop.f32.mrf.mxu0
      %v475 = vadd.f32 0.0, %v474
      %v476 = vpop.f32.mrf.mxu0
      %v477 = vpop.f32.mrf.mxu0
      %v478 = vpop.f32.mrf.mxu0
      %479 = vdwg.mxu0
      %v480 = vpack.c.bf16 %v475, %v475
      %v483 = vunpack.c.l.b16 %v245
      %v484 = vunpack.c.l.b16 %v246
      %v485 = vpack.c.b16 %v484, %v483
      %v488 = vsel %vm256, %v480, 0
      %490 = vmatprep.subr.bf16.mxu0 0
      %491 = vmatpush1.bf16.msra.mxu0 0
      %492 = vmatprep.subr.bf16.mxu0 0
      %493 = vmatpush1.bf16.msra.mxu0 0
      %494 = vmatprep.subr.bf16.mxu0 0
      %495 = vmatpush1.bf16.msra.mxu0 0
      %496 = vmatprep.subr.bf16.mxu0 0
      %497 = vmatpush1.bf16.msra.mxu0 0
      %498 = vmatprep.subr.bf16.mxu0 0
      %499 = vmatpush1.bf16.msra.mxu0 0
      %500 = vmatprep.subr.bf16.mxu0 0
      %501 = vmatpush1.bf16.msra.mxu0 0
      %502 = vmatprep.subr.bf16.mxu0 0
      %503 = vmatpush1.bf16.msra.mxu0 0
      %504 = vmatprep.subr.bf16.mxu0 0
      %505 = vmatpush1.bf16.msra.mxu0 %v485
      %506 = vmatprep.subr.bf16.mxu0 0
      %507 = vmatpush2.bf16.msra.mxu0 0
      %508 = vmatprep.subr.bf16.mxu0 0
      %509 = vmatpush2.bf16.msra.mxu0 0
      %510 = vmatprep.subr.bf16.mxu0 0
      %511 = vmatpush2.bf16.msra.mxu0 0
      %512 = vmatprep.subr.bf16.mxu0 0
      %513 = vmatpush2.bf16.msra.mxu0 0
      %514 = vmatprep.subr.bf16.mxu0 0
      %515 = vmatpush2.bf16.msra.mxu0 0
      %516 = vmatprep.subr.bf16.mxu0 0
      %517 = vmatpush2.bf16.msra.mxu0 0
      %518 = vmatprep.subr.bf16.mxu0 0
      %519 = vmatpush2.bf16.msra.mxu0 0
      %520 = vmatprep.subr.bf16.mxu0 0
      %521 = vmatpush2.bf16.msra.mxu0 0
      %522 = vmatprep.mubr.bf16.mxu0 0
      %523 = vmatmul.mubr.bf16.gmra.mxu0 %v488
      %v524 = vpop.f32.mrf.mxu0
      %v525 = vadd.f32 0.0, %v524
      %v526 = vpop.f32.mrf.mxu0
      %v527 = vpop.f32.mrf.mxu0
      %v528 = vpop.f32.mrf.mxu0
      %529 = vdwg.mxu0
      %v532 = vunpack.c.l.b16 %v243
      %v533 = vunpack.c.l.b16 %v244
      %v534 = vpack.c.b16 %v533, %v532
      %v537 = vsel %vm256, %v367, 0
      %539 = vmatprep.subr.bf16.mxu0 0
      %540 = vmatpush1.bf16.msra.mxu0 0
      %541 = vmatprep.subr.bf16.mxu0 0
      %542 = vmatpush1.bf16.msra.mxu0 0
      %543 = vmatprep.subr.bf16.mxu0 0
      %544 = vmatpush1.bf16.msra.mxu0 0
      %545 = vmatprep.subr.bf16.mxu0 0
      %546 = vmatpush1.bf16.msra.mxu0 0
      %547 = vmatprep.subr.bf16.mxu0 0
      %548 = vmatpush1.bf16.msra.mxu0 0
      %549 = vmatprep.subr.bf16.mxu0 0
      %550 = vmatpush1.bf16.msra.mxu0 0
      %551 = vmatprep.subr.bf16.mxu0 0
      %552 = vmatpush1.bf16.msra.mxu0 0
      %553 = vmatprep.subr.bf16.mxu0 0
      %554 = vmatpush1.bf16.msra.mxu0 %v534
      %555 = vmatprep.subr.bf16.mxu0 0
      %556 = vmatpush2.bf16.msra.mxu0 0
      %557 = vmatprep.subr.bf16.mxu0 0
      %558 = vmatpush2.bf16.msra.mxu0 0
      %559 = vmatprep.subr.bf16.mxu0 0
      %560 = vmatpush2.bf16.msra.mxu0 0
      %561 = vmatprep.subr.bf16.mxu0 0
      %562 = vmatpush2.bf16.msra.mxu0 0
      %563 = vmatprep.subr.bf16.mxu0 0
      %564 = vmatpush2.bf16.msra.mxu0 0
      %565 = vmatprep.subr.bf16.mxu0 0
      %566 = vmatpush2.bf16.msra.mxu0 0
      %567 = vmatprep.subr.bf16.mxu0 0
      %568 = vmatpush2.bf16.msra.mxu0 0
      %569 = vmatprep.subr.bf16.mxu0 0
      %570 = vmatpush2.bf16.msra.mxu0 0
      %571 = vmatprep.mubr.bf16.mxu0 0
      %572 = vmatmul.mubr.bf16.gmra.mxu0 %v537
      %v573 = vpop.f32.mrf.mxu0
      %v574 = vadd.f32 %v525, %v573
      %v575 = vpop.f32.mrf.mxu0
      %v576 = vpop.f32.mrf.mxu0
      %v577 = vpop.f32.mrf.mxu0
      %578 = vdwg.mxu0
      %v579 = vadd.f32 %v167, %v574
      %580 = vst.msk [vmem:[%s165] sm:$0xff] %vm168, %v579
      %p581 = scmp.lt.s32.totalorder %s14, 1
      %s582 = scalar_select %p581, %s14, 1
      %s583 = smul.addr %s582, 8
      %s584 = scalar_lea.vmem %s3, %s583
      // Predicated region
      $region33: #{autoregressive_diffusion_forward.9} parent=31 // pred_check
        %p585 = pneg %p100
      $region34: #{autoregressive_diffusion_forward.9} parent=31 // pred_check_branch
        %587 = sbr.rel (%p585) target = $region36
      $region35: #{autoregressive_diffusion_forward.9} parent=31 // pred_region
        _
      $region36: #{autoregressive_diffusion_forward.9} parent=31 // pred_fallthru
        _
    $region32: #{autoregressive_diffusion_forward.9} parent=5 // pred_fallthru
      _
    %p588 = scmp.le.s32.totalorder 2, %s9
    // Predicated region
    $region37: #{autoregressive_diffusion_forward.9} parent=5 // pred_check
      %p589 = pneg %p588
    $region38: #{autoregressive_diffusion_forward.9} parent=5 // pred_check_branch
      %591 = sbr.rel (%p589) target = $region40
    $region39: #{autoregressive_diffusion_forward.9} parent=5 // pred_region
      %s592 = ssub.s32 %s9, 2
      // Predicated region
      $region41: #{autoregressive_diffusion_forward.9} parent=39 // pred_check
        %p593 = pneg %p106
      $region42: #{autoregressive_diffusion_forward.9} parent=39 // pred_check_branch
        %595 = sbr.rel (%p593) target = $region44
      $region43: #{autoregressive_diffusion_forward.9} parent=39 // pred_region
        %p596 = scmp.lt.s32.totalorder %s15, 1
        %s597 = scalar_select %p596, %s15, 1
        %s598 = smul.addr %s597, 8
        %s599 = scalar_lea.vmem %s3, %s598
      $region44: #{autoregressive_diffusion_forward.9} parent=39 // pred_fallthru
        _
    $region40: #{autoregressive_diffusion_forward.9} parent=5 // pred_fallthru
      _
  $region6: #{autoregressive_diffusion_forward.9} parent=0 // loop_footer
    %s13 = sadd.s32 1, %s9
  $region7: #{autoregressive_diffusion_forward.9} parent=0 // loop_footer_branch
    %8 = sbr.rel target = $region3
  $region8: #{autoregressive_diffusion_forward.9} parent=0 // loop_exit
    _

// kernel: autoregressive_diffusion_forward.13
$region0: #{autoregressive_diffusion_forward.13}
  #allocation0 [shape = 'u32[]', space=smem, size = 0x4, offset = 0x4, fixed_abs, tag = 'smem constant byte address 0x4 - core index']
  #allocation1 [shape = 'u32[144,128]{1,0:T(1,128)}', space=vmem, size = 0x12000, scoped, tag = 'internal scratch']
  %s0 = inlined_call_operand.vmem [shape: f32[16,128], index: 0, kind: input, shape index: {}]
  %s1 = inlined_call_operand.vmem [shape: f32[16,128], index: 1, kind: input, shape index: {}]
  %s2 = inlined_call_operand.vmem [shape: f32[16,128], index: 2, kind: input, shape index: {}]
  %s3 = inlined_call_operand.vmem [shape: f32[16,1], index: 3, kind: input, shape index: {}]
  %s4 = inlined_call_operand.hbm [shape: f32[1,33], index: 4, kind: input, shape index: {}]
  %s5 = inlined_call_operand.vmem [shape: f32[33,128], index: 5, kind: input, shape index: {}]
  %s6 = inlined_call_operand.hbm [shape: f32[1,128], index: 6, kind: input, shape index: {}]
  %s7 = inlined_call_operand.vmem [shape: bf16[3,128,128], index: 7, kind: input, shape index: {}]
  %s8 = inlined_call_operand.vmem [shape: bf16[3,128,128], index: 8, kind: input, shape index: {}]
  %s9 = inlined_call_operand.hbm [shape: f32[3,1,128], index: 9, kind: input, shape index: {}]
  %s10 = inlined_call_operand.vmem [shape: bf16[3,128,128], index: 10, kind: input, shape index: {}]
  %s11 = inlined_call_operand.hbm [shape: f32[3,1,128], index: 11, kind: input, shape index: {}]
  %s12 = inlined_call_operand.vmem [shape: bf16[3,128,128], index: 12, kind: input, shape index: {}]
  %s13 = inlined_call_operand.vmem [shape: f32[1,128], index: 13, kind: output, shape index: {}]
  %s14 = sld [smem:[#allocation0]]
  $region82: #{autoregressive_diffusion_forward.13} parent=0
    _
  %s16 = ssub.s32 1, %s14
  %s17 = scalar_select 0, %s16, %s14
  $region1: #{autoregressive_diffusion_forward.13} parent=0
    #allocation2 [shape = 'u8[512]{0}', space=vmem, size = 0x400, scoped, tag = 'input window, operand 4, single buffered']
    #allocation3 [shape = 's32[1]{0}', space=sflag, size = 0x4, scoped, tag = 'scoped memory for autoregressive_diffusion_forward.13']
    #allocation4 [shape = 'u8[512]{0}', space=vmem, size = 0x400, scoped, tag = 'input window, operand 6, single buffered']
    #allocation5 [shape = 's32[1]{0}', space=sflag, size = 0x4, scoped, tag = 'scoped memory for autoregressive_diffusion_forward.13']
    #allocation6 [shape = 'u8[1536]{0}', space=vmem, size = 0x800, scoped, tag = 'input window, operand 9, single buffered']
    #allocation7 [shape = 'u8[1536]{0}', space=vmem, size = 0x800, scoped, tag = 'input window, operand 11, single buffered']
    #allocation8 [shape = 's32[1]{0}', space=sflag, size = 0x4, scoped, tag = 'scoped memory for autoregressive_diffusion_forward.13']
    %18 = vsyncpa [#allocation3], 0
    %19 = vsyncpa [#allocation5], 0
    %20 = vsyncpa [#allocation8], 0
    // Predicated region
    $region2: #{autoregressive_diffusion_forward.13} parent=1 // pred_check
      _
    $region3: #{autoregressive_diffusion_forward.13} parent=1 // pred_check_branch
      %22 = sbr.rel (0) target = $region5
    $region4: #{autoregressive_diffusion_forward.13} parent=1 // pred_region
      _
    $region5: #{autoregressive_diffusion_forward.13} parent=1 // pred_fallthru
      _
    // Predicated region
    $region6: #{autoregressive_diffusion_forward.13} parent=1 // pred_check
      _
    $region7: #{autoregressive_diffusion_forward.13} parent=1 // pred_check_branch
      %24 = sbr.rel (0) target = $region9
    $region8: #{autoregressive_diffusion_forward.13} parent=1 // pred_region
      _
    $region9: #{autoregressive_diffusion_forward.13} parent=1 // pred_fallthru
      _
    // Predicated region
    $region10: #{autoregressive_diffusion_forward.13} parent=1 // pred_check
      _
    $region11: #{autoregressive_diffusion_forward.13} parent=1 // pred_check_branch
      %26 = sbr.rel (0) target = $region13
    $region12: #{autoregressive_diffusion_forward.13} parent=1 // pred_region
      _
    $region13: #{autoregressive_diffusion_forward.13} parent=1 // pred_fallthru
      _
    // Predicated region
    $region14: #{autoregressive_diffusion_forward.13} parent=1 // pred_check
      _
    $region15: #{autoregressive_diffusion_forward.13} parent=1 // pred_check_branch
      %28 = sbr.rel (0) target = $region17
    $region16: #{autoregressive_diffusion_forward.13} parent=1 // pred_region
      _
    $region17: #{autoregressive_diffusion_forward.13} parent=1 // pred_fallthru
      _
    // Predicated region
    $region18: #{autoregressive_diffusion_forward.13} parent=1 // pred_check
      _
    $region19: #{autoregressive_diffusion_forward.13} parent=1 // pred_check_branch
      %30 = sbr.rel (0) target = $region21
    $region20: #{autoregressive_diffusion_forward.13} parent=1 // pred_region
      %s32 = ssub.s32 16, 16
      %33 = vsyncadd [#allocation3], %s32
      %s35 = sshll.u32 [#allocation2], 4
      %s36 = int_to_ptr.vmem [resolvable:$true] %s35
      %38 = dma.hbm_to_vmem [thread:$0]  %s4, 16, %s36, [#allocation3]
    $region21: #{autoregressive_diffusion_forward.13} parent=1 // pred_fallthru
      _
    // Predicated region
    $region22: #{autoregressive_diffusion_forward.13} parent=1 // pred_check
      _
    $region23: #{autoregressive_diffusion_forward.13} parent=1 // pred_check_branch
      %40 = sbr.rel (0) target = $region25
    $region24: #{autoregressive_diffusion_forward.13} parent=1 // pred_region
      _
    $region25: #{autoregressive_diffusion_forward.13} parent=1 // pred_fallthru
      _
    // Predicated region
    $region26: #{autoregressive_diffusion_forward.13} parent=1 // pred_check
      _
    $region27: #{autoregressive_diffusion_forward.13} parent=1 // pred_check_branch
      %42 = sbr.rel (0) target = $region29
    $region28: #{autoregressive_diffusion_forward.13} parent=1 // pred_region
      %s44 = ssub.s32 16, 16
      %45 = vsyncadd [#allocation5], %s44
      %s47 = sshll.u32 [#allocation4], 4
      %s48 = int_to_ptr.vmem [resolvable:$true] %s47
      %50 = dma.hbm_to_vmem [thread:$0]  %s6, 16, %s48, [#allocation5]
    $region29: #{autoregressive_diffusion_forward.13} parent=1 // pred_fallthru
      _
    // Predicated region
    $region30: #{autoregressive_diffusion_forward.13} parent=1 // pred_check
      _
    $region31: #{autoregressive_diffusion_forward.13} parent=1 // pred_check_branch
      %52 = sbr.rel (0) target = $region33
    $region32: #{autoregressive_diffusion_forward.13} parent=1 // pred_region
      _
    $region33: #{autoregressive_diffusion_forward.13} parent=1 // pred_fallthru
      _
    // Predicated region
    $region34: #{autoregressive_diffusion_forward.13} parent=1 // pred_check
      _
    $region35: #{autoregressive_diffusion_forward.13} parent=1 // pred_check_branch
      %54 = sbr.rel (0) target = $region37
    $region36: #{autoregressive_diffusion_forward.13} parent=1 // pred_region
      _
    $region37: #{autoregressive_diffusion_forward.13} parent=1 // pred_fallthru
      _
    // Predicated region
    $region38: #{autoregressive_diffusion_forward.13} parent=1 // pred_check
      _
    $region39: #{autoregressive_diffusion_forward.13} parent=1 // pred_check_branch
      %56 = sbr.rel (0) target = $region41
    $region40: #{autoregressive_diffusion_forward.13} parent=1 // pred_region
      %s58 = ssub.s32 48, 48
      %59 = vsyncadd [#allocation5], %s58
      %s60 = sshll.u32 [#allocation6], 4
      %s61 = int_to_ptr.vmem [resolvable:$true] %s60
      %66 = dma.hbm_to_vmem [thread:$0]  %s9, 48, %s61, [#allocation5], 16, 16, 1
    $region41: #{autoregressive_diffusion_forward.13} parent=1 // pred_fallthru
      _
    // Predicated region
    $region42: #{autoregressive_diffusion_forward.13} parent=1 // pred_check
      _
    $region43: #{autoregressive_diffusion_forward.13} parent=1 // pred_check_branch
      %68 = sbr.rel (0) target = $region45
    $region44: #{autoregressive_diffusion_forward.13} parent=1 // pred_region
      _
    $region45: #{autoregressive_diffusion_forward.13} parent=1 // pred_fallthru
      _
    // Predicated region
    $region46: #{autoregressive_diffusion_forward.13} parent=1 // pred_check
      _
    $region47: #{autoregressive_diffusion_forward.13} parent=1 // pred_check_branch
      %70 = sbr.rel (0) target = $region49
    $region48: #{autoregressive_diffusion_forward.13} parent=1 // pred_region
      %s72 = ssub.s32 48, 48
      %73 = vsyncadd [#allocation8], %s72
      %s74 = sshll.u32 [#allocation7], 4
      %s75 = int_to_ptr.vmem [resolvable:$true] %s74
      %80 = dma.hbm_to_vmem [thread:$0]  %s11, 48, %s75, [#allocation8], 16, 16, 1
    $region49: #{autoregressive_diffusion_forward.13} parent=1 // pred_fallthru
      _
    // Predicated region
    $region50: #{autoregressive_diffusion_forward.13} parent=1 // pred_check
      _
    $region51: #{autoregressive_diffusion_forward.13} parent=1 // pred_check_branch
      %82 = sbr.rel (0) target = $region53
    $region52: #{autoregressive_diffusion_forward.13} parent=1 // pred_region
      _
    $region53: #{autoregressive_diffusion_forward.13} parent=1 // pred_fallthru
      _
    // Predicated region
    $region54: #{autoregressive_diffusion_forward.13} parent=1 // pred_check
      _
    $region55: #{autoregressive_diffusion_forward.13} parent=1 // pred_check_branch
      %84 = sbr.rel (0) target = $region57
    $region56: #{autoregressive_diffusion_forward.13} parent=1 // pred_region
      %85 = dma.done [#allocation3], 16
    $region57: #{autoregressive_diffusion_forward.13} parent=1 // pred_fallthru
      _
    // Predicated region
    $region58: #{autoregressive_diffusion_forward.13} parent=1 // pred_check
      _
    $region59: #{autoregressive_diffusion_forward.13} parent=1 // pred_check_branch
      %87 = sbr.rel (0) target = $region61
    $region60: #{autoregressive_diffusion_forward.13} parent=1 // pred_region
      %88 = dma.done [#allocation5], 16
    $region61: #{autoregressive_diffusion_forward.13} parent=1 // pred_fallthru
      _
    // Predicated region
    $region62: #{autoregressive_diffusion_forward.13} parent=1 // pred_check
      _
    $region63: #{autoregressive_diffusion_forward.13} parent=1 // pred_check_branch
      %90 = sbr.rel (0) target = $region65
    $region64: #{autoregressive_diffusion_forward.13} parent=1 // pred_region
      %91 = dma.done [#allocation5], 48
    $region65: #{autoregressive_diffusion_forward.13} parent=1 // pred_fallthru
      _
    // Predicated region
    $region66: #{autoregressive_diffusion_forward.13} parent=1 // pred_check
      _
    $region67: #{autoregressive_diffusion_forward.13} parent=1 // pred_check_branch
      %93 = sbr.rel (0) target = $region69
    $region68: #{autoregressive_diffusion_forward.13} parent=1 // pred_region
      %94 = dma.done [#allocation8], 48
    $region69: #{autoregressive_diffusion_forward.13} parent=1 // pred_fallthru
      _
    %p96 = scmp.eq.s32.totalorder 0, 0
    // Predicated region
    $region70: #{autoregressive_diffusion_forward.13} parent=1 // pred_check
      %p97 = pneg %p96
    $region71: #{autoregressive_diffusion_forward.13} parent=1 // pred_check_branch
      %99 = sbr.rel (%p97) target = $region73
    $region72: #{autoregressive_diffusion_forward.13} parent=1 // pred_region
      %100 = vst [vmem:[%s13] sm:$0x1] 0.0
    $region73: #{autoregressive_diffusion_forward.13} parent=1 // pred_fallthru
      _
    %v101 = vld [vmem:[%s1] sm:$0xff]
    %v102 = vld [vmem:[%s1 + $0x8] sm:$0xff]
    %v103 = vld [vmem:[%s2] sm:$0xff]
    %v104 = vld [vmem:[%s2 + $0x8] sm:$0xff]
    %v105 = vld [vmem:[%s3] sm:$0xff]
    %v106 = vld [vmem:[%s3 + $0x8] sm:$0xff]
    %v107 = vld [vmem:[%s0] sm:$0xff]
    %v108 = vld [vmem:[%s0 + $0x8] sm:$0xff]
    %v109 = vlaneseq
    %v110 = vand.u32 %v109, 127
    %vm111 = vcmp.lt.s32.totalorder %v110, 8
    %v112 = vsel %vm111, 1, 0
    %v113 = vcvt.s32.f32 %v112
    %vm114 = vcmp.lt.s32.totalorder %v110, 32
    %v115 = vsel %vm114, 1, 0
    %v116 = vcvt.s32.f32 %v115
    %s117 = smul.u32 0, 16
    %v118 = vlaneseq
    %v119 = vshrl.u32 %v118, 7
    %v120 = vadd.s32 %v119, 8
    %v121 = vstv %s117
    %v122 = vadd.s32 %v121, %v119
    %v123 = vadd.s32 %v121, %v120
    %vm124 = vcmp.lt.s32.totalorder %v122, 16
    %vm125 = vcmp.lt.s32.totalorder %v123, 16
    %v126 = vsel %vm124, 1, 0
    %v127 = vsel %vm125, 1, 0
    %v128 = vcvt.s32.f32 %v126
    %v129 = vcvt.s32.f32 %v127
    %130 = vadd.xlane.f32.xlu0 %v107
    %v131 = vpop.xlane.xlu0 %130
    %132 = vadd.xlane.f32.xlu0 %v108
    %v133 = vpop.xlane.xlu0 %132
    %v134 = vrcp.pop 32.0
    %v135 = vmul.f32 %v131, %v134
    %v136 = vmul.f32 %v133, %v134
    %v137 = vsub.f32 %v107, %v135
    %v138 = vsub.f32 %v108, %v136
    %v139 = vmul.f32 %v137, %v116
    %v140 = vmul.f32 %v138, %v116
    %v141 = vmul.f32 %v139, %v139
    %v142 = vmul.f32 %v140, %v140
    %143 = vadd.xlane.f32.xlu0 %v141
    %v144 = vpop.xlane.xlu0 %143
    %145 = vadd.xlane.f32.xlu0 %v142
    %v146 = vpop.xlane.xlu0 %145
    %v147 = vmul.f32 %v144, %v134
    %v148 = vmul.f32 %v146, %v134
    %v149 = vadd.f32 %v147, 1e-05
    %v150 = vadd.f32 %v148, 1e-05
    %v151 = vrsqrt.pop %v149
    %v152 = vrsqrt.pop %v150
    %v153 = vmul.f32 %v139, %v151
    %v154 = vmul.f32 %v140, %v152
    %156 = vset.pattern.permute.xlu0 0
    %157 = vperm.xlu0 %156, %v105
    %v158 = vpop.permute.xlu0 %157
    %161 = vset.pattern.permute.xlu0 0
    %162 = vperm.xlu0 %161, %v106
    %v163 = vpop.permute.xlu0 %162
    %v165 = vmul.f32 %v158, %v103
    %v166 = vmul.f32 %v163, %v104
    %v167 = vadd.f32 %v101, %v165
    %v168 = vadd.f32 %v102, %v166
    %v169 = vmul.f32 %v105, %v105
    %v170 = vmul.f32 %v106, %v106
    %v171 = vadd.f32 %v169, 0.25
    %v172 = vadd.f32 %v170, 0.25
    %v173 = vrsqrt.pop %v171
    %v174 = vrsqrt.pop %v172
    %v175 = vrcp.pop %v171
    %v176 = vmul.f32 0.25, %v175
    %v177 = vrcp.pop %v172
    %v178 = vmul.f32 0.25, %v177
    %v179 = vmul.f32 %v105, 0.5
    %v180 = vmul.f32 %v106, 0.5
    %v181 = vmul.f32 %v179, %v173
    %v182 = vmul.f32 %v180, %v174
    %v183 = vmax.f32 %v105, 1e-20
    %v184 = vmax.f32 %v106, 1e-20
    %v185 = vlog2.pop %v183
    %v186 = vmul.f32 %v185, 0.6931472
    %v187 = vlog2.pop %v184
    %v188 = vmul.f32 %v187, 0.6931472
    %v189 = vmul.f32 %v186, 0.25
    %v190 = vmul.f32 %v188, 0.25
    %v191 = vld [vmem:[#allocation2] sm:$0x1]
    %193 = vset.pattern.permute.xlu0 0
    %194 = vperm.xlu0 %193, %v189
    %v195 = vpop.permute.xlu0 %194
    %198 = vset.pattern.permute.xlu0 0
    %199 = vperm.xlu0 %198, %v190
    %v200 = vpop.permute.xlu0 %199
    %v203 = vlaneseq
    %v204 = vshrl.u32 %v203, 7
    %v205 = vsub.s32 0, %v204
    %v206 = vrot.slane %v191, %v205
    %v208 = vmul.f32 %v195, %v206
    %v209 = vmul.f32 %v200, %v206
    %v210 = vmul.f32 %v208, 6.2831855
    %v211 = vmul.f32 %v209, 6.2831855
    %vm212 = vcmp.le.s32.totalorder %v110, 16
    %v213 = vand.u32 2147483647, %v210
    %vm214 = vcmp.le.f32.partialorder %v213, 0.7853982
    %vm215 = vcmp.lt.s32.totalorder %v210, 0
    %v216 = vand.u32 %v210, 2139095040
    %v217 = vshrl.u32 %v216, 23
    %v218 = vsub.s32 %v217, 127
    %v219 = vand.u32 2147483647, %v210
    %v220 = vand.u32 %v219, 8388607
    %v221 = vor.u32 %v220, 8388608
    %v222 = vsub.s32 0, %v221
    %v223 = vadd.s32 %v218, 1
    %vm224 = vcmp.gt.s32.totalorder %v223, 0
    %v225 = vsel %vm224, %v223, 0
    %v226 = vshrl.u32 %v225, 5
    %v227 = vand.u32 %v225, 31
    %v228 = vsub.s32 32, %v227
    %v229 = vshrl.u32 683565275, %v228
    %v230 = vshll.u32 683565275, %v227
    %v231 = vshrl.u32 2475754826, %v228
    %v232 = vor.u32 %v230, %v231
    %v233 = vshll.u32 2475754826, %v227
    %v234 = vshrl.u32 2131351028, %v228
    %v235 = vor.u32 %v233, %v234
    %v236 = vshll.u32 2131351028, %v227
    %v237 = vshrl.u32 2102212464, %v228
    %v238 = vor.u32 %v236, %v237
    %v239 = vshll.u32 2102212464, %v227
    %v240 = vshrl.u32 920167782, %v228
    %v241 = vor.u32 %v239, %v240
    %v242 = vshll.u32 920167782, %v227
    %v243 = vshrl.u32 1326507024, %v228
    %v244 = vor.u32 %v242, %v243
    %vm245 = vcmp.lt.s32.totalorder %v226, 1
    %vm246 = vcmp.lt.s32.totalorder %v226, 2
    %vm247 = vcmp.lt.s32.totalorder %v226, 3
    %vm248 = vcmp.lt.s32.totalorder %v226, 4
    %v249 = vsel %vm245, %v229, %v232
    %v250 = vsel %vm248, %v238, 2102212464
    %v251 = vsel %vm247, %v235, %v250
    %v252 = vsel %vm246, %v249, %v251
    %v253 = vsel %vm245, %v232, %v235
    %v254 = vsel %vm248, %v241, 920167782
    %v255 = vsel %vm247, %v238, %v254
    %v256 = vsel %vm246, %v253, %v255
    %v257 = vsel %vm245, %v235, %v238
    %v258 = vsel %vm248, %v244, 1326507024
    %v259 = vsel %vm247, %v241, %v258
    %v260 = vsel %vm246, %v257, %v259
    %v261 = vshll.u32 %v221, 8
    %v262 = vmul.u32.u64.compose %v261, %v260
    %v263 = vextract.low.u32 %v262
    %v264 = vextract.high.u32 %v262
    %v265 = vmul.u32.u64.compose %v261, %v256
    %v266 = vextract.low.u32 %v265
    %v267 = vextract.high.u32 %v265
    %v268 = vmul.u32 %v261, %v252
    %v269 = vadd.s32 %v264, %v266
    %vm270 = vc.u32 %v264, %v266
    %v271 = vadd.s32 %v267, 1
    %v272 = vsel %vm270, %v271, %v267
    %v273 = vadd.s32 %v268, %v272
    %v274 = vadd.s32 %v273, 536870912
    %v275 = vshrl.u32 %v274, 30
    %v276 = vshll.u32 %v275, 30
    %v277 = vsub.s32 %v273, %v276
    %vm278 = vcmp.lt.s32.totalorder %v277, 0
    %v279 = vsub.s32 0, %v277
    %v280 = vsel %vm278, %v279, %v277
    %v281 = vclz %v280
    %v282 = vsub.s32 %v281, 2
    %vm283 = vcmp.gt.s32.totalorder 0, %v282
    %v284 = vsel %vm283, 0, %v282
    %v285 = vsub.s32 32, %v284
    %v286 = vshll.u32 %v277, %v284
    %v287 = vshrl.u32 %v269, %v285
    %v288 = vor.u32 %v286, %v287
    %v289 = vsub.s32 4294967266, %v284
    %v290 = vadd.s32 %v289, 127
    %v291 = vshll.u32 %v290, 23
    %v292 = vor.u32 4788187, %v291
    %v293 = vand.u32 2147483647, %v292
    %v295 = vcvt.s32.f32 %v288
    %v296 = vmul.f32 %v295, %v293
    %v297 = vxor.u32 %v296, 2147483648
    %v298 = vsel %vm215, %v297, %v296
    %v299 = vsub.s32 4, %v275
    %v300 = vsel %vm215, %v299, %v275
    %v301 = vsel %vm214, %v210, %v298
    %v302 = vsel %vm214, 0, %v300
    %v303 = vcosq.f32.pop %v301
    %v304 = vsinq.f32.pop %v301
    %vm305 = vweird.f32 %v210
    %v306 = vadd.s32 %v302, 3
    %v307 = vand.u32 %v306, 3
    %vm308 = vcmp.lt.s32.totalorder %v307, 2
    %vm309 = vcmp.eq.s32.totalorder %v307, 0
    %v310 = vxor.u32 %v304, 2147483648
    %v311 = vsel %vm309, %v303, %v310
    %vm312 = vcmp.eq.s32.totalorder %v307, 2
    %v313 = vxor.u32 %v303, 2147483648
    %v314 = vsel %vm312, %v313, %v304
    %v315 = vsel %vm308, %v311, %v314
    %v316 = vsel %vm305, nan, %v315
    %v317 = vand.u32 2147483647, %v211
    %vm318 = vcmp.le.f32.partialorder %v317, 0.7853982
    %vm319 = vcmp.lt.s32.totalorder %v211, 0
    %v320 = vand.u32 %v211, 2139095040
    %v321 = vshrl.u32 %v320, 23
    %v322 = vsub.s32 %v321, 127
    %v323 = vand.u32 2147483647, %v211
    %v324 = vand.u32 %v323, 8388607
    %v325 = vor.u32 %v324, 8388608
    %v326 = vsub.s32 0, %v325
    %v327 = vadd.s32 %v322, 1
    %vm328 = vcmp.gt.s32.totalorder %v327, 0
    %v329 = vsel %vm328, %v327, 0
    %v330 = vshrl.u32 %v329, 5
    %v331 = vand.u32 %v329, 31
    %v332 = vsub.s32 32, %v331
    %v333 = vshrl.u32 683565275, %v332
    %v334 = vshll.u32 683565275, %v331
    %v335 = vshrl.u32 2475754826, %v332
    %v336 = vor.u32 %v334, %v335
    %v337 = vshll.u32 2475754826, %v331
    %v338 = vshrl.u32 2131351028, %v332
    %v339 = vor.u32 %v337, %v338
    %v340 = vshll.u32 2131351028, %v331
    %v341 = vshrl.u32 2102212464, %v332
    %v342 = vor.u32 %v340, %v341
    %v343 = vshll.u32 2102212464, %v331
    %v344 = vshrl.u32 920167782, %v332
    %v345 = vor.u32 %v343, %v344
    %v346 = vshll.u32 920167782, %v331
    %v347 = vshrl.u32 1326507024, %v332
    %v348 = vor.u32 %v346, %v347
    %vm349 = vcmp.lt.s32.totalorder %v330, 1
    %vm350 = vcmp.lt.s32.totalorder %v330, 2
    %vm351 = vcmp.lt.s32.totalorder %v330, 3
    %vm352 = vcmp.lt.s32.totalorder %v330, 4
    %v353 = vsel %vm349, %v333, %v336
    %v354 = vsel %vm352, %v342, 2102212464
    %v355 = vsel %vm351, %v339, %v354
    %v356 = vsel %vm350, %v353, %v355
    %v357 = vsel %vm349, %v336, %v339
    %v358 = vsel %vm352, %v345, 920167782
    %v359 = vsel %vm351, %v342, %v358
    %v360 = vsel %vm350, %v357, %v359
    %v361 = vsel %vm349, %v339, %v342
    %v362 = vsel %vm352, %v348, 1326507024
    %v363 = vsel %vm351, %v345, %v362
    %v364 = vsel %vm350, %v361, %v363
    %v365 = vshll.u32 %v325, 8
    %v366 = vmul.u32.u64.compose %v365, %v364
    %v367 = vextract.low.u32 %v366
    %v368 = vextract.high.u32 %v366
    %v369 = vmul.u32.u64.compose %v365, %v360
    %v370 = vextract.low.u32 %v369
    %v371 = vextract.high.u32 %v369
    %v372 = vmul.u32 %v365, %v356
    %v373 = vadd.s32 %v368, %v370
    %vm374 = vc.u32 %v368, %v370
    %v375 = vadd.s32 %v371, 1
    %v376 = vsel %vm374, %v375, %v371
    %v377 = vadd.s32 %v372, %v376
    %v378 = vadd.s32 %v377, 536870912
    %v379 = vshrl.u32 %v378, 30
    %v380 = vshll.u32 %v379, 30
    %v381 = vsub.s32 %v377, %v380
    %vm382 = vcmp.lt.s32.totalorder %v381, 0
    %v383 = vsub.s32 0, %v381
    %v384 = vsel %vm382, %v383, %v381
    %v385 = vclz %v384
    %v386 = vsub.s32 %v385, 2
    %vm387 = vcmp.gt.s32.totalorder 0, %v386
    %v388 = vsel %vm387, 0, %v386
    %v389 = vsub.s32 32, %v388
    %v390 = vshll.u32 %v381, %v388
    %v391 = vshrl.u32 %v373, %v389
    %v392 = vor.u32 %v390, %v391
    %v393 = vsub.s32 4294967266, %v388
    %v394 = vadd.s32 %v393, 127
    %v395 = vshll.u32 %v394, 23
    %v396 = vor.u32 4788187, %v395
    %v397 = vand.u32 2147483647, %v396
    %v399 = vcvt.s32.f32 %v392
    %v400 = vmul.f32 %v399, %v397
    %v401 = vxor.u32 %v400, 2147483648
    %v402 = vsel %vm319, %v401, %v400
    %v403 = vsub.s32 4, %v379
    %v404 = vsel %vm319, %v403, %v379
    %v405 = vsel %vm318, %v211, %v402
    %v406 = vsel %vm318, 0, %v404
    %v407 = vcosq.f32.pop %v405
    %v408 = vsinq.f32.pop %v405
    %vm409 = vweird.f32 %v211
    %v410 = vadd.s32 %v406, 3
    %v411 = vand.u32 %v410, 3
    %vm412 = vcmp.lt.s32.totalorder %v411, 2
    %vm413 = vcmp.eq.s32.totalorder %v411, 0
    %v414 = vxor.u32 %v408, 2147483648
    %v415 = vsel %vm413, %v407, %v414
    %vm416 = vcmp.eq.s32.totalorder %v411, 2
    %v417 = vxor.u32 %v407, 2147483648
    %v418 = vsel %vm416, %v417, %v408
    %v419 = vsel %vm412, %v415, %v418
    %v420 = vsel %vm409, nan, %v419
    %v421 = vand.u32 2147483647, %v210
    %vm422 = vcmp.le.f32.partialorder %v421, 0.7853982
    %vm423 = vcmp.lt.s32.totalorder %v210, 0
    %v424 = vand.u32 %v210, 2139095040
    %v425 = vshrl.u32 %v424, 23
    %v426 = vsub.s32 %v425, 127
    %v427 = vand.u32 2147483647, %v210
    %v428 = vand.u32 %v427, 8388607
    %v429 = vor.u32 %v428, 8388608
    %v430 = vsub.s32 0, %v429
    %v431 = vadd.s32 %v426, 1
    %vm432 = vcmp.gt.s32.totalorder %v431, 0
    %v433 = vsel %vm432, %v431, 0
    %v434 = vshrl.u32 %v433, 5
    %v435 = vand.u32 %v433, 31
    %v436 = vsub.s32 32, %v435
    %v437 = vshrl.u32 683565275, %v436
    %v438 = vshll.u32 683565275, %v435
    %v439 = vshrl.u32 2475754826, %v436
    %v440 = vor.u32 %v438, %v439
    %v441 = vshll.u32 2475754826, %v435
    %v442 = vshrl.u32 2131351028, %v436
    %v443 = vor.u32 %v441, %v442
    %v444 = vshll.u32 2131351028, %v435
    %v445 = vshrl.u32 2102212464, %v436
    %v446 = vor.u32 %v444, %v445
    %v447 = vshll.u32 2102212464, %v435
    %v448 = vshrl.u32 920167782, %v436
    %v449 = vor.u32 %v447, %v448
    %v450 = vshll.u32 920167782, %v435
    %v451 = vshrl.u32 1326507024, %v436
    %v452 = vor.u32 %v450, %v451
    %vm453 = vcmp.lt.s32.totalorder %v434, 1
    %vm454 = vcmp.lt.s32.totalorder %v434, 2
    %vm455 = vcmp.lt.s32.totalorder %v434, 3
    %vm456 = vcmp.lt.s32.totalorder %v434, 4
    %v457 = vsel %vm453, %v437, %v440
    %v458 = vsel %vm456, %v446, 2102212464
    %v459 = vsel %vm455, %v443, %v458
    %v460 = vsel %vm454, %v457, %v459
    %v461 = vsel %vm453, %v440, %v443
    %v462 = vsel %vm456, %v449, 920167782
    %v463 = vsel %vm455, %v446, %v462
    %v464 = vsel %vm454, %v461, %v463
    %v465 = vsel %vm453, %v443, %v446
    %v466 = vsel %vm456, %v452, 1326507024
    %v467 = vsel %vm455, %v449, %v466
    %v468 = vsel %vm454, %v465, %v467
    %v469 = vshll.u32 %v429, 8
    %v470 = vmul.u32.u64.compose %v469, %v468
    %v471 = vextract.low.u32 %v470
    %v472 = vextract.high.u32 %v470
    %v473 = vmul.u32.u64.compose %v469, %v464
    %v474 = vextract.low.u32 %v473
    %v475 = vextract.high.u32 %v473
    %v476 = vmul.u32 %v469, %v460
    %v477 = vadd.s32 %v472, %v474
    %vm478 = vc.u32 %v472, %v474
    %v479 = vadd.s32 %v475, 1
    %v480 = vsel %vm478, %v479, %v475
    %v481 = vadd.s32 %v476, %v480
    %v482 = vadd.s32 %v481, 536870912
    %v483 = vshrl.u32 %v482, 30
    %v484 = vshll.u32 %v483, 30
    %v485 = vsub.s32 %v481, %v484
    %vm486 = vcmp.lt.s32.totalorder %v485, 0
    %v487 = vsub.s32 0, %v485
    %v488 = vsel %vm486, %v487, %v485
    %v489 = vclz %v488
    %v490 = vsub.s32 %v489, 2
    %vm491 = vcmp.gt.s32.totalorder 0, %v490
    %v492 = vsel %vm491, 0, %v490
    %v493 = vsub.s32 32, %v492
    %v494 = vshll.u32 %v485, %v492
    %v495 = vshrl.u32 %v477, %v493
    %v496 = vor.u32 %v494, %v495
    %v497 = vsub.s32 4294967266, %v492
    %v498 = vadd.s32 %v497, 127
    %v499 = vshll.u32 %v498, 23
    %v500 = vor.u32 4788187, %v499
    %v501 = vand.u32 2147483647, %v500
    %v503 = vcvt.s32.f32 %v496
    %v504 = vmul.f32 %v503, %v501
    %v505 = vxor.u32 %v504, 2147483648
    %v506 = vsel %vm423, %v505, %v504
    %v507 = vsub.s32 4, %v483
    %v508 = vsel %vm423, %v507, %v483
    %v509 = vsel %vm422, %v210, %v506
    %v510 = vsel %vm422, 0, %v508
    %v511 = vcosq.f32.pop %v509
    %v512 = vsinq.f32.pop %v509
    %vm513 = vweird.f32 %v210
    %v514 = vand.u32 %v510, 3
    %vm515 = vcmp.lt.s32.totalorder %v514, 2
    %vm516 = vcmp.eq.s32.totalorder %v514, 0
    %v517 = vxor.u32 %v512, 2147483648
    %v518 = vsel %vm516, %v511, %v517
    %vm519 = vcmp.eq.s32.totalorder %v514, 2
    %v520 = vxor.u32 %v511, 2147483648
    %v521 = vsel %vm519, %v520, %v512
    %v522 = vsel %vm515, %v518, %v521
    %v523 = vsel %vm513, nan, %v522
    %v524 = vand.u32 2147483647, %v211
    %vm525 = vcmp.le.f32.partialorder %v524, 0.7853982
    %vm526 = vcmp.lt.s32.totalorder %v211, 0
    %v527 = vand.u32 %v211, 2139095040
    %v528 = vshrl.u32 %v527, 23
    %v529 = vsub.s32 %v528, 127
    %v530 = vand.u32 2147483647, %v211
    %v531 = vand.u32 %v530, 8388607
    %v532 = vor.u32 %v531, 8388608
    %v533 = vsub.s32 0, %v532
    %v534 = vadd.s32 %v529, 1
    %vm535 = vcmp.gt.s32.totalorder %v534, 0
    %v536 = vsel %vm535, %v534, 0
    %v537 = vshrl.u32 %v536, 5
    %v538 = vand.u32 %v536, 31
    %v539 = vsub.s32 32, %v538
    %v540 = vshrl.u32 683565275, %v539
    %v541 = vshll.u32 683565275, %v538
    %v542 = vshrl.u32 2475754826, %v539
    %v543 = vor.u32 %v541, %v542
    %v544 = vshll.u32 2475754826, %v538
    %v545 = vshrl.u32 2131351028, %v539
    %v546 = vor.u32 %v544, %v545
    %v547 = vshll.u32 2131351028, %v538
    %v548 = vshrl.u32 2102212464, %v539
    %v549 = vor.u32 %v547, %v548
    %v550 = vshll.u32 2102212464, %v538
    %v551 = vshrl.u32 920167782, %v539
    %v552 = vor.u32 %v550, %v551
    %v553 = vshll.u32 920167782, %v538
    %v554 = vshrl.u32 1326507024, %v539
    %v555 = vor.u32 %v553, %v554
    %vm556 = vcmp.lt.s32.totalorder %v537, 1
    %vm557 = vcmp.lt.s32.totalorder %v537, 2
    %vm558 = vcmp.lt.s32.totalorder %v537, 3
    %vm559 = vcmp.lt.s32.totalorder %v537, 4
    %v560 = vsel %vm556, %v540, %v543
    %v561 = vsel %vm559, %v549, 2102212464
    %v562 = vsel %vm558, %v546, %v561
    %v563 = vsel %vm557, %v560, %v562
    %v564 = vsel %vm556, %v543, %v546
    %v565 = vsel %vm559, %v552, 920167782
    %v566 = vsel %vm558, %v549, %v565
    %v567 = vsel %vm557, %v564, %v566
    %v568 = vsel %vm556, %v546, %v549
    %v569 = vsel %vm559, %v555, 1326507024
    %v570 = vsel %vm558, %v552, %v569
    %v571 = vsel %vm557, %v568, %v570
    %v572 = vshll.u32 %v532, 8
    %v573 = vmul.u32.u64.compose %v572, %v571
    %v574 = vextract.low.u32 %v573
    %v575 = vextract.high.u32 %v573
    %v576 = vmul.u32.u64.compose %v572, %v567
    %v577 = vextract.low.u32 %v576
    %v578 = vextract.high.u32 %v576
    %v579 = vmul.u32 %v572, %v563
    %v580 = vadd.s32 %v575, %v577
    %vm581 = vc.u32 %v575, %v577
    %v582 = vadd.s32 %v578, 1
    %v583 = vsel %vm581, %v582, %v578
    %v584 = vadd.s32 %v579, %v583
    %v585 = vadd.s32 %v584, 536870912
    %v586 = vshrl.u32 %v585, 30
    %v587 = vshll.u32 %v586, 30
    %v588 = vsub.s32 %v584, %v587
    %vm589 = vcmp.lt.s32.totalorder %v588, 0
    %v590 = vsub.s32 0, %v588
    %v591 = vsel %vm589, %v590, %v588
    %v592 = vclz %v591
    %v593 = vsub.s32 %v592, 2
    %vm594 = vcmp.gt.s32.totalorder 0, %v593
    %v595 = vsel %vm594, 0, %v593
    %v596 = vsub.s32 32, %v595
    %v597 = vshll.u32 %v588, %v595
    %v598 = vshrl.u32 %v580, %v596
    %v599 = vor.u32 %v597, %v598
    %v600 = vsub.s32 4294967266, %v595
    %v601 = vadd.s32 %v600, 127
    %v602 = vshll.u32 %v601, 23
    %v603 = vor.u32 4788187, %v602
    %v604 = vand.u32 2147483647, %v603
    %v606 = vcvt.s32.f32 %v599
    %v607 = vmul.f32 %v606, %v604
    %v608 = vxor.u32 %v607, 2147483648
    %v609 = vsel %vm526, %v608, %v607
    %v610 = vsub.s32 4, %v586
    %v611 = vsel %vm526, %v610, %v586
    %v612 = vsel %vm525, %v211, %v609
    %v613 = vsel %vm525, 0, %v611
    %v614 = vcosq.f32.pop %v612
    %v615 = vsinq.f32.pop %v612
    %vm616 = vweird.f32 %v211
    %v617 = vand.u32 %v613, 3
    %vm618 = vcmp.lt.s32.totalorder %v617, 2
    %vm619 = vcmp.eq.s32.totalorder %v617, 0
    %v620 = vxor.u32 %v615, 2147483648
    %v621 = vsel %vm619, %v614, %v620
    %vm622 = vcmp.eq.s32.totalorder %v617, 2
    %v623 = vxor.u32 %v614, 2147483648
    %v624 = vsel %vm622, %v623, %v615
    %v625 = vsel %vm618, %v621, %v624
    %v626 = vsel %vm616, nan, %v625
    %v627 = vsel %vm212, 1, 0
    %vm628 = vcmp.eq.s32.totalorder %v627, 1
    %v629 = vsel %vm628, %v316, %v523
    %v630 = vsel %vm628, %v420, %v626
    %vm631 = vcmp.eq.s32.totalorder %v110, 0
    %v632 = vsel %vm631, 1, 0
    %vm633 = vcmp.eq.s32.totalorder %v632, 1
    %v634 = vsel %vm633, %v195, %v629
    %v635 = vsel %vm633, %v200, %v630
    %v636 = vld [vmem:[%s5] sm:$0xff]
    %v637 = vld [vmem:[%s5 + $0x8] sm:$0xff]
    %v638 = vld [vmem:[%s5 + $0x10] sm:$0xff]
    %v639 = vld [vmem:[%s5 + $0x18] sm:$0xff]
    %v640 = vld [vmem:[%s5 + $0x20] sm:$0x1]
    %v641 = vld [vmem:[#allocation4] sm:$0x1]
    %v643 = vlaneseq
    %v644 = vshrl.u32 %v643, 7
    %v645 = vsub.s32 0, %v644
    %v646 = vrot.slane %v641, %v645
    %vm648 = vcmask 269312
    %v650 = vsel %vm648, %v634, 0
    %v653 = vsel %vm648, %v635, 0
    %vm655 = vcmask 1040384
    %v657 = vsel %vm655, %v640, 0
    %659 = vmatprep.subr.mxu0 0.0
    %660 = vmatpush1.msra.mxu0 0.0
    %661 = vmatprep.subr.mxu0 0.0
    %662 = vmatpush1.msra.mxu0 0.0
    %663 = vmatprep.subr.mxu0 0.0
    %664 = vmatpush1.msra.mxu0 0.0
    %665 = vmatprep.subr.mxu0 0.0
    %666 = vmatpush1.msra.mxu0 0.0
    %667 = vmatprep.subr.mxu0 0.0
    %668 = vmatpush1.msra.mxu0 0.0
    %669 = vmatprep.subr.mxu0 0.0
    %670 = vmatpush1.msra.mxu0 0.0
    %671 = vmatprep.subr.mxu0 0.0
    %672 = vmatpush1.msra.mxu0 0.0
    %673 = vmatprep.subr.mxu0 0.0
    %674 = vmatpush1.msra.mxu0 0.0
    %675 = vmatprep.subr.mxu0 0.0
    %676 = vmatpush1.msra.mxu0 0.0
    %677 = vmatprep.subr.mxu0 0.0
    %678 = vmatpush1.msra.mxu0 0.0
    %679 = vmatprep.subr.mxu0 0.0
    %680 = vmatpush1.msra.mxu0 0.0
    %681 = vmatprep.subr.mxu0 0.0
    %682 = vmatpush1.msra.mxu0 %v657
    %683 = vmatprep.subr.mxu0 0.0
    %684 = vmatpush1.msra.mxu0 %v639
    %685 = vmatprep.subr.mxu0 0.0
    %686 = vmatpush1.msra.mxu0 %v638
    %687 = vmatprep.subr.mxu0 0.0
    %688 = vmatpush1.msra.mxu0 %v637
    %689 = vmatprep.subr.mxu0 0.0
    %690 = vmatpush1.msra.mxu0 %v636
    %691 = vmatprep.subr.mxu0 0.0
    %692 = vmatpush2.msra.mxu0 0.0
    %693 = vmatprep.subr.mxu0 0.0
    %694 = vmatpush2.msra.mxu0 0.0
    %695 = vmatprep.subr.mxu0 0.0
    %696 = vmatpush2.msra.mxu0 0.0
    %697 = vmatprep.subr.mxu0 0.0
    %698 = vmatpush2.msra.mxu0 0.0
    %699 = vmatprep.subr.mxu0 0.0
    %700 = vmatpush2.msra.mxu0 0.0
    %701 = vmatprep.subr.mxu0 0.0
    %702 = vmatpush2.msra.mxu0 0.0
    %703 = vmatprep.subr.mxu0 0.0
    %704 = vmatpush2.msra.mxu0 0.0
    %705 = vmatprep.subr.mxu0 0.0
    %706 = vmatpush2.msra.mxu0 0.0
    %707 = vmatprep.subr.mxu0 0.0
    %708 = vmatpush2.msra.mxu0 0.0
    %709 = vmatprep.subr.mxu0 0.0
    %710 = vmatpush2.msra.mxu0 0.0
    %711 = vmatprep.subr.mxu0 0.0
    %712 = vmatpush2.msra.mxu0 0.0
    %713 = vmatprep.subr.mxu0 0.0
    %714 = vmatpush2.msra.mxu0 0.0
    %715 = vmatprep.subr.mxu0 0.0
    %716 = vmatpush2.msra.mxu0 0.0
    %717 = vmatprep.subr.mxu0 0.0
    %718 = vmatpush2.msra.mxu0 0.0
    %719 = vmatprep.subr.mxu0 0.0
    %720 = vmatpush2.msra.mxu0 0.0
    %721 = vmatprep.subr.mxu0 0.0
    %722 = vmatpush2.msra.mxu0 0.0
    %723 = vmatprep.mubr.f32.mxu0 0.0
    %724 = vmatmul.mubr.f32.gmra.mxu0 %v650
    %v725 = vpop.f32.mrf.mxu0
    %v726 = vadd.f32 %v646, %v725
    %v727 = vpop.f32.mrf.mxu0
    %728 = vmatprep.mubr.f32.mxu0 0.0
    %729 = vmatmul.mubr.f32.gmra.mxu0 %v653
    %v730 = vpop.f32.mrf.mxu0
    %v731 = vadd.f32 %v646, %v730
    %v732 = vpop.f32.mrf.mxu0
    %733 = vdwg.mxu0
    %v734 = vadd.f32 %v726, %v153
    %v735 = vadd.f32 %v731, %v154
    %v736 = vxor.u32 %v734, 2147483648
    %v737 = vxor.u32 %v735, 2147483648
    %v738 = vmul.f32 %v736, 1.442695
    %v739 = vpow.pop %v738
    %v740 = vmul.f32 %v737, 1.442695
    %v741 = vpow.pop %v740
    %v742 = vadd.f32 %v739, 1.0
    %v743 = vadd.f32 %v741, 1.0
    %v744 = vrcp.pop %v742
    %v745 = vmul.f32 1.0, %v744
    %v746 = vrcp.pop %v743
    %v747 = vmul.f32 1.0, %v746
    %v748 = vmul.f32 %v734, %v745
    %v749 = vmul.f32 %v735, %v747
    %v750 = vpack.c.bf16 %v749, %v748
    %752 = vset.pattern.permute.xlu0 0
    %753 = vperm.xlu0 %752, %v173
    %v754 = vpop.permute.xlu0 %753
    %757 = vset.pattern.permute.xlu0 0
    %758 = vperm.xlu0 %757, %v174
    %v759 = vpop.permute.xlu0 %758
    %v761 = vmul.f32 %v754, %v167
    %v762 = vmul.f32 %v759, %v168
    %763 = vadd.xlane.f32.xlu0 %v761
    %v764 = vpop.xlane.xlu0 %763
    %765 = vadd.xlane.f32.xlu0 %v762
    %v766 = vpop.xlane.xlu0 %765
    %v767 = vrcp.pop 8.0
    %v768 = vmul.f32 %v764, %v767
    %v769 = vmul.f32 %v766, %v767
    %v770 = vsub.f32 %v761, %v768
    %v771 = vsub.f32 %v762, %v769
    %v772 = vmul.f32 %v770, %v113
    %v773 = vmul.f32 %v771, %v113
    %v774 = vmul.f32 %v772, %v772
    %v775 = vmul.f32 %v773, %v773
    %776 = vadd.xlane.f32.xlu0 %v774
    %v777 = vpop.xlane.xlu0 %776
    %778 = vadd.xlane.f32.xlu0 %v775
    %v779 = vpop.xlane.xlu0 %778
    %v780 = vmul.f32 %v777, %v767
    %v781 = vmul.f32 %v779, %v767
    %v782 = vadd.f32 %v780, 1e-05
    %v783 = vadd.f32 %v781, 1e-05
    %v784 = vrsqrt.pop %v782
    %v785 = vrsqrt.pop %v783
    %v786 = vmul.f32 %v772, %v784
    %v787 = vmul.f32 %v773, %v785
    %v788 = vld [vmem:[%s7] sm:$0xf]
    %v789 = vld [vmem:[%s7 + $0x4] sm:$0xf]
    %v790 = vld [vmem:[%s7 + $0x8] sm:$0xf]
    %v791 = vld [vmem:[%s7 + $0xc] sm:$0xf]
    %v792 = vld [vmem:[%s7 + $0x10] sm:$0xf]
    %v793 = vld [vmem:[%s7 + $0x14] sm:$0xf]
    %v794 = vld [vmem:[%s7 + $0x18] sm:$0xf]
    %v795 = vld [vmem:[%s7 + $0x1c] sm:$0xf]
    %v796 = vld [vmem:[%s7 + $0x20] sm:$0xf]
    %v797 = vld [vmem:[%s7 + $0x24] sm:$0xf]
    %v798 = vld [vmem:[%s7 + $0x28] sm:$0xf]
    %v799 = vld [vmem:[%s7 + $0x2c] sm:$0xf]
    %v800 = vld [vmem:[%s7 + $0x30] sm:$0xf]
    %v801 = vld [vmem:[%s7 + $0x34] sm:$0xf]
    %v802 = vld [vmem:[%s7 + $0x38] sm:$0xf]
    %v803 = vld [vmem:[%s7 + $0x3c] sm:$0xf]
    %v820 = vunpack.c.l.b16 %v788
    %v821 = vunpack.c.l.b16 %v789
    %v822 = vunpack.c.l.b16 %v790
    %v823 = vunpack.c.l.b16 %v791
    %v824 = vunpack.c.l.b16 %v792
    %v825 = vunpack.c.l.b16 %v793
    %v826 = vunpack.c.l.b16 %v794
    %v827 = vunpack.c.l.b16 %v795
    %v828 = vunpack.c.l.b16 %v796
    %v829 = vunpack.c.l.b16 %v797
    %v830 = vunpack.c.l.b16 %v798
    %v831 = vunpack.c.l.b16 %v799
    %v832 = vunpack.c.l.b16 %v800
    %v833 = vunpack.c.l.b16 %v801
    %v834 = vunpack.c.l.b16 %v802
    %v835 = vunpack.c.l.b16 %v803
    %v836 = vpack.c.b16 %v821, %v820
    %v837 = vpack.c.b16 %v823, %v822
    %v838 = vpack.c.b16 %v825, %v824
    %v839 = vpack.c.b16 %v827, %v826
    %v840 = vpack.c.b16 %v829, %v828
    %v841 = vpack.c.b16 %v831, %v830
    %v842 = vpack.c.b16 %v833, %v832
    %v843 = vpack.c.b16 %v835, %v834
    %852 = vmatprep.subr.bf16.mxu0 0
    %853 = vmatpush1.bf16.msra.mxu0 %v843
    %854 = vmatprep.subr.bf16.mxu0 0
    %855 = vmatpush1.bf16.msra.mxu0 %v842
    %856 = vmatprep.subr.bf16.mxu0 0
    %857 = vmatpush1.bf16.msra.mxu0 %v841
    %858 = vmatprep.subr.bf16.mxu0 0
    %859 = vmatpush1.bf16.msra.mxu0 %v840
    %860 = vmatprep.subr.bf16.mxu0 0
    %861 = vmatpush1.bf16.msra.mxu0 %v839
    %862 = vmatprep.subr.bf16.mxu0 0
    %863 = vmatpush1.bf16.msra.mxu0 %v838
    %864 = vmatprep.subr.bf16.mxu0 0
    %865 = vmatpush1.bf16.msra.mxu0 %v837
    %866 = vmatprep.subr.bf16.mxu0 0
    %867 = vmatpush1.bf16.msra.mxu0 %v836
    %868 = vmatprep.subr.bf16.mxu0 0
    %869 = vmatpush2.bf16.msra.mxu0 0
    %870 = vmatprep.subr.bf16.mxu0 0
    %871 = vmatpush2.bf16.msra.mxu0 0
    %872 = vmatprep.subr.bf16.mxu0 0
    %873 = vmatpush2.bf16.msra.mxu0 0
    %874 = vmatprep.subr.bf16.mxu0 0
    %875 = vmatpush2.bf16.msra.mxu0 0
    %876 = vmatprep.subr.bf16.mxu0 0
    %877 = vmatpush2.bf16.msra.mxu0 0
    %878 = vmatprep.subr.bf16.mxu0 0
    %879 = vmatpush2.bf16.msra.mxu0 0
    %880 = vmatprep.subr.bf16.mxu0 0
    %881 = vmatpush2.bf16.msra.mxu0 0
    %882 = vmatprep.subr.bf16.mxu0 0
    %883 = vmatpush2.bf16.msra.mxu0 0
    %884 = vmatprep.mubr.bf16.mxu0 0
    %885 = vmatmul.mubr.bf16.gmra.mxu0 %v750
    %v886 = vpop.f32.mrf.mxu0
    %v887 = vadd.f32 1.0, %v886
    %v888 = vpop.f32.mrf.mxu0
    %v889 = vpop.f32.mrf.mxu0
    %v890 = vadd.f32 1.0, %v889
    %v891 = vpop.f32.mrf.mxu0
    %892 = vdwg.mxu0
    %v893 = vmul.f32 %v786, %v887
    %v894 = vmul.f32 %v787, %v890
    %v895 = vpack.c.bf16 %v894, %v893
    %v896 = vld [vmem:[%s8] sm:$0xf]
    %v897 = vld [vmem:[%s8 + $0x4] sm:$0xf]
    %v898 = vld [vmem:[%s8 + $0x8] sm:$0xf]
    %v899 = vld [vmem:[%s8 + $0xc] sm:$0xf]
    %v900 = vld [vmem:[%s8 + $0x10] sm:$0xf]
    %v901 = vld [vmem:[%s8 + $0x14] sm:$0xf]
    %v902 = vld [vmem:[%s8 + $0x18] sm:$0xf]
    %v903 = vld [vmem:[%s8 + $0x1c] sm:$0xf]
    %v904 = vld [vmem:[%s8 + $0x20] sm:$0xf]
    %v905 = vld [vmem:[%s8 + $0x24] sm:$0xf]
    %v906 = vld [vmem:[%s8 + $0x28] sm:$0xf]
    %v907 = vld [vmem:[%s8 + $0x2c] sm:$0xf]
    %v908 = vld [vmem:[%s8 + $0x30] sm:$0xf]
    %v909 = vld [vmem:[%s8 + $0x34] sm:$0xf]
    %v910 = vld [vmem:[%s8 + $0x38] sm:$0xf]
    %v911 = vld [vmem:[%s8 + $0x3c] sm:$0xf]
    %v912 = vld [vmem:[#allocation6] sm:$0x1]
    %v914 = vlaneseq
    %v915 = vshrl.u32 %v914, 7
    %v916 = vsub.s32 0, %v915
    %v917 = vrot.slane %v912, %v916
    %v935 = vunpack.c.l.b16 %v896
    %v936 = vunpack.c.l.b16 %v897
    %v937 = vunpack.c.l.b16 %v898
    %v938 = vunpack.c.l.b16 %v899
    %v939 = vunpack.c.l.b16 %v900
    %v940 = vunpack.c.l.b16 %v901
    %v941 = vunpack.c.l.b16 %v902
    %v942 = vunpack.c.l.b16 %v903
    %v943 = vunpack.c.l.b16 %v904
    %v944 = vunpack.c.l.b16 %v905
    %v945 = vunpack.c.l.b16 %v906
    %v946 = vunpack.c.l.b16 %v907
    %v947 = vunpack.c.l.b16 %v908
    %v948 = vunpack.c.l.b16 %v909
    %v949 = vunpack.c.l.b16 %v910
    %v950 = vunpack.c.l.b16 %v911
    %v951 = vpack.c.b16 %v936, %v935
    %v952 = vpack.c.b16 %v938, %v937
    %v953 = vpack.c.b16 %v940, %v939
    %v954 = vpack.c.b16 %v942, %v941
    %v955 = vpack.c.b16 %v944, %v943
    %v956 = vpack.c.b16 %v946, %v945
    %v957 = vpack.c.b16 %v948, %v947
    %v958 = vpack.c.b16 %v950, %v949
    %967 = vmatprep.subr.bf16.mxu0 0
    %968 = vmatpush1.bf16.msra.mxu0 %v958
    %969 = vmatprep.subr.bf16.mxu0 0
    %970 = vmatpush1.bf16.msra.mxu0 %v957
    %971 = vmatprep.subr.bf16.mxu0 0
    %972 = vmatpush1.bf16.msra.mxu0 %v956
    %973 = vmatprep.subr.bf16.mxu0 0
    %974 = vmatpush1.bf16.msra.mxu0 %v955
    %975 = vmatprep.subr.bf16.mxu0 0
    %976 = vmatpush1.bf16.msra.mxu0 %v954
    %977 = vmatprep.subr.bf16.mxu0 0
    %978 = vmatpush1.bf16.msra.mxu0 %v953
    %979 = vmatprep.subr.bf16.mxu0 0
    %980 = vmatpush1.bf16.msra.mxu0 %v952
    %981 = vmatprep.subr.bf16.mxu0 0
    %982 = vmatpush1.bf16.msra.mxu0 %v951
    %983 = vmatprep.subr.bf16.mxu0 0
    %984 = vmatpush2.bf16.msra.mxu0 0
    %985 = vmatprep.subr.bf16.mxu0 0
    %986 = vmatpush2.bf16.msra.mxu0 0
    %987 = vmatprep.subr.bf16.mxu0 0
    %988 = vmatpush2.bf16.msra.mxu0 0
    %989 = vmatprep.subr.bf16.mxu0 0
    %990 = vmatpush2.bf16.msra.mxu0 0
    %991 = vmatprep.subr.bf16.mxu0 0
    %992 = vmatpush2.bf16.msra.mxu0 0
    %993 = vmatprep.subr.bf16.mxu0 0
    %994 = vmatpush2.bf16.msra.mxu0 0
    %995 = vmatprep.subr.bf16.mxu0 0
    %996 = vmatpush2.bf16.msra.mxu0 0
    %997 = vmatprep.subr.bf16.mxu0 0
    %998 = vmatpush2.bf16.msra.mxu0 0
    %999 = vmatprep.mubr.bf16.mxu0 0
    %1000 = vmatmul.mubr.bf16.gmra.mxu0 %v895
    %v1001 = vpop.f32.mrf.mxu0
    %v1002 = vadd.f32 %v917, %v1001
    %v1003 = vpop.f32.mrf.mxu0
    %v1004 = vpop.f32.mrf.mxu0
    %v1005 = vadd.f32 %v917, %v1004
    %v1006 = vpop.f32.mrf.mxu0
    %1007 = vdwg.mxu0
    %v1008 = vxor.u32 %v1002, 2147483648
    %v1009 = vxor.u32 %v1005, 2147483648
    %v1010 = vmul.f32 %v1008, 1.442695
    %v1011 = vpow.pop %v1010
    %v1012 = vmul.f32 %v1009, 1.442695
    %v1013 = vpow.pop %v1012
    %v1014 = vadd.f32 %v1011, 1.0
    %v1015 = vadd.f32 %v1013, 1.0
    %v1016 = vrcp.pop %v1014
    %v1017 = vmul.f32 1.0, %v1016
    %v1018 = vrcp.pop %v1015
    %v1019 = vmul.f32 1.0, %v1018
    %v1020 = vmul.f32 %v1002, %v1017
    %v1021 = vmul.f32 %v1005, %v1019
    %v1022 = vpack.c.bf16 %v1021, %v1020
    %v1023 = vld [vmem:[%s10] sm:$0xf]
    %v1024 = vld [vmem:[%s10 + $0x4] sm:$0xf]
    %v1025 = vld [vmem:[%s10 + $0x8] sm:$0xf]
    %v1026 = vld [vmem:[%s10 + $0xc] sm:$0xf]
    %v1027 = vld [vmem:[%s10 + $0x10] sm:$0xf]
    %v1028 = vld [vmem:[%s10 + $0x14] sm:$0xf]
    %v1029 = vld [vmem:[%s10 + $0x18] sm:$0xf]
    %v1030 = vld [vmem:[%s10 + $0x1c] sm:$0xf]
    %v1031 = vld [vmem:[%s10 + $0x20] sm:$0xf]
    %v1032 = vld [vmem:[%s10 + $0x24] sm:$0xf]
    %v1033 = vld [vmem:[%s10 + $0x28] sm:$0xf]
    %v1034 = vld [vmem:[%s10 + $0x2c] sm:$0xf]
    %v1035 = vld [vmem:[%s10 + $0x30] sm:$0xf]
    %v1036 = vld [vmem:[%s10 + $0x34] sm:$0xf]
    %v1037 = vld [vmem:[%s10 + $0x38] sm:$0xf]
    %v1038 = vld [vmem:[%s10 + $0x3c] sm:$0xf]
    %v1039 = vld [vmem:[#allocation7] sm:$0x1]
    %v1041 = vlaneseq
    %v1042 = vshrl.u32 %v1041, 7
    %v1043 = vsub.s32 0, %v1042
    %v1044 = vrot.slane %v1039, %v1043
    %v1062 = vunpack.c.l.b16 %v1023
    %v1063 = vunpack.c.l.b16 %v1024
    %v1064 = vunpack.c.l.b16 %v1025
    %v1065 = vunpack.c.l.b16 %v1026
    %v1066 = vunpack.c.l.b16 %v1027
    %v1067 = vunpack.c.l.b16 %v1028
    %v1068 = vunpack.c.l.b16 %v1029
    %v1069 = vunpack.c.l.b16 %v1030
    %v1070 = vunpack.c.l.b16 %v1031
    %v1071 = vunpack.c.l.b16 %v1032
    %v1072 = vunpack.c.l.b16 %v1033
    %v1073 = vunpack.c.l.b16 %v1034
    %v1074 = vunpack.c.l.b16 %v1035
    %v1075 = vunpack.c.l.b16 %v1036
    %v1076 = vunpack.c.l.b16 %v1037
    %v1077 = vunpack.c.l.b16 %v1038
    %v1078 = vpack.c.b16 %v1063, %v1062
    %v1079 = vpack.c.b16 %v1065, %v1064
    %v1080 = vpack.c.b16 %v1067, %v1066
    %v1081 = vpack.c.b16 %v1069, %v1068
    %v1082 = vpack.c.b16 %v1071, %v1070
    %v1083 = vpack.c.b16 %v1073, %v1072
    %v1084 = vpack.c.b16 %v1075, %v1074
    %v1085 = vpack.c.b16 %v1077, %v1076
    %1094 = vmatprep.subr.bf16.mxu0 0
    %1095 = vmatpush1.bf16.msra.mxu0 %v1085
    %1096 = vmatprep.subr.bf16.mxu0 0
    %1097 = vmatpush1.bf16.msra.mxu0 %v1084
    %1098 = vmatprep.subr.bf16.mxu0 0
    %1099 = vmatpush1.bf16.msra.mxu0 %v1083
    %1100 = vmatprep.subr.bf16.mxu0 0
    %1101 = vmatpush1.bf16.msra.mxu0 %v1082
    %1102 = vmatprep.subr.bf16.mxu0 0
    %1103 = vmatpush1.bf16.msra.mxu0 %v1081
    %1104 = vmatprep.subr.bf16.mxu0 0
    %1105 = vmatpush1.bf16.msra.mxu0 %v1080
    %1106 = vmatprep.subr.bf16.mxu0 0
    %1107 = vmatpush1.bf16.msra.mxu0 %v1079
    %1108 = vmatprep.subr.bf16.mxu0 0
    %1109 = vmatpush1.bf16.msra.mxu0 %v1078
    %1110 = vmatprep.subr.bf16.mxu0 0
    %1111 = vmatpush2.bf16.msra.mxu0 0
    %1112 = vmatprep.subr.bf16.mxu0 0
    %1113 = vmatpush2.bf16.msra.mxu0 0
    %1114 = vmatprep.subr.bf16.mxu0 0
    %1115 = vmatpush2.bf16.msra.mxu0 0
    %1116 = vmatprep.subr.bf16.mxu0 0
    %1117 = vmatpush2.bf16.msra.mxu0 0
    %1118 = vmatprep.subr.bf16.mxu0 0
    %1119 = vmatpush2.bf16.msra.mxu0 0
    %1120 = vmatprep.subr.bf16.mxu0 0
    %1121 = vmatpush2.bf16.msra.mxu0 0
    %1122 = vmatprep.subr.bf16.mxu0 0
    %1123 = vmatpush2.bf16.msra.mxu0 0
    %1124 = vmatprep.subr.bf16.mxu0 0
    %1125 = vmatpush2.bf16.msra.mxu0 0
    %1126 = vmatprep.mubr.bf16.mxu0 0
    %1127 = vmatmul.mubr.bf16.gmra.mxu0 %v1022
    %v1128 = vpop.f32.mrf.mxu0
    %v1129 = vadd.f32 %v1044, %v1128
    %v1130 = vpop.f32.mrf.mxu0
    %v1131 = vpop.f32.mrf.mxu0
    %v1132 = vadd.f32 %v1044, %v1131
    %v1133 = vpop.f32.mrf.mxu0
    %1134 = vdwg.mxu0
    %v1135 = vld [vmem:[%s12] sm:$0xf]
    %v1136 = vld [vmem:[%s12 + $0x4] sm:$0xf]
    %v1137 = vld [vmem:[%s12 + $0x8] sm:$0xf]
    %v1138 = vld [vmem:[%s12 + $0xc] sm:$0xf]
    %v1139 = vld [vmem:[%s12 + $0x10] sm:$0xf]
    %v1140 = vld [vmem:[%s12 + $0x14] sm:$0xf]
    %v1141 = vld [vmem:[%s12 + $0x18] sm:$0xf]
    %v1142 = vld [vmem:[%s12 + $0x1c] sm:$0xf]
    %v1143 = vld [vmem:[%s12 + $0x20] sm:$0xf]
    %v1144 = vld [vmem:[%s12 + $0x24] sm:$0xf]
    %v1145 = vld [vmem:[%s12 + $0x28] sm:$0xf]
    %v1146 = vld [vmem:[%s12 + $0x2c] sm:$0xf]
    %v1147 = vld [vmem:[%s12 + $0x30] sm:$0xf]
    %v1148 = vld [vmem:[%s12 + $0x34] sm:$0xf]
    %v1149 = vld [vmem:[%s12 + $0x38] sm:$0xf]
    %v1150 = vld [vmem:[%s12 + $0x3c] sm:$0xf]
    %v1167 = vunpack.c.l.b16 %v1135
    %v1168 = vunpack.c.l.b16 %v1136
    %v1169 = vunpack.c.l.b16 %v1137
    %v1170 = vunpack.c.l.b16 %v1138
    %v1171 = vunpack.c.l.b16 %v1139
    %v1172 = vunpack.c.l.b16 %v1140
    %v1173 = vunpack.c.l.b16 %v1141
    %v1174 = vunpack.c.l.b16 %v1142
    %v1175 = vunpack.c.l.b16 %v1143
    %v1176 = vunpack.c.l.b16 %v1144
    %v1177 = vunpack.c.l.b16 %v1145
    %v1178 = vunpack.c.l.b16 %v1146
    %v1179 = vunpack.c.l.b16 %v1147
    %v1180 = vunpack.c.l.b16 %v1148
    %v1181 = vunpack.c.l.b16 %v1149
    %v1182 = vunpack.c.l.b16 %v1150
    %v1183 = vpack.c.b16 %v1168, %v1167
    %v1184 = vpack.c.b16 %v1170, %v1169
    %v1185 = vpack.c.b16 %v1172, %v1171
    %v1186 = vpack.c.b16 %v1174, %v1173
    %v1187 = vpack.c.b16 %v1176, %v1175
    %v1188 = vpack.c.b16 %v1178, %v1177
    %v1189 = vpack.c.b16 %v1180, %v1179
    %v1190 = vpack.c.b16 %v1182, %v1181
    %1199 = vmatprep.subr.bf16.mxu0 0
    %1200 = vmatpush1.bf16.msra.mxu0 %v1190
    %1201 = vmatprep.subr.bf16.mxu0 0
    %1202 = vmatpush1.bf16.msra.mxu0 %v1189
    %1203 = vmatprep.subr.bf16.mxu0 0
    %1204 = vmatpush1.bf16.msra.mxu0 %v1188
    %1205 = vmatprep.subr.bf16.mxu0 0
    %1206 = vmatpush1.bf16.msra.mxu0 %v1187
    %1207 = vmatprep.subr.bf16.mxu0 0
    %1208 = vmatpush1.bf16.msra.mxu0 %v1186
    %1209 = vmatprep.subr.bf16.mxu0 0
    %1210 = vmatpush1.bf16.msra.mxu0 %v1185
    %1211 = vmatprep.subr.bf16.mxu0 0
    %1212 = vmatpush1.bf16.msra.mxu0 %v1184
    %1213 = vmatprep.subr.bf16.mxu0 0
    %1214 = vmatpush1.bf16.msra.mxu0 %v1183
    %1215 = vmatprep.subr.bf16.mxu0 0
    %1216 = vmatpush2.bf16.msra.mxu0 0
    %1217 = vmatprep.subr.bf16.mxu0 0
    %1218 = vmatpush2.bf16.msra.mxu0 0
    %1219 = vmatprep.subr.bf16.mxu0 0
    %1220 = vmatpush2.bf16.msra.mxu0 0
    %1221 = vmatprep.subr.bf16.mxu0 0
    %1222 = vmatpush2.bf16.msra.mxu0 0
    %1223 = vmatprep.subr.bf16.mxu0 0
    %1224 = vmatpush2.bf16.msra.mxu0 0
    %1225 = vmatprep.subr.bf16.mxu0 0
    %1226 = vmatpush2.bf16.msra.mxu0 0
    %1227 = vmatprep.subr.bf16.mxu0 0
    %1228 = vmatpush2.bf16.msra.mxu0 0
    %1229 = vmatprep.subr.bf16.mxu0 0
    %1230 = vmatpush2.bf16.msra.mxu0 0
    %1231 = vmatprep.mubr.bf16.mxu0 0
    %1232 = vmatmul.mubr.bf16.gmra.mxu0 %v750
    %v1233 = vpop.f32.mrf.mxu0
    %v1234 = vadd.f32 1.0, %v1233
    %v1235 = vpop.f32.mrf.mxu0
    %v1236 = vpop.f32.mrf.mxu0
    %v1237 = vadd.f32 1.0, %v1236
    %v1238 = vpop.f32.mrf.mxu0
    %1239 = vdwg.mxu0
    %v1240 = vmul.f32 %v1129, %v1234
    %v1241 = vmul.f32 %v1132, %v1237
    %v1242 = vadd.f32 %v1240, %v761
    %v1243 = vadd.f32 %v1241, %v762
    %1244 = vadd.xlane.f32.xlu0 %v1242
    %v1245 = vpop.xlane.xlu0 %1244
    %1246 = vadd.xlane.f32.xlu0 %v1243
    %v1247 = vpop.xlane.xlu0 %1246
    %v1248 = vmul.f32 %v1245, %v767
    %v1249 = vmul.f32 %v1247, %v767
    %v1250 = vsub.f32 %v1242, %v1248
    %v1251 = vsub.f32 %v1243, %v1249
    %v1252 = vmul.f32 %v1250, %v113
    %v1253 = vmul.f32 %v1251, %v113
    %v1254 = vmul.f32 %v1252, %v1252
    %v1255 = vmul.f32 %v1253, %v1253
    %1256 = vadd.xlane.f32.xlu0 %v1254
    %v1257 = vpop.xlane.xlu0 %1256
    %1258 = vadd.xlane.f32.xlu0 %v1255
    %v1259 = vpop.xlane.xlu0 %1258
    %v1260 = vmul.f32 %v1257, %v767
    %v1261 = vmul.f32 %v1259, %v767
    %v1262 = vadd.f32 %v1260, 1e-05
    %v1263 = vadd.f32 %v1261, 1e-05
    %v1264 = vrsqrt.pop %v1262
    %v1265 = vrsqrt.pop %v1263
    %v1266 = vmul.f32 %v1252, %v1264
    %v1267 = vmul.f32 %v1253, %v1265
    %s1268 = scalar_lea.vmem %s7, 64
    %v1269 = vld [vmem:[%s1268] sm:$0xf]
    %v1270 = vld [vmem:[%s1268 + $0x4] sm:$0xf]
    %v1271 = vld [vmem:[%s1268 + $0x8] sm:$0xf]
    %v1272 = vld [vmem:[%s1268 + $0xc] sm:$0xf]
    %v1273 = vld [vmem:[%s1268 + $0x10] sm:$0xf]
    %v1274 = vld [vmem:[%s1268 + $0x14] sm:$0xf]
    %v1275 = vld [vmem:[%s1268 + $0x18] sm:$0xf]
    %v1276 = vld [vmem:[%s1268 + $0x1c] sm:$0xf]
    %v1277 = vld [vmem:[%s1268 + $0x20] sm:$0xf]
    %v1278 = vld [vmem:[%s1268 + $0x24] sm:$0xf]
    %v1279 = vld [vmem:[%s1268 + $0x28] sm:$0xf]
    %v1280 = vld [vmem:[%s1268 + $0x2c] sm:$0xf]
    %v1281 = vld [vmem:[%s1268 + $0x30] sm:$0xf]
    %v1282 = vld [vmem:[%s1268 + $0x34] sm:$0xf]
    %v1283 = vld [vmem:[%s1268 + $0x38] sm:$0xf]
    %v1284 = vld [vmem:[%s1268 + $0x3c] sm:$0xf]
    %v1301 = vunpack.c.l.b16 %v1269
    %v1302 = vunpack.c.l.b16 %v1270
    %v1303 = vunpack.c.l.b16 %v1271
    %v1304 = vunpack.c.l.b16 %v1272
    %v1305 = vunpack.c.l.b16 %v1273
    %v1306 = vunpack.c.l.b16 %v1274
    %v1307 = vunpack.c.l.b16 %v1275
    %v1308 = vunpack.c.l.b16 %v1276
    %v1309 = vunpack.c.l.b16 %v1277
    %v1310 = vunpack.c.l.b16 %v1278
    %v1311 = vunpack.c.l.b16 %v1279
    %v1312 = vunpack.c.l.b16 %v1280
    %v1313 = vunpack.c.l.b16 %v1281
    %v1314 = vunpack.c.l.b16 %v1282
    %v1315 = vunpack.c.l.b16 %v1283
    %v1316 = vunpack.c.l.b16 %v1284
    %v1317 = vpack.c.b16 %v1302, %v1301
    %v1318 = vpack.c.b16 %v1304, %v1303
    %v1319 = vpack.c.b16 %v1306, %v1305
    %v1320 = vpack.c.b16 %v1308, %v1307
    %v1321 = vpack.c.b16 %v1310, %v1309
    %v1322 = vpack.c.b16 %v1312, %v1311
    %v1323 = vpack.c.b16 %v1314, %v1313
    %v1324 = vpack.c.b16 %v1316, %v1315
    %1333 = vmatprep.subr.bf16.mxu0 0
    %1334 = vmatpush1.bf16.msra.mxu0 %v1324
    %1335 = vmatprep.subr.bf16.mxu0 0
    %1336 = vmatpush1.bf16.msra.mxu0 %v1323
    %1337 = vmatprep.subr.bf16.mxu0 0
    %1338 = vmatpush1.bf16.msra.mxu0 %v1322
    %1339 = vmatprep.subr.bf16.mxu0 0
    %1340 = vmatpush1.bf16.msra.mxu0 %v1321
    %1341 = vmatprep.subr.bf16.mxu0 0
    %1342 = vmatpush1.bf16.msra.mxu0 %v1320
    %1343 = vmatprep.subr.bf16.mxu0 0
    %1344 = vmatpush1.bf16.msra.mxu0 %v1319
    %1345 = vmatprep.subr.bf16.mxu0 0
    %1346 = vmatpush1.bf16.msra.mxu0 %v1318
    %1347 = vmatprep.subr.bf16.mxu0 0
    %1348 = vmatpush1.bf16.msra.mxu0 %v1317
    %1349 = vmatprep.subr.bf16.mxu0 0
    %1350 = vmatpush2.bf16.msra.mxu0 0
    %1351 = vmatprep.subr.bf16.mxu0 0
    %1352 = vmatpush2.bf16.msra.mxu0 0
    %1353 = vmatprep.subr.bf16.mxu0 0
    %1354 = vmatpush2.bf16.msra.mxu0 0
    %1355 = vmatprep.subr.bf16.mxu0 0
    %1356 = vmatpush2.bf16.msra.mxu0 0
    %1357 = vmatprep.subr.bf16.mxu0 0
    %1358 = vmatpush2.bf16.msra.mxu0 0
    %1359 = vmatprep.subr.bf16.mxu0 0
    %1360 = vmatpush2.bf16.msra.mxu0 0
    %1361 = vmatprep.subr.bf16.mxu0 0
    %1362 = vmatpush2.bf16.msra.mxu0 0
    %1363 = vmatprep.subr.bf16.mxu0 0
    %1364 = vmatpush2.bf16.msra.mxu0 0
    %1365 = vmatprep.mubr.bf16.mxu0 0
    %1366 = vmatmul.mubr.bf16.gmra.mxu0 %v750
    %v1367 = vpop.f32.mrf.mxu0
    %v1368 = vadd.f32 1.0, %v1367
    %v1369 = vpop.f32.mrf.mxu0
    %v1370 = vpop.f32.mrf.mxu0
    %v1371 = vadd.f32 1.0, %v1370
    %v1372 = vpop.f32.mrf.mxu0
    %1373 = vdwg.mxu0
    %v1374 = vmul.f32 %v1266, %v1368
    %v1375 = vmul.f32 %v1267, %v1371
    %v1376 = vpack.c.bf16 %v1375, %v1374
    %s1377 = scalar_lea.vmem %s8, 64
    %v1378 = vld [vmem:[%s1377] sm:$0xf]
    %v1379 = vld [vmem:[%s1377 + $0x4] sm:$0xf]
    %v1380 = vld [vmem:[%s1377 + $0x8] sm:$0xf]
    %v1381 = vld [vmem:[%s1377 + $0xc] sm:$0xf]
    %v1382 = vld [vmem:[%s1377 + $0x10] sm:$0xf]
    %v1383 = vld [vmem:[%s1377 + $0x14] sm:$0xf]
    %v1384 = vld [vmem:[%s1377 + $0x18] sm:$0xf]
    %v1385 = vld [vmem:[%s1377 + $0x1c] sm:$0xf]
    %v1386 = vld [vmem:[%s1377 + $0x20] sm:$0xf]
    %v1387 = vld [vmem:[%s1377 + $0x24] sm:$0xf]
    %v1388 = vld [vmem:[%s1377 + $0x28] sm:$0xf]
    %v1389 = vld [vmem:[%s1377 + $0x2c] sm:$0xf]
    %v1390 = vld [vmem:[%s1377 + $0x30] sm:$0xf]
    %v1391 = vld [vmem:[%s1377 + $0x34] sm:$0xf]
    %v1392 = vld [vmem:[%s1377 + $0x38] sm:$0xf]
    %v1393 = vld [vmem:[%s1377 + $0x3c] sm:$0xf]
    %s1394 = scalar_lea.vmem [#allocation6], 1
    %v1395 = vld [vmem:[%s1394] sm:$0x1]
    %v1397 = vlaneseq
    %v1398 = vshrl.u32 %v1397, 7
    %v1399 = vsub.s32 0, %v1398
    %v1400 = vrot.slane %v1395, %v1399
    %v1418 = vunpack.c.l.b16 %v1378
    %v1419 = vunpack.c.l.b16 %v1379
    %v1420 = vunpack.c.l.b16 %v1380
    %v1421 = vunpack.c.l.b16 %v1381
    %v1422 = vunpack.c.l.b16 %v1382
    %v1423 = vunpack.c.l.b16 %v1383
    %v1424 = vunpack.c.l.b16 %v1384
    %v1425 = vunpack.c.l.b16 %v1385
    %v1426 = vunpack.c.l.b16 %v1386
    %v1427 = vunpack.c.l.b16 %v1387
    %v1428 = vunpack.c.l.b16 %v1388
    %v1429 = vunpack.c.l.b16 %v1389
    %v1430 = vunpack.c.l.b16 %v1390
    %v1431 = vunpack.c.l.b16 %v1391
    %v1432 = vunpack.c.l.b16 %v1392
    %v1433 = vunpack.c.l.b16 %v1393
    %v1434 = vpack.c.b16 %v1419, %v1418
    %v1435 = vpack.c.b16 %v1421, %v1420
    %v1436 = vpack.c.b16 %v1423, %v1422
    %v1437 = vpack.c.b16 %v1425, %v1424
    %v1438 = vpack.c.b16 %v1427, %v1426
    %v1439 = vpack.c.b16 %v1429, %v1428
    %v1440 = vpack.c.b16 %v1431, %v1430
    %v1441 = vpack.c.b16 %v1433, %v1432
    %1450 = vmatprep.subr.bf16.mxu0 0
    %1451 = vmatpush1.bf16.msra.mxu0 %v1441
    %1452 = vmatprep.subr.bf16.mxu0 0
    %1453 = vmatpush1.bf16.msra.mxu0 %v1440
    %1454 = vmatprep.subr.bf16.mxu0 0
    %1455 = vmatpush1.bf16.msra.mxu0 %v1439
    %1456 = vmatprep.subr.bf16.mxu0 0
    %1457 = vmatpush1.bf16.msra.mxu0 %v1438
    %1458 = vmatprep.subr.bf16.mxu0 0
    %1459 = vmatpush1.bf16.msra.mxu0 %v1437
    %1460 = vmatprep.subr.bf16.mxu0 0
    %1461 = vmatpush1.bf16.msra.mxu0 %v1436
    %1462 = vmatprep.subr.bf16.mxu0 0
    %1463 = vmatpush1.bf16.msra.mxu0 %v1435
    %1464 = vmatprep.subr.bf16.mxu0 0
    %1465 = vmatpush1.bf16.msra.mxu0 %v1434
    %1466 = vmatprep.subr.bf16.mxu0 0
    %1467 = vmatpush2.bf16.msra.mxu0 0
    %1468 = vmatprep.subr.bf16.mxu0 0
    %1469 = vmatpush2.bf16.msra.mxu0 0
    %1470 = vmatprep.subr.bf16.mxu0 0
    %1471 = vmatpush2.bf16.msra.mxu0 0
    %1472 = vmatprep.subr.bf16.mxu0 0
    %1473 = vmatpush2.bf16.msra.mxu0 0
    %1474 = vmatprep.subr.bf16.mxu0 0
    %1475 = vmatpush2.bf16.msra.mxu0 0
    %1476 = vmatprep.subr.bf16.mxu0 0
    %1477 = vmatpush2.bf16.msra.mxu0 0
    %1478 = vmatprep.subr.bf16.mxu0 0
    %1479 = vmatpush2.bf16.msra.mxu0 0
    %1480 = vmatprep.subr.bf16.mxu0 0
    %1481 = vmatpush2.bf16.msra.mxu0 0
    %1482 = vmatprep.mubr.bf16.mxu0 0
    %1483 = vmatmul.mubr.bf16.gmra.mxu0 %v1376
    %v1484 = vpop.f32.mrf.mxu0
    %v1485 = vadd.f32 %v1400, %v1484
    %v1486 = vpop.f32.mrf.mxu0
    %v1487 = vpop.f32.mrf.mxu0
    %v1488 = vadd.f32 %v1400, %v1487
    %v1489 = vpop.f32.mrf.mxu0
    %1490 = vdwg.mxu0
    %v1491 = vxor.u32 %v1485, 2147483648
    %v1492 = vxor.u32 %v1488, 2147483648
    %v1493 = vmul.f32 %v1491, 1.442695
    %v1494 = vpow.pop %v1493
    %v1495 = vmul.f32 %v1492, 1.442695
    %v1496 = vpow.pop %v1495
    %v1497 = vadd.f32 %v1494, 1.0
    %v1498 = vadd.f32 %v1496, 1.0
    %v1499 = vrcp.pop %v1497
    %v1500 = vmul.f32 1.0, %v1499
    %v1501 = vrcp.pop %v1498
    %v1502 = vmul.f32 1.0, %v1501
    %v1503 = vmul.f32 %v1485, %v1500
    %v1504 = vmul.f32 %v1488, %v1502
    %v1505 = vpack.c.bf16 %v1504, %v1503
    %s1506 = scalar_lea.vmem %s10, 64
    %v1507 = vld [vmem:[%s1506] sm:$0xf]
    %v1508 = vld [vmem:[%s1506 + $0x4] sm:$0xf]
    %v1509 = vld [vmem:[%s1506 + $0x8] sm:$0xf]
    %v1510 = vld [vmem:[%s1506 + $0xc] sm:$0xf]
    %v1511 = vld [vmem:[%s1506 + $0x10] sm:$0xf]
    %v1512 = vld [vmem:[%s1506 + $0x14] sm:$0xf]
    %v1513 = vld [vmem:[%s1506 + $0x18] sm:$0xf]
    %v1514 = vld [vmem:[%s1506 + $0x1c] sm:$0xf]
    %v1515 = vld [vmem:[%s1506 + $0x20] sm:$0xf]
    %v1516 = vld [vmem:[%s1506 + $0x24] sm:$0xf]
    %v1517 = vld [vmem:[%s1506 + $0x28] sm:$0xf]
    %v1518 = vld [vmem:[%s1506 + $0x2c] sm:$0xf]
    %v1519 = vld [vmem:[%s1506 + $0x30] sm:$0xf]
    %v1520 = vld [vmem:[%s1506 + $0x34] sm:$0xf]
    %v1521 = vld [vmem:[%s1506 + $0x38] sm:$0xf]
    %v1522 = vld [vmem:[%s1506 + $0x3c] sm:$0xf]
    %s1523 = scalar_lea.vmem [#allocation7], 1
    %v1524 = vld [vmem:[%s1523] sm:$0x1]
    %v1526 = vlaneseq
    %v1527 = vshrl.u32 %v1526, 7
    %v1528 = vsub.s32 0, %v1527
    %v1529 = vrot.slane %v1524, %v1528
    %v1547 = vunpack.c.l.b16 %v1507
    %v1548 = vunpack.c.l.b16 %v1508
    %v1549 = vunpack.c.l.b16 %v1509
    %v1550 = vunpack.c.l.b16 %v1510
    %v1551 = vunpack.c.l.b16 %v1511
    %v1552 = vunpack.c.l.b16 %v1512
    %v1553 = vunpack.c.l.b16 %v1513
    %v1554 = vunpack.c.l.b16 %v1514
    %v1555 = vunpack.c.l.b16 %v1515
    %v1556 = vunpack.c.l.b16 %v1516
    %v1557 = vunpack.c.l.b16 %v1517
    %v1558 = vunpack.c.l.b16 %v1518
    %v1559 = vunpack.c.l.b16 %v1519
    %v1560 = vunpack.c.l.b16 %v1520
    %v1561 = vunpack.c.l.b16 %v1521
    %v1562 = vunpack.c.l.b16 %v1522
    %v1563 = vpack.c.b16 %v1548, %v1547
    %v1564 = vpack.c.b16 %v1550, %v1549
    %v1565 = vpack.c.b16 %v1552, %v1551
    %v1566 = vpack.c.b16 %v1554, %v1553
    %v1567 = vpack.c.b16 %v1556, %v1555
    %v1568 = vpack.c.b16 %v1558, %v1557
    %v1569 = vpack.c.b16 %v1560, %v1559
    %v1570 = vpack.c.b16 %v1562, %v1561
    %1579 = vmatprep.subr.bf16.mxu0 0
    %1580 = vmatpush1.bf16.msra.mxu0 %v1570
    %1581 = vmatprep.subr.bf16.mxu0 0
    %1582 = vmatpush1.bf16.msra.mxu0 %v1569
    %1583 = vmatprep.subr.bf16.mxu0 0
    %1584 = vmatpush1.bf16.msra.mxu0 %v1568
    %1585 = vmatprep.subr.bf16.mxu0 0
    %1586 = vmatpush1.bf16.msra.mxu0 %v1567
    %1587 = vmatprep.subr.bf16.mxu0 0
    %1588 = vmatpush1.bf16.msra.mxu0 %v1566
    %1589 = vmatprep.subr.bf16.mxu0 0
    %1590 = vmatpush1.bf16.msra.mxu0 %v1565
    %1591 = vmatprep.subr.bf16.mxu0 0
    %1592 = vmatpush1.bf16.msra.mxu0 %v1564
    %1593 = vmatprep.subr.bf16.mxu0 0
    %1594 = vmatpush1.bf16.msra.mxu0 %v1563
    %1595 = vmatprep.subr.bf16.mxu0 0
    %1596 = vmatpush2.bf16.msra.mxu0 0
    %1597 = vmatprep.subr.bf16.mxu0 0
    %1598 = vmatpush2.bf16.msra.mxu0 0
    %1599 = vmatprep.subr.bf16.mxu0 0
    %1600 = vmatpush2.bf16.msra.mxu0 0
    %1601 = vmatprep.subr.bf16.mxu0 0
    %1602 = vmatpush2.bf16.msra.mxu0 0
    %1603 = vmatprep.subr.bf16.mxu0 0
    %1604 = vmatpush2.bf16.msra.mxu0 0
    %1605 = vmatprep.subr.bf16.mxu0 0
    %1606 = vmatpush2.bf16.msra.mxu0 0
    %1607 = vmatprep.subr.bf16.mxu0 0
    %1608 = vmatpush2.bf16.msra.mxu0 0
    %1609 = vmatprep.subr.bf16.mxu0 0
    %1610 = vmatpush2.bf16.msra.mxu0 0
    %1611 = vmatprep.mubr.bf16.mxu0 0
    %1612 = vmatmul.mubr.bf16.gmra.mxu0 %v1505
    %v1613 = vpop.f32.mrf.mxu0
    %v1614 = vadd.f32 %v1529, %v1613
    %v1615 = vpop.f32.mrf.mxu0
    %v1616 = vpop.f32.mrf.mxu0
    %v1617 = vadd.f32 %v1529, %v1616
    %v1618 = vpop.f32.mrf.mxu0
    %1619 = vdwg.mxu0
    %s1620 = scalar_lea.vmem %s12, 64
    %v1621 = vld [vmem:[%s1620] sm:$0xf]
    %v1622 = vld [vmem:[%s1620 + $0x4] sm:$0xf]
    %v1623 = vld [vmem:[%s1620 + $0x8] sm:$0xf]
    %v1624 = vld [vmem:[%s1620 + $0xc] sm:$0xf]
    %v1625 = vld [vmem:[%s1620 + $0x10] sm:$0xf]
    %v1626 = vld [vmem:[%s1620 + $0x14] sm:$0xf]
    %v1627 = vld [vmem:[%s1620 + $0x18] sm:$0xf]
    %v1628 = vld [vmem:[%s1620 + $0x1c] sm:$0xf]
    %v1629 = vld [vmem:[%s1620 + $0x20] sm:$0xf]
    %v1630 = vld [vmem:[%s1620 + $0x24] sm:$0xf]
    %v1631 = vld [vmem:[%s1620 + $0x28] sm:$0xf]
    %v1632 = vld [vmem:[%s1620 + $0x2c] sm:$0xf]
    %v1633 = vld [vmem:[%s1620 + $0x30] sm:$0xf]
    %v1634 = vld [vmem:[%s1620 + $0x34] sm:$0xf]
    %v1635 = vld [vmem:[%s1620 + $0x38] sm:$0xf]
    %v1636 = vld [vmem:[%s1620 + $0x3c] sm:$0xf]
    %v1653 = vunpack.c.l.b16 %v1621
    %v1654 = vunpack.c.l.b16 %v1622
    %v1655 = vunpack.c.l.b16 %v1623
    %v1656 = vunpack.c.l.b16 %v1624
    %v1657 = vunpack.c.l.b16 %v1625
    %v1658 = vunpack.c.l.b16 %v1626
    %v1659 = vunpack.c.l.b16 %v1627
    %v1660 = vunpack.c.l.b16 %v1628
    %v1661 = vunpack.c.l.b16 %v1629
    %v1662 = vunpack.c.l.b16 %v1630
    %v1663 = vunpack.c.l.b16 %v1631
    %v1664 = vunpack.c.l.b16 %v1632
    %v1665 = vunpack.c.l.b16 %v1633
    %v1666 = vunpack.c.l.b16 %v1634
    %v1667 = vunpack.c.l.b16 %v1635
    %v1668 = vunpack.c.l.b16 %v1636
    %v1669 = vpack.c.b16 %v1654, %v1653
    %v1670 = vpack.c.b16 %v1656, %v1655
    %v1671 = vpack.c.b16 %v1658, %v1657
    %v1672 = vpack.c.b16 %v1660, %v1659
    %v1673 = vpack.c.b16 %v1662, %v1661
    %v1674 = vpack.c.b16 %v1664, %v1663
    %v1675 = vpack.c.b16 %v1666, %v1665
    %v1676 = vpack.c.b16 %v1668, %v1667
    %1685 = vmatprep.subr.bf16.mxu0 0
    %1686 = vmatpush1.bf16.msra.mxu0 %v1676
    %1687 = vmatprep.subr.bf16.mxu0 0
    %1688 = vmatpush1.bf16.msra.mxu0 %v1675
    %1689 = vmatprep.subr.bf16.mxu0 0
    %1690 = vmatpush1.bf16.msra.mxu0 %v1674
    %1691 = vmatprep.subr.bf16.mxu0 0
    %1692 = vmatpush1.bf16.msra.mxu0 %v1673
    %1693 = vmatprep.subr.bf16.mxu0 0
    %1694 = vmatpush1.bf16.msra.mxu0 %v1672
    %1695 = vmatprep.subr.bf16.mxu0 0
    %1696 = vmatpush1.bf16.msra.mxu0 %v1671
    %1697 = vmatprep.subr.bf16.mxu0 0
    %1698 = vmatpush1.bf16.msra.mxu0 %v1670
    %1699 = vmatprep.subr.bf16.mxu0 0
    %1700 = vmatpush1.bf16.msra.mxu0 %v1669
    %1701 = vmatprep.subr.bf16.mxu0 0
    %1702 = vmatpush2.bf16.msra.mxu0 0
    %1703 = vmatprep.subr.bf16.mxu0 0
    %1704 = vmatpush2.bf16.msra.mxu0 0
    %1705 = vmatprep.subr.bf16.mxu0 0
    %1706 = vmatpush2.bf16.msra.mxu0 0
    %1707 = vmatprep.subr.bf16.mxu0 0
    %1708 = vmatpush2.bf16.msra.mxu0 0
    %1709 = vmatprep.subr.bf16.mxu0 0
    %1710 = vmatpush2.bf16.msra.mxu0 0
    %1711 = vmatprep.subr.bf16.mxu0 0
    %1712 = vmatpush2.bf16.msra.mxu0 0
    %1713 = vmatprep.subr.bf16.mxu0 0
    %1714 = vmatpush2.bf16.msra.mxu0 0
    %1715 = vmatprep.subr.bf16.mxu0 0
    %1716 = vmatpush2.bf16.msra.mxu0 0
    %1717 = vmatprep.mubr.bf16.mxu0 0
    %1718 = vmatmul.mubr.bf16.gmra.mxu0 %v750
    %v1719 = vpop.f32.mrf.mxu0
    %v1720 = vadd.f32 1.0, %v1719
    %v1721 = vpop.f32.mrf.mxu0
    %v1722 = vpop.f32.mrf.mxu0
    %v1723 = vadd.f32 1.0, %v1722
    %v1724 = vpop.f32.mrf.mxu0
    %1725 = vdwg.mxu0
    %v1726 = vmul.f32 %v1614, %v1720
    %v1727 = vmul.f32 %v1617, %v1723
    %v1728 = vadd.f32 %v1726, %v1242
    %v1729 = vadd.f32 %v1727, %v1243
    %1730 = vadd.xlane.f32.xlu0 %v1728
    %v1731 = vpop.xlane.xlu0 %1730
    %1732 = vadd.xlane.f32.xlu0 %v1729
    %v1733 = vpop.xlane.xlu0 %1732
    %v1734 = vmul.f32 %v1731, %v767
    %v1735 = vmul.f32 %v1733, %v767
    %v1736 = vsub.f32 %v1728, %v1734
    %v1737 = vsub.f32 %v1729, %v1735
    %v1738 = vmul.f32 %v1736, %v113
    %v1739 = vmul.f32 %v1737, %v113
    %v1740 = vmul.f32 %v1738, %v1738
    %v1741 = vmul.f32 %v1739, %v1739
    %1742 = vadd.xlane.f32.xlu0 %v1740
    %v1743 = vpop.xlane.xlu0 %1742
    %1744 = vadd.xlane.f32.xlu0 %v1741
    %v1745 = vpop.xlane.xlu0 %1744
    %v1746 = vmul.f32 %v1743, %v767
    %v1747 = vmul.f32 %v1745, %v767
    %v1748 = vadd.f32 %v1746, 1e-05
    %v1749 = vadd.f32 %v1747, 1e-05
    %v1750 = vrsqrt.pop %v1748
    %v1751 = vrsqrt.pop %v1749
    %v1752 = vmul.f32 %v1738, %v1750
    %v1753 = vmul.f32 %v1739, %v1751
    %s1754 = scalar_lea.vmem %s7, 128
    %v1755 = vld [vmem:[%s1754] sm:$0xf]
    %v1756 = vld [vmem:[%s1754 + $0x4] sm:$0xf]
    %v1757 = vld [vmem:[%s1754 + $0x8] sm:$0xf]
    %v1758 = vld [vmem:[%s1754 + $0xc] sm:$0xf]
    %v1759 = vld [vmem:[%s1754 + $0x10] sm:$0xf]
    %v1760 = vld [vmem:[%s1754 + $0x14] sm:$0xf]
    %v1761 = vld [vmem:[%s1754 + $0x18] sm:$0xf]
    %v1762 = vld [vmem:[%s1754 + $0x1c] sm:$0xf]
    %v1763 = vld [vmem:[%s1754 + $0x20] sm:$0xf]
    %v1764 = vld [vmem:[%s1754 + $0x24] sm:$0xf]
    %v1765 = vld [vmem:[%s1754 + $0x28] sm:$0xf]
    %v1766 = vld [vmem:[%s1754 + $0x2c] sm:$0xf]
    %v1767 = vld [vmem:[%s1754 + $0x30] sm:$0xf]
    %v1768 = vld [vmem:[%s1754 + $0x34] sm:$0xf]
    %v1769 = vld [vmem:[%s1754 + $0x38] sm:$0xf]
    %v1770 = vld [vmem:[%s1754 + $0x3c] sm:$0xf]
    %v1787 = vunpack.c.l.b16 %v1755
    %v1788 = vunpack.c.l.b16 %v1756
    %v1789 = vunpack.c.l.b16 %v1757
    %v1790 = vunpack.c.l.b16 %v1758
    %v1791 = vunpack.c.l.b16 %v1759
    %v1792 = vunpack.c.l.b16 %v1760
    %v1793 = vunpack.c.l.b16 %v1761
    %v1794 = vunpack.c.l.b16 %v1762
    %v1795 = vunpack.c.l.b16 %v1763
    %v1796 = vunpack.c.l.b16 %v1764
    %v1797 = vunpack.c.l.b16 %v1765
    %v1798 = vunpack.c.l.b16 %v1766
    %v1799 = vunpack.c.l.b16 %v1767
    %v1800 = vunpack.c.l.b16 %v1768
    %v1801 = vunpack.c.l.b16 %v1769
    %v1802 = vunpack.c.l.b16 %v1770
    %v1803 = vpack.c.b16 %v1788, %v1787
    %v1804 = vpack.c.b16 %v1790, %v1789
    %v1805 = vpack.c.b16 %v1792, %v1791
    %v1806 = vpack.c.b16 %v1794, %v1793
    %v1807 = vpack.c.b16 %v1796, %v1795
    %v1808 = vpack.c.b16 %v1798, %v1797
    %v1809 = vpack.c.b16 %v1800, %v1799
    %v1810 = vpack.c.b16 %v1802, %v1801
    %1819 = vmatprep.subr.bf16.mxu0 0
    %1820 = vmatpush1.bf16.msra.mxu0 %v1810
    %1821 = vmatprep.subr.bf16.mxu0 0
    %1822 = vmatpush1.bf16.msra.mxu0 %v1809
    %1823 = vmatprep.subr.bf16.mxu0 0
    %1824 = vmatpush1.bf16.msra.mxu0 %v1808
    %1825 = vmatprep.subr.bf16.mxu0 0
    %1826 = vmatpush1.bf16.msra.mxu0 %v1807
    %1827 = vmatprep.subr.bf16.mxu0 0
    %1828 = vmatpush1.bf16.msra.mxu0 %v1806
    %1829 = vmatprep.subr.bf16.mxu0 0
    %1830 = vmatpush1.bf16.msra.mxu0 %v1805
    %1831 = vmatprep.subr.bf16.mxu0 0
    %1832 = vmatpush1.bf16.msra.mxu0 %v1804
    %1833 = vmatprep.subr.bf16.mxu0 0
    %1834 = vmatpush1.bf16.msra.mxu0 %v1803
    %1835 = vmatprep.subr.bf16.mxu0 0
    %1836 = vmatpush2.bf16.msra.mxu0 0
    %1837 = vmatprep.subr.bf16.mxu0 0
    %1838 = vmatpush2.bf16.msra.mxu0 0
    %1839 = vmatprep.subr.bf16.mxu0 0
    %1840 = vmatpush2.bf16.msra.mxu0 0
    %1841 = vmatprep.subr.bf16.mxu0 0
    %1842 = vmatpush2.bf16.msra.mxu0 0
    %1843 = vmatprep.subr.bf16.mxu0 0
    %1844 = vmatpush2.bf16.msra.mxu0 0
    %1845 = vmatprep.subr.bf16.mxu0 0
    %1846 = vmatpush2.bf16.msra.mxu0 0
    %1847 = vmatprep.subr.bf16.mxu0 0
    %1848 = vmatpush2.bf16.msra.mxu0 0
    %1849 = vmatprep.subr.bf16.mxu0 0
    %1850 = vmatpush2.bf16.msra.mxu0 0
    %1851 = vmatprep.mubr.bf16.mxu0 0
    %1852 = vmatmul.mubr.bf16.gmra.mxu0 %v750
    %v1853 = vpop.f32.mrf.mxu0
    %v1854 = vadd.f32 1.0, %v1853
    %v1855 = vpop.f32.mrf.mxu0
    %v1856 = vpop.f32.mrf.mxu0
    %v1857 = vadd.f32 1.0, %v1856
    %v1858 = vpop.f32.mrf.mxu0
    %1859 = vdwg.mxu0
    %v1860 = vmul.f32 %v1752, %v1854
    %v1861 = vmul.f32 %v1753, %v1857
    %v1862 = vpack.c.bf16 %v1861, %v1860
    %s1863 = scalar_lea.vmem %s8, 128
    %v1864 = vld [vmem:[%s1863] sm:$0xf]
    %v1865 = vld [vmem:[%s1863 + $0x4] sm:$0xf]
    %v1866 = vld [vmem:[%s1863 + $0x8] sm:$0xf]
    %v1867 = vld [vmem:[%s1863 + $0xc] sm:$0xf]
    %v1868 = vld [vmem:[%s1863 + $0x10] sm:$0xf]
    %v1869 = vld [vmem:[%s1863 + $0x14] sm:$0xf]
    %v1870 = vld [vmem:[%s1863 + $0x18] sm:$0xf]
    %v1871 = vld [vmem:[%s1863 + $0x1c] sm:$0xf]
    %v1872 = vld [vmem:[%s1863 + $0x20] sm:$0xf]
    %v1873 = vld [vmem:[%s1863 + $0x24] sm:$0xf]
    %v1874 = vld [vmem:[%s1863 + $0x28] sm:$0xf]
    %v1875 = vld [vmem:[%s1863 + $0x2c] sm:$0xf]
    %v1876 = vld [vmem:[%s1863 + $0x30] sm:$0xf]
    %v1877 = vld [vmem:[%s1863 + $0x34] sm:$0xf]
    %v1878 = vld [vmem:[%s1863 + $0x38] sm:$0xf]
    %v1879 = vld [vmem:[%s1863 + $0x3c] sm:$0xf]
    %s1880 = scalar_lea.vmem [#allocation6], 2
    %v1881 = vld [vmem:[%s1880] sm:$0x1]
    %v1883 = vlaneseq
    %v1884 = vshrl.u32 %v1883, 7
    %v1885 = vsub.s32 0, %v1884
    %v1886 = vrot.slane %v1881, %v1885
    %v1904 = vunpack.c.l.b16 %v1864
    %v1905 = vunpack.c.l.b16 %v1865
    %v1906 = vunpack.c.l.b16 %v1866
    %v1907 = vunpack.c.l.b16 %v1867
    %v1908 = vunpack.c.l.b16 %v1868
    %v1909 = vunpack.c.l.b16 %v1869
    %v1910 = vunpack.c.l.b16 %v1870
    %v1911 = vunpack.c.l.b16 %v1871
    %v1912 = vunpack.c.l.b16 %v1872
    %v1913 = vunpack.c.l.b16 %v1873
    %v1914 = vunpack.c.l.b16 %v1874
    %v1915 = vunpack.c.l.b16 %v1875
    %v1916 = vunpack.c.l.b16 %v1876
    %v1917 = vunpack.c.l.b16 %v1877
    %v1918 = vunpack.c.l.b16 %v1878
    %v1919 = vunpack.c.l.b16 %v1879
    %v1920 = vpack.c.b16 %v1905, %v1904
    %v1921 = vpack.c.b16 %v1907, %v1906
    %v1922 = vpack.c.b16 %v1909, %v1908
    %v1923 = vpack.c.b16 %v1911, %v1910
    %v1924 = vpack.c.b16 %v1913, %v1912
    %v1925 = vpack.c.b16 %v1915, %v1914
    %v1926 = vpack.c.b16 %v1917, %v1916
    %v1927 = vpack.c.b16 %v1919, %v1918
    %1936 = vmatprep.subr.bf16.mxu0 0
    %1937 = vmatpush1.bf16.msra.mxu0 %v1927
    %1938 = vmatprep.subr.bf16.mxu0 0
    %1939 = vmatpush1.bf16.msra.mxu0 %v1926
    %1940 = vmatprep.subr.bf16.mxu0 0
    %1941 = vmatpush1.bf16.msra.mxu0 %v1925
    %1942 = vmatprep.subr.bf16.mxu0 0
    %1943 = vmatpush1.bf16.msra.mxu0 %v1924
    %1944 = vmatprep.subr.bf16.mxu0 0
    %1945 = vmatpush1.bf16.msra.mxu0 %v1923
    %1946 = vmatprep.subr.bf16.mxu0 0
    %1947 = vmatpush1.bf16.msra.mxu0 %v1922
    %1948 = vmatprep.subr.bf16.mxu0 0
    %1949 = vmatpush1.bf16.msra.mxu0 %v1921
    %1950 = vmatprep.subr.bf16.mxu0 0
    %1951 = vmatpush1.bf16.msra.mxu0 %v1920
    %1952 = vmatprep.subr.bf16.mxu0 0
    %1953 = vmatpush2.bf16.msra.mxu0 0
    %1954 = vmatprep.subr.bf16.mxu0 0
    %1955 = vmatpush2.bf16.msra.mxu0 0
    %1956 = vmatprep.subr.bf16.mxu0 0
    %1957 = vmatpush2.bf16.msra.mxu0 0
    %1958 = vmatprep.subr.bf16.mxu0 0
    %1959 = vmatpush2.bf16.msra.mxu0 0
    %1960 = vmatprep.subr.bf16.mxu0 0
    %1961 = vmatpush2.bf16.msra.mxu0 0
    %1962 = vmatprep.subr.bf16.mxu0 0
    %1963 = vmatpush2.bf16.msra.mxu0 0
    %1964 = vmatprep.subr.bf16.mxu0 0
    %1965 = vmatpush2.bf16.msra.mxu0 0
    %1966 = vmatprep.subr.bf16.mxu0 0
    %1967 = vmatpush2.bf16.msra.mxu0 0
    %1968 = vmatprep.mubr.bf16.mxu0 0
    %1969 = vmatmul.mubr.bf16.gmra.mxu0 %v1862
    %v1970 = vpop.f32.mrf.mxu0
    %v1971 = vadd.f32 %v1886, %v1970
    %v1972 = vpop.f32.mrf.mxu0
    %v1973 = vpop.f32.mrf.mxu0
    %v1974 = vadd.f32 %v1886, %v1973
    %v1975 = vpop.f32.mrf.mxu0
    %1976 = vdwg.mxu0
    %v1977 = vxor.u32 %v1971, 2147483648
    %v1978 = vxor.u32 %v1974, 2147483648
    %v1979 = vmul.f32 %v1977, 1.442695
    %v1980 = vpow.pop %v1979
    %v1981 = vmul.f32 %v1978, 1.442695
    %v1982 = vpow.pop %v1981
    %v1983 = vadd.f32 %v1980, 1.0
    %v1984 = vadd.f32 %v1982, 1.0
    %v1985 = vrcp.pop %v1983
    %v1986 = vmul.f32 1.0, %v1985
    %v1987 = vrcp.pop %v1984
    %v1988 = vmul.f32 1.0, %v1987
    %v1989 = vmul.f32 %v1971, %v1986
    %v1990 = vmul.f32 %v1974, %v1988
    %v1991 = vpack.c.bf16 %v1990, %v1989
    %s1992 = scalar_lea.vmem %s10, 128
    %v1993 = vld [vmem:[%s1992] sm:$0xf]
    %v1994 = vld [vmem:[%s1992 + $0x4] sm:$0xf]
    %v1995 = vld [vmem:[%s1992 + $0x8] sm:$0xf]
    %v1996 = vld [vmem:[%s1992 + $0xc] sm:$0xf]
    %v1997 = vld [vmem:[%s1992 + $0x10] sm:$0xf]
    %v1998 = vld [vmem:[%s1992 + $0x14] sm:$0xf]
    %v1999 = vld [vmem:[%s1992 + $0x18] sm:$0xf]
    %v2000 = vld [vmem:[%s1992 + $0x1c] sm:$0xf]
    %v2001 = vld [vmem:[%s1992 + $0x20] sm:$0xf]
    %v2002 = vld [vmem:[%s1992 + $0x24] sm:$0xf]
    %v2003 = vld [vmem:[%s1992 + $0x28] sm:$0xf]
    %v2004 = vld [vmem:[%s1992 + $0x2c] sm:$0xf]
    %v2005 = vld [vmem:[%s1992 + $0x30] sm:$0xf]
    %v2006 = vld [vmem:[%s1992 + $0x34] sm:$0xf]
    %v2007 = vld [vmem:[%s1992 + $0x38] sm:$0xf]
    %v2008 = vld [vmem:[%s1992 + $0x3c] sm:$0xf]
    %s2009 = scalar_lea.vmem [#allocation7], 2
    %v2010 = vld [vmem:[%s2009] sm:$0x1]
    %v2012 = vlaneseq
    %v2013 = vshrl.u32 %v2012, 7
    %v2014 = vsub.s32 0, %v2013
    %v2015 = vrot.slane %v2010, %v2014
    %v2033 = vunpack.c.l.b16 %v1993
    %v2034 = vunpack.c.l.b16 %v1994
    %v2035 = vunpack.c.l.b16 %v1995
    %v2036 = vunpack.c.l.b16 %v1996
    %v2037 = vunpack.c.l.b16 %v1997
    %v2038 = vunpack.c.l.b16 %v1998
    %v2039 = vunpack.c.l.b16 %v1999
    %v2040 = vunpack.c.l.b16 %v2000
    %v2041 = vunpack.c.l.b16 %v2001
    %v2042 = vunpack.c.l.b16 %v2002
    %v2043 = vunpack.c.l.b16 %v2003
    %v2044 = vunpack.c.l.b16 %v2004
    %v2045 = vunpack.c.l.b16 %v2005
    %v2046 = vunpack.c.l.b16 %v2006
    %v2047 = vunpack.c.l.b16 %v2007
    %v2048 = vunpack.c.l.b16 %v2008
    %v2049 = vpack.c.b16 %v2034, %v2033
    %v2050 = vpack.c.b16 %v2036, %v2035
    %v2051 = vpack.c.b16 %v2038, %v2037
    %v2052 = vpack.c.b16 %v2040, %v2039
    %v2053 = vpack.c.b16 %v2042, %v2041
    %v2054 = vpack.c.b16 %v2044, %v2043
    %v2055 = vpack.c.b16 %v2046, %v2045
    %v2056 = vpack.c.b16 %v2048, %v2047
    %2065 = vmatprep.subr.bf16.mxu0 0
    %2066 = vmatpush1.bf16.msra.mxu0 %v2056
    %2067 = vmatprep.subr.bf16.mxu0 0
    %2068 = vmatpush1.bf16.msra.mxu0 %v2055
    %2069 = vmatprep.subr.bf16.mxu0 0
    %2070 = vmatpush1.bf16.msra.mxu0 %v2054
    %2071 = vmatprep.subr.bf16.mxu0 0
    %2072 = vmatpush1.bf16.msra.mxu0 %v2053
    %2073 = vmatprep.subr.bf16.mxu0 0
    %2074 = vmatpush1.bf16.msra.mxu0 %v2052
    %2075 = vmatprep.subr.bf16.mxu0 0
    %2076 = vmatpush1.bf16.msra.mxu0 %v2051
    %2077 = vmatprep.subr.bf16.mxu0 0
    %2078 = vmatpush1.bf16.msra.mxu0 %v2050
    %2079 = vmatprep.subr.bf16.mxu0 0
    %2080 = vmatpush1.bf16.msra.mxu0 %v2049
    %2081 = vmatprep.subr.bf16.mxu0 0
    %2082 = vmatpush2.bf16.msra.mxu0 0
    %2083 = vmatprep.subr.bf16.mxu0 0
    %2084 = vmatpush2.bf16.msra.mxu0 0
    %2085 = vmatprep.subr.bf16.mxu0 0
    %2086 = vmatpush2.bf16.msra.mxu0 0
    %2087 = vmatprep.subr.bf16.mxu0 0
    %2088 = vmatpush2.bf16.msra.mxu0 0
    %2089 = vmatprep.subr.bf16.mxu0 0
    %2090 = vmatpush2.bf16.msra.mxu0 0
    %2091 = vmatprep.subr.bf16.mxu0 0
    %2092 = vmatpush2.bf16.msra.mxu0 0
    %2093 = vmatprep.subr.bf16.mxu0 0
    %2094 = vmatpush2.bf16.msra.mxu0 0
    %2095 = vmatprep.subr.bf16.mxu0 0
    %2096 = vmatpush2.bf16.msra.mxu0 0
    %2097 = vmatprep.mubr.bf16.mxu0 0
    %2098 = vmatmul.mubr.bf16.gmra.mxu0 %v1991
    %v2099 = vpop.f32.mrf.mxu0
    %v2100 = vadd.f32 %v2015, %v2099
    %v2101 = vpop.f32.mrf.mxu0
    %v2102 = vpop.f32.mrf.mxu0
    %v2103 = vadd.f32 %v2015, %v2102
    %v2104 = vpop.f32.mrf.mxu0
    %2105 = vdwg.mxu0
    %s2106 = scalar_lea.vmem %s12, 128
    %v2107 = vld [vmem:[%s2106] sm:$0xf]
    %v2108 = vld [vmem:[%s2106 + $0x4] sm:$0xf]
    %v2109 = vld [vmem:[%s2106 + $0x8] sm:$0xf]
    %v2110 = vld [vmem:[%s2106 + $0xc] sm:$0xf]
    %v2111 = vld [vmem:[%s2106 + $0x10] sm:$0xf]
    %v2112 = vld [vmem:[%s2106 + $0x14] sm:$0xf]
    %v2113 = vld [vmem:[%s2106 + $0x18] sm:$0xf]
    %v2114 = vld [vmem:[%s2106 + $0x1c] sm:$0xf]
    %v2115 = vld [vmem:[%s2106 + $0x20] sm:$0xf]
    %v2116 = vld [vmem:[%s2106 + $0x24] sm:$0xf]
    %v2117 = vld [vmem:[%s2106 + $0x28] sm:$0xf]
    %v2118 = vld [vmem:[%s2106 + $0x2c] sm:$0xf]
    %v2119 = vld [vmem:[%s2106 + $0x30] sm:$0xf]
    %v2120 = vld [vmem:[%s2106 + $0x34] sm:$0xf]
    %v2121 = vld [vmem:[%s2106 + $0x38] sm:$0xf]
    %v2122 = vld [vmem:[%s2106 + $0x3c] sm:$0xf]
    %v2139 = vunpack.c.l.b16 %v2107
    %v2140 = vunpack.c.l.b16 %v2108
    %v2141 = vunpack.c.l.b16 %v2109
    %v2142 = vunpack.c.l.b16 %v2110
    %v2143 = vunpack.c.l.b16 %v2111
    %v2144 = vunpack.c.l.b16 %v2112
    %v2145 = vunpack.c.l.b16 %v2113
    %v2146 = vunpack.c.l.b16 %v2114
    %v2147 = vunpack.c.l.b16 %v2115
    %v2148 = vunpack.c.l.b16 %v2116
    %v2149 = vunpack.c.l.b16 %v2117
    %v2150 = vunpack.c.l.b16 %v2118
    %v2151 = vunpack.c.l.b16 %v2119
    %v2152 = vunpack.c.l.b16 %v2120
    %v2153 = vunpack.c.l.b16 %v2121
    %v2154 = vunpack.c.l.b16 %v2122
    %v2155 = vpack.c.b16 %v2140, %v2139
    %v2156 = vpack.c.b16 %v2142, %v2141
    %v2157 = vpack.c.b16 %v2144, %v2143
    %v2158 = vpack.c.b16 %v2146, %v2145
    %v2159 = vpack.c.b16 %v2148, %v2147
    %v2160 = vpack.c.b16 %v2150, %v2149
    %v2161 = vpack.c.b16 %v2152, %v2151
    %v2162 = vpack.c.b16 %v2154, %v2153
    %2171 = vmatprep.subr.bf16.mxu0 0
    %2172 = vmatpush1.bf16.msra.mxu0 %v2162
    %2173 = vmatprep.subr.bf16.mxu0 0
    %2174 = vmatpush1.bf16.msra.mxu0 %v2161
    %2175 = vmatprep.subr.bf16.mxu0 0
    %2176 = vmatpush1.bf16.msra.mxu0 %v2160
    %2177 = vmatprep.subr.bf16.mxu0 0
    %2178 = vmatpush1.bf16.msra.mxu0 %v2159
    %2179 = vmatprep.subr.bf16.mxu0 0
    %2180 = vmatpush1.bf16.msra.mxu0 %v2158
    %2181 = vmatprep.subr.bf16.mxu0 0
    %2182 = vmatpush1.bf16.msra.mxu0 %v2157
    %2183 = vmatprep.subr.bf16.mxu0 0
    %2184 = vmatpush1.bf16.msra.mxu0 %v2156
    %2185 = vmatprep.subr.bf16.mxu0 0
    %2186 = vmatpush1.bf16.msra.mxu0 %v2155
    %2187 = vmatprep.subr.bf16.mxu0 0
    %2188 = vmatpush2.bf16.msra.mxu0 0
    %2189 = vmatprep.subr.bf16.mxu0 0
    %2190 = vmatpush2.bf16.msra.mxu0 0
    %2191 = vmatprep.subr.bf16.mxu0 0
    %2192 = vmatpush2.bf16.msra.mxu0 0
    %2193 = vmatprep.subr.bf16.mxu0 0
    %2194 = vmatpush2.bf16.msra.mxu0 0
    %2195 = vmatprep.subr.bf16.mxu0 0
    %2196 = vmatpush2.bf16.msra.mxu0 0
    %2197 = vmatprep.subr.bf16.mxu0 0
    %2198 = vmatpush2.bf16.msra.mxu0 0
    %2199 = vmatprep.subr.bf16.mxu0 0
    %2200 = vmatpush2.bf16.msra.mxu0 0
    %2201 = vmatprep.subr.bf16.mxu0 0
    %2202 = vmatpush2.bf16.msra.mxu0 0
    %2203 = vmatprep.mubr.bf16.mxu0 0
    %2204 = vmatmul.mubr.bf16.gmra.mxu0 %v750
    %v2205 = vpop.f32.mrf.mxu0
    %v2206 = vadd.f32 1.0, %v2205
    %v2207 = vpop.f32.mrf.mxu0
    %v2208 = vpop.f32.mrf.mxu0
    %v2209 = vadd.f32 1.0, %v2208
    %v2210 = vpop.f32.mrf.mxu0
    %2211 = vdwg.mxu0
    %v2212 = vmul.f32 %v2100, %v2206
    %v2213 = vmul.f32 %v2103, %v2209
    %v2214 = vadd.f32 %v2212, %v1728
    %v2215 = vadd.f32 %v2213, %v1729
    %2217 = vset.pattern.permute.xlu0 0
    %2218 = vperm.xlu0 %2217, %v176
    %v2219 = vpop.permute.xlu0 %2218
    %2222 = vset.pattern.permute.xlu0 0
    %2223 = vperm.xlu0 %2222, %v178
    %v2224 = vpop.permute.xlu0 %2223
    %v2226 = vmul.f32 %v2219, %v167
    %v2227 = vmul.f32 %v2224, %v168
    %2229 = vset.pattern.permute.xlu0 0
    %2230 = vperm.xlu0 %2229, %v181
    %v2231 = vpop.permute.xlu0 %2230
    %2234 = vset.pattern.permute.xlu0 0
    %2235 = vperm.xlu0 %2234, %v182
    %v2236 = vpop.permute.xlu0 %2235
    %v2238 = vmul.f32 %v2231, %v2214
    %v2239 = vmul.f32 %v2236, %v2215
    %v2240 = vadd.f32 %v2226, %v2238
    %v2241 = vadd.f32 %v2227, %v2239
    %v2242 = vmax.f32 %v2240, -1.0
    %v2243 = vmax.f32 %v2241, -1.0
    %v2244 = vmin.f32 %v2242, 1.0
    %v2245 = vmin.f32 %v2243, 1.0
    %v2246 = vsub.f32 %v2244, %v101
    %v2247 = vsub.f32 %v2245, %v102
    %v2248 = vmul.f32 %v179, %v179
    %v2249 = vmul.f32 %v180, %v180
    %v2250 = vrcp.pop %v2248
    %v2251 = vmul.f32 %v171, %v2250
    %v2252 = vrcp.pop %v2249
    %v2253 = vmul.f32 %v172, %v2252
    %v2254 = vmul.f32 %v2246, %v2246
    %v2255 = vmul.f32 %v2247, %v2247
    %2257 = vset.pattern.permute.xlu0 0
    %2258 = vperm.xlu0 %2257, %v2251
    %v2259 = vpop.permute.xlu0 %2258
    %2262 = vset.pattern.permute.xlu0 0
    %2263 = vperm.xlu0 %2262, %v2253
    %v2264 = vpop.permute.xlu0 %2263
    %v2266 = vmul.f32 %v2254, %v2259
    %v2267 = vmul.f32 %v2255, %v2264
    %v2268 = vmul.f32 %v2266, %v128
    %v2269 = vmul.f32 %v2267, %v129
    %v2270 = vld [vmem:[%s13] sm:$0x1]
    %v2271 = vadd.f32 %v2268, %v2269
    %v2272 = vrot.slane %v2271, 4
    %v2273 = vadd.f32 %v2271, %v2272
    %v2274 = vrot.slane %v2273, 2
    %v2275 = vadd.f32 %v2273, %v2274
    %v2276 = vrot.slane %v2275, 1
    %v2277 = vadd.f32 %v2275, %v2276
    %v2278 = vadd.f32 %v2270, %v2277
    %2279 = vst [vmem:[%s13] sm:$0x1] %v2278
    // Predicated region
    $region74: #{autoregressive_diffusion_forward.13} parent=1 // pred_check
      _
    $region75: #{autoregressive_diffusion_forward.13} parent=1 // pred_check_branch
      %2281 = sbr.rel (0) target = $region77
    $region76: #{autoregressive_diffusion_forward.13} parent=1 // pred_region
      _
    $region77: #{autoregressive_diffusion_forward.13} parent=1 // pred_fallthru
      _
    // Predicated region
    $region78: #{autoregressive_diffusion_forward.13} parent=1 // pred_check
      _
    $region79: #{autoregressive_diffusion_forward.13} parent=1 // pred_check_branch
      %2283 = sbr.rel (0) target = $region81
    $region80: #{autoregressive_diffusion_forward.13} parent=1 // pred_region
      _
    $region81: #{autoregressive_diffusion_forward.13} parent=1 // pred_fallthru
      _
    %2284 = vsyncpa [#allocation3], 1
    %2285 = vsyncpa [#allocation5], 1
    %2286 = vsyncpa [#allocation8], 1

</llo_original>
